<compile_context>
chip_gen: v6e
topology: v6e:2x2x1
jax: 0.10.0
libtpu: 0.0.40
codegen_flags: <defaults>
</compile_context>

<pallas_src>
import functools

import numpy as np

import jax
import jax.numpy as jnp
from jax.experimental import pallas as pl
from jax.experimental.pallas import tpu as pltpu

LEAKY_SLOPE = 0.01          # torch.nn.LeakyReLU default
HIDDEN_C = 16               # channel width used throughout the module
ENC_LAYERS = 5
DEC_LAYERS = 5


def _leaky(x):
    return jnp.where(x > 0, x, LEAKY_SLOPE * x)


def _param_order():
    names = []
    for i in range(ENC_LAYERS):
        names += [f'w_enc{i}', f'b_enc{i}']
    names += ['w_lat1', 'b_lat1', 'w_lat2', 'b_lat2', 'w_lat3', 'b_lat3']
    names += ['w_l2a', 'b_l2a', 'w_l2b', 'b_l2b', 'w_l2c', 'b_l2c']
    for i in range(DEC_LAYERS):
        names += [f'w_dec{i}', f'b_dec{i}']
    return tuple(names)


PARAM_ORDER = _param_order()


# ----------------------------------------------------------------------------
# Fused Pallas kernel: every layer is one matmul on a flat (TB, L*C) slab.
# ----------------------------------------------------------------------------

def vae_kernel(*refs, emb):
    it = iter(refs)
    x_ref, eps_ref = next(it), next(it)
    enc = [(next(it), next(it)) for _ in range(ENC_LAYERS)]
    lat = [(next(it), next(it)) for _ in range(3)]
    l2 = [(next(it), next(it)) for _ in range(3)]
    dec = [(next(it), next(it)) for _ in range(DEC_LAYERS)]
    out_ref = next(it)

    def dense(h, wb, leaky):
        w_ref, b_ref = wb
        y = jnp.dot(h, w_ref[...], preferred_element_type=jnp.float32) + b_ref[...]
        return _leaky(y) if leaky else y

    # ---- encoder: 5x (Conv1d + LeakyReLU) as banded-dense matmuls -----------
    h = x_ref[...]                               # (TB, L_in*Cin), L-major flat
    for wb in enc:
        h = dense(h, wb, leaky=True)             # ends at (TB, 16*L_code)

    # ---- merged mean/std heads (block-diagonal) + reparameterization --------
    z = dense(h, lat[0], leaky=True)             # (TB, 256)
    z = dense(z, lat[1], leaky=True)             # (TB, 128)
    z = dense(z, lat[2], leaky=False)            # (TB, 2*emb) = [mu | log_var]
    mu = z[:, :emb]
    log_var = z[:, emb:]
    code = mu + jnp.exp(0.5 * log_var) * eps_ref[...]

    # ---- linear2 MLP (LeakyReLU after every layer) ---------------------------
    p = dense(code, l2[0], leaky=True)           # (TB, 64)
    p = dense(p, l2[1], leaky=True)              # (TB, 128)
    p = dense(p, l2[2], leaky=True)              # (TB, 16*L_code), L-major flat

    # ---- decoder: 5x ConvTranspose1d as banded-dense matmuls -----------------
    y = p
    for i, wb in enumerate(dec):
        y = dense(y, wb, leaky=(i < DEC_LAYERS - 1))   # final (TB, L_in*Cin)

    # ---- single merged lane-dense output: [xhat_flat | code | mu | log_var] --
    nx = y.shape[1]
    out_ref[:, :nx] = y
    out_ref[:, nx:nx + emb] = code
    out_ref[:, nx + emb:nx + 3 * emb] = z        # z is already [mu | log_var]


# ----------------------------------------------------------------------------
# Wrapper: one pallas_call per forward, batch-tiled grid
# ----------------------------------------------------------------------------

def _batch_tile(B):
    # second-to-last block dim must be a multiple of 8 or equal the full dim
    if B > 8 and B % 8 == 0:
        return 8
    return B


@jax.jit
def vae_forward(packed, X, sample_key):
    """X: (B, Cin, L_in) float32 -> (X_hat, code, mu, log_var)."""
    B, Cin, L_in = X.shape
    emb = packed['w_l2a'].shape[0]
    d_in = L_in * Cin
    out_dim = d_in + 3 * emb
    TB = _batch_tile(B)
    assert B % TB == 0
    assert packed['w_enc0'].shape[0] == d_in

    x_flat = jnp.transpose(X, (0, 2, 1)).reshape(B, d_in).astype(jnp.float32)
    eps = jax.random.normal(sample_key, (B, emb), dtype=jnp.float32)
    params = tuple(packed[k] for k in PARAM_ORDER)

    def tiled(d):                       # batch-tiled activations / outputs
        return pl.BlockSpec((TB, d), lambda i: (i, 0))

    def full(a):                        # weights: VMEM-resident, constant index
        return pl.BlockSpec(a.shape, lambda i: (0, 0))

    out = pl.pallas_call(
        functools.partial(vae_kernel, emb=emb),
        grid=(B // TB,),
        out_shape=jax.ShapeDtypeStruct((B, out_dim), jnp.float32),
        in_specs=[tiled(d_in), tiled(emb)] + [full(p) for p in params],
        out_specs=tiled(out_dim),
        compiler_params=pltpu.CompilerParams(
            dimension_semantics=("parallel",),
            vmem_limit_bytes=32 * 1024 * 1024),
    )(x_flat, eps, *params)

    xhat_flat = out[:, :d_in]
    code = out[:, d_in:d_in + emb]
    mu = out[:, d_in + emb:d_in + 2 * emb]
    log_var = out[:, d_in + 2 * emb:d_in + 3 * emb]
    # back to PyTorch NCL layout; .squeeze() mirrors the torch module exactly
    X_hat = jnp.squeeze(jnp.transpose(xhat_flat.reshape(B, L_in, Cin), (0, 2, 1)))
    return X_hat, code, mu, log_var


# ----------------------------------------------------------------------------
# Deterministic parameter init (PyTorch layouts) + one-time kernel repack
# ----------------------------------------------------------------------------

def init_params(key, hp):
    k = hp['kernel_size']
    cin = hp['in']
    emb = hp['embedding_dimension']
    keys = iter(jax.random.split(key, 64))

    def conv_w(co, ci):
        scale = 1.0 / jnp.sqrt(ci * k)
        w = jax.random.uniform(next(keys), (co, ci, k), jnp.float32, -scale, scale)
        b = jax.random.uniform(next(keys), (co,), jnp.float32, -scale, scale)
        return (w, b)

    def convT_w(ci, co):
        scale = 1.0 / jnp.sqrt(ci * k)
        w = jax.random.uniform(next(keys), (ci, co, k), jnp.float32, -scale, scale)
        b = jax.random.uniform(next(keys), (co,), jnp.float32, -scale, scale)
        return (w, b)

    def lin_w(dout, din):
        scale = 1.0 / jnp.sqrt(din)
        w = jax.random.uniform(next(keys), (dout, din), jnp.float32, -scale, scale)
        b = jax.random.uniform(next(keys), (dout,), jnp.float32, -scale, scale)
        return (w, b)

    return {
        'encoder': [conv_w(16, cin)] + [conv_w(16, 16) for _ in range(4)],
        'mean_map': [lin_w(128, 160), lin_w(64, 128), lin_w(emb, 64)],
        'std_map': [lin_w(128, 160), lin_w(64, 128), lin_w(emb, 64)],
        'linear2': [lin_w(64, emb), lin_w(128, 64), lin_w(160, 128)],
        'decoder': [convT_w(16, 16) for _ in range(4)] + [convT_w(16, cin)],
    }


def pack_params(params, L_in):
    """One-time conversion of PyTorch-layout params into banded-dense kernel layout."""
    C = HIDDEN_C

    def band_conv(w_pt, Lin):
        # Conv1d weight (Cout, Cin, K) -> Toeplitz (Lin*Cin, Lout*Cout), valid conv
        w = np.asarray(w_pt)
        co, ci, k = w.shape
        Lout = Lin - k + 1
        W = np.zeros((Lin * ci, Lout * co), np.float32)
        for lo in range(Lout):
            for t in range(k):
                li = lo + t
                W[li * ci:(li + 1) * ci, lo * co:(lo + 1) * co] = w[:, :, t].T
        return jnp.asarray(W), Lout

    def band_convT(w_pt, Lin):
        # ConvTranspose1d weight (Cin, Cout, K) -> Toeplitz (Lin*Cin, Lout*Cout)
        w = np.asarray(w_pt)
        ci, co, k = w.shape
        Lout = Lin + k - 1
        W = np.zeros((Lin * ci, Lout * co), np.float32)
        for li in range(Lin):
            for t in range(k):
                lo = li + t
                W[li * ci:(li + 1) * ci, lo * co:(lo + 1) * co] = w[:, :, t]
        return jnp.asarray(W), Lout

    def tile_bias(b, Lout):
        return jnp.asarray(np.tile(np.asarray(b), Lout).reshape(1, -1))

    out = {}

    # encoder
    L = L_in
    for i, (w, b) in enumerate(params['encoder']):
        Wb, Lo = band_conv(w, L)
        out[f'w_enc{i}'] = Wb
        out[f'b_enc{i}'] = tile_bias(b, Lo)
        L = Lo
    L_code = L

    (wm1, bm1), (wm2, bm2), (wm3, bm3) = params['mean_map']
    (ws1, bs1), (ws2, bs2), (ws3, bs3) = params['std_map']
    (wa, ba), (wb_, bb_), (wc, bc) = params['linear2']
    emb = wm3.shape[0]
    assert C * L_code == wm1.shape[1]

    def permute_flat_rows(wT):
        # torch channel-major flat rows (c*L + l) -> kernel L-major rows (l*C + c)
        d = wT.shape[1]
        return wT.reshape(C, L_code, d).transpose(1, 0, 2).reshape(C * L_code, d)

    # merged mean/std heads: layer1 concat on Dout, layers 2/3 block-diagonal
    out['w_lat1'] = jnp.concatenate(
        [permute_flat_rows(wm1.T), permute_flat_rows(ws1.T)], axis=1)
    out['b_lat1'] = jnp.concatenate([bm1, bs1]).reshape(1, -1)
    w_lat2 = jnp.zeros((2 * wm2.shape[1], 2 * wm2.shape[0]), jnp.float32)
    w_lat2 = w_lat2.at[:wm2.shape[1], :wm2.shape[0]].set(wm2.T)
    w_lat2 = w_lat2.at[wm2.shape[1]:, wm2.shape[0]:].set(ws2.T)
    out['w_lat2'] = w_lat2
    out['b_lat2'] = jnp.concatenate([bm2, bs2]).reshape(1, -1)
    w_lat3 = jnp.zeros((2 * wm3.shape[1], 2 * emb), jnp.float32)
    w_lat3 = w_lat3.at[:wm3.shape[1], :emb].set(wm3.T)
    w_lat3 = w_lat3.at[wm3.shape[1]:, emb:].set(ws3.T)
    out['w_lat3'] = w_lat3
    out['b_lat3'] = jnp.concatenate([bm3, bs3]).reshape(1, -1)

    # linear2: last layer's output columns permuted so the kernel's L-major flat
    # layout reproduces torch's channel-major view(B, C, L)
    out['w_l2a'] = wa.T
    out['b_l2a'] = ba.reshape(1, -1)
    out['w_l2b'] = wb_.T
    out['b_l2b'] = bb_.reshape(1, -1)
    out['w_l2c'] = wc.T.reshape(-1, C, L_code).transpose(0, 2, 1).reshape(-1, C * L_code)
    out['b_l2c'] = bc.reshape(C, L_code).T.reshape(1, C * L_code)

    # decoder
    L = L_code
    for i, (w, b) in enumerate(params['decoder']):
        Wb, Lo = band_convT(w, L)
        out[f'w_dec{i}'] = Wb
        out[f'b_dec{i}'] = tile_bias(b, Lo)
        L = Lo
    return out


# ----------------------------------------------------------------------------
# Pure-XLA reference of SimpleVAE.forward (for numerical validation)
# ----------------------------------------------------------------------------

def reference_forward(params, X, key):
    HI = jax.lax.Precision.HIGHEST
    K = params['encoder'][0][0].shape[2]

    def conv1d(x, w, b):                     # x (B,Ci,L), w (Co,Ci,K)
        Lo = x.shape[2] - K + 1
        xw = jnp.stack([x[:, :, t:t + Lo] for t in range(K)], axis=-1)
        return jnp.einsum('bcit,oct->boi', xw, w, precision=HI) + b[None, :, None]

    def conv_t1d(x, w, b):                   # x (B,Ci,L), w (Ci,Co,K)
        Lo = x.shape[2] + K - 1
        xp = jnp.pad(x, ((0, 0), (0, 0), (K - 1, K - 1)))
        xw = jnp.stack([xp[:, :, t:t + Lo] for t in range(K)], axis=-1)
        return jnp.einsum('bcit,cot->boi', xw, w[:, :, ::-1], precision=HI) + b[None, :, None]

    def mlp(layers, h, leaky_last):
        n = len(layers)
        for i, (w, b) in enumerate(layers):
            h = jnp.dot(h, w.T, precision=HI) + b
            if i < n - 1 or leaky_last:
                h = _leaky(h)
        return h

    x = X.astype(jnp.float32)
    for (w, b) in params['encoder']:
        x = _leaky(conv1d(x, w, b))
    B, C, L = x.shape
    flat = x.reshape(B, C * L)
    mu = mlp(params['mean_map'], flat, leaky_last=False)
    log_var = mlp(params['std_map'], flat, leaky_last=False)
    eps = jax.random.normal(key, mu.shape, dtype=jnp.float32)
    code = mu + jnp.exp(0.5 * log_var) * eps
    post = mlp(params['linear2'], code, leaky_last=True)
    x = post.reshape(B, C, L)
    for i, (w, b) in enumerate(params['decoder']):
        x = conv_t1d(x, w, b)
        if i < len(params['decoder']) - 1:
            x = _leaky(x)
    return jnp.squeeze(x), code, mu, log_var


# ----------------------------------------------------------------------------
# Main
# ----------------------------------------------------------------------------

if __name__ == "__main__":
    hp = {'in': 4, 'kernel_size': 3, 'embedding_dimension': 8}
    # encoder output length must be 10 (16*10 == 160): L_in = 10 + 5*(k-1) = 20
    B, Cin = 16, hp['in']
    L_in = 10 + ENC_LAYERS * (hp['kernel_size'] - 1)

    root = jax.random.PRNGKey(0)
    kx, kp, ks = jax.random.split(root, 3)

    X = jax.random.normal(kx, (B, Cin, L_in), dtype=jnp.float32)
    params = init_params(kp, hp)          # PyTorch-layout parameters
    packed = pack_params(params, L_in)    # one-time banded / merged repack

    X_hat, code, mu, log_var = vae_forward(packed, X, ks)
    jax.block_until_ready((X_hat, code, mu, log_var))

    assert X_hat.shape == (B, Cin, L_in)
    assert code.shape == (B, hp['embedding_dimension'])
    assert mu.shape == (B, hp['embedding_dimension'])
    assert log_var.shape == (B, hp['embedding_dimension'])

    # numerical check against a pure-XLA reference of the same forward pass
    ref = reference_forward(params, X, ks)
    for got, want in zip((X_hat, code, mu, log_var), ref):
        assert got.shape == want.shape
        assert jnp.allclose(got, want, rtol=5e-2, atol=5e-2), \
            float(jnp.max(jnp.abs(got - want)))

    print("KERNEL_OK")
</pallas_src>

<mosaic_0001>
module attributes {stable_mosaic.version = 11 : i64} {
  func.func @vae_kernel(%arg0: i32, %arg1: memref<8x80xf32, #tpu.memory_space<vmem>>, %arg2: memref<8x8xf32, #tpu.memory_space<vmem>>, %arg3: memref<80x288xf32, #tpu.memory_space<vmem>>, %arg4: memref<1x288xf32, #tpu.memory_space<vmem>>, %arg5: memref<288x256xf32, #tpu.memory_space<vmem>>, %arg6: memref<1x256xf32, #tpu.memory_space<vmem>>, %arg7: memref<256x224xf32, #tpu.memory_space<vmem>>, %arg8: memref<1x224xf32, #tpu.memory_space<vmem>>, %arg9: memref<224x192xf32, #tpu.memory_space<vmem>>, %arg10: memref<1x192xf32, #tpu.memory_space<vmem>>, %arg11: memref<192x160xf32, #tpu.memory_space<vmem>>, %arg12: memref<1x160xf32, #tpu.memory_space<vmem>>, %arg13: memref<160x256xf32, #tpu.memory_space<vmem>>, %arg14: memref<1x256xf32, #tpu.memory_space<vmem>>, %arg15: memref<256x128xf32, #tpu.memory_space<vmem>>, %arg16: memref<1x128xf32, #tpu.memory_space<vmem>>, %arg17: memref<128x16xf32, #tpu.memory_space<vmem>>, %arg18: memref<1x16xf32, #tpu.memory_space<vmem>>, %arg19: memref<8x64xf32, #tpu.memory_space<vmem>>, %arg20: memref<1x64xf32, #tpu.memory_space<vmem>>, %arg21: memref<64x128xf32, #tpu.memory_space<vmem>>, %arg22: memref<1x128xf32, #tpu.memory_space<vmem>>, %arg23: memref<128x160xf32, #tpu.memory_space<vmem>>, %arg24: memref<1x160xf32, #tpu.memory_space<vmem>>, %arg25: memref<160x192xf32, #tpu.memory_space<vmem>>, %arg26: memref<1x192xf32, #tpu.memory_space<vmem>>, %arg27: memref<192x224xf32, #tpu.memory_space<vmem>>, %arg28: memref<1x224xf32, #tpu.memory_space<vmem>>, %arg29: memref<224x256xf32, #tpu.memory_space<vmem>>, %arg30: memref<1x256xf32, #tpu.memory_space<vmem>>, %arg31: memref<256x288xf32, #tpu.memory_space<vmem>>, %arg32: memref<1x288xf32, #tpu.memory_space<vmem>>, %arg33: memref<288x80xf32, #tpu.memory_space<vmem>>, %arg34: memref<1x80xf32, #tpu.memory_space<vmem>>, %arg35: memref<8x104xf32, #tpu.memory_space<vmem>>) attributes {dimension_semantics = [#tpu.dimension_semantics<parallel>], iteration_bounds = array<i64: 2>, scalar_prefetch = 0 : i64, scratch_operands = 0 : i64, tpu.core_type = #tpu.core_type<tc>, window_params = [{transform_indices = @transform_0, window_bounds = array<i64: 8, 80>}, {transform_indices = @transform_1, window_bounds = array<i64: 8, 8>}, {pipeline_mode = #tpu.pipeline_mode<synchronous>, transform_indices = @transform_2, window_bounds = array<i64: 80, 288>}, {pipeline_mode = #tpu.pipeline_mode<synchronous>, transform_indices = @transform_3, window_bounds = array<i64: 1, 288>}, {pipeline_mode = #tpu.pipeline_mode<synchronous>, transform_indices = @transform_4, window_bounds = array<i64: 288, 256>}, {pipeline_mode = #tpu.pipeline_mode<synchronous>, transform_indices = @transform_5, window_bounds = array<i64: 1, 256>}, {pipeline_mode = #tpu.pipeline_mode<synchronous>, transform_indices = @transform_6, window_bounds = array<i64: 256, 224>}, {pipeline_mode = #tpu.pipeline_mode<synchronous>, transform_indices = @transform_7, window_bounds = array<i64: 1, 224>}, {pipeline_mode = #tpu.pipeline_mode<synchronous>, transform_indices = @transform_8, window_bounds = array<i64: 224, 192>}, {pipeline_mode = #tpu.pipeline_mode<synchronous>, transform_indices = @transform_9, window_bounds = array<i64: 1, 192>}, {pipeline_mode = #tpu.pipeline_mode<synchronous>, transform_indices = @transform_10, window_bounds = array<i64: 192, 160>}, {pipeline_mode = #tpu.pipeline_mode<synchronous>, transform_indices = @transform_11, window_bounds = array<i64: 1, 160>}, {pipeline_mode = #tpu.pipeline_mode<synchronous>, transform_indices = @transform_12, window_bounds = array<i64: 160, 256>}, {pipeline_mode = #tpu.pipeline_mode<synchronous>, transform_indices = @transform_13, window_bounds = array<i64: 1, 256>}, {pipeline_mode = #tpu.pipeline_mode<synchronous>, transform_indices = @transform_14, window_bounds = array<i64: 256, 128>}, {pipeline_mode = #tpu.pipeline_mode<synchronous>, transform_indices = @transform_15, window_bounds = array<i64: 1, 128>}, {pipeline_mode = #tpu.pipeline_mode<synchronous>, transform_indices = @transform_16, window_bounds = array<i64: 128, 16>}, {pipeline_mode = #tpu.pipeline_mode<synchronous>, transform_indices = @transform_17, window_bounds = array<i64: 1, 16>}, {pipeline_mode = #tpu.pipeline_mode<synchronous>, transform_indices = @transform_18, window_bounds = array<i64: 8, 64>}, {pipeline_mode = #tpu.pipeline_mode<synchronous>, transform_indices = @transform_19, window_bounds = array<i64: 1, 64>}, {pipeline_mode = #tpu.pipeline_mode<synchronous>, transform_indices = @transform_20, window_bounds = array<i64: 64, 128>}, {pipeline_mode = #tpu.pipeline_mode<synchronous>, transform_indices = @transform_21, window_bounds = array<i64: 1, 128>}, {pipeline_mode = #tpu.pipeline_mode<synchronous>, transform_indices = @transform_22, window_bounds = array<i64: 128, 160>}, {pipeline_mode = #tpu.pipeline_mode<synchronous>, transform_indices = @transform_23, window_bounds = array<i64: 1, 160>}, {pipeline_mode = #tpu.pipeline_mode<synchronous>, transform_indices = @transform_24, window_bounds = array<i64: 160, 192>}, {pipeline_mode = #tpu.pipeline_mode<synchronous>, transform_indices = @transform_25, window_bounds = array<i64: 1, 192>}, {pipeline_mode = #tpu.pipeline_mode<synchronous>, transform_indices = @transform_26, window_bounds = array<i64: 192, 224>}, {pipeline_mode = #tpu.pipeline_mode<synchronous>, transform_indices = @transform_27, window_bounds = array<i64: 1, 224>}, {pipeline_mode = #tpu.pipeline_mode<synchronous>, transform_indices = @transform_28, window_bounds = array<i64: 224, 256>}, {pipeline_mode = #tpu.pipeline_mode<synchronous>, transform_indices = @transform_29, window_bounds = array<i64: 1, 256>}, {pipeline_mode = #tpu.pipeline_mode<synchronous>, transform_indices = @transform_30, window_bounds = array<i64: 256, 288>}, {pipeline_mode = #tpu.pipeline_mode<synchronous>, transform_indices = @transform_31, window_bounds = array<i64: 1, 288>}, {pipeline_mode = #tpu.pipeline_mode<synchronous>, transform_indices = @transform_32, window_bounds = array<i64: 288, 80>}, {pipeline_mode = #tpu.pipeline_mode<synchronous>, transform_indices = @transform_33, window_bounds = array<i64: 1, 80>}, {transform_indices = @transform_34, window_bounds = array<i64: 8, 104>}]} {
    %c0 = arith.constant 0 : index
    %c0_0 = arith.constant 0 : index
    %0 = vector.load %arg1[%c0, %c0_0] : memref<8x80xf32, #tpu.memory_space<vmem>>, vector<8x80xf32>
    %c0_1 = arith.constant 0 : index
    %c0_2 = arith.constant 0 : index
    %1 = vector.load %arg3[%c0_1, %c0_2] : memref<80x288xf32, #tpu.memory_space<vmem>>, vector<80x288xf32>
    %cst = arith.constant dense<0.000000e+00> : vector<8x288xf32>
    %2 = tpu.matmul %0, %1, %cst {dimension_numbers = #tpu.dot_dimension_numbers<[1], [0], [0], [1], [0, 0, 1, 1], [], []>} : vector<8x80xf32>, vector<80x288xf32>, vector<8x288xf32> -> vector<8x288xf32>
    %c0_3 = arith.constant 0 : index
    %c0_4 = arith.constant 0 : index
    %3 = vector.load %arg4[%c0_3, %c0_4] : memref<1x288xf32, #tpu.memory_space<vmem>>, vector<1x288xf32>
    %4 = vector.broadcast %3 : vector<1x288xf32> to vector<8x288xf32>
    %5 = arith.addf %2, %4 : vector<8x288xf32>
    %cst_5 = arith.constant 0.000000e+00 : f32
    %6 = vector.broadcast %cst_5 : f32 to vector<8x288xf32>
    %7 = arith.cmpf ogt, %5, %6 : vector<8x288xf32>
    %cst_6 = arith.constant 0.00999999977 : f32
    %8 = vector.broadcast %cst_6 : f32 to vector<8x288xf32>
    %9 = arith.mulf %8, %5 : vector<8x288xf32>
    %10 = arith.select %7, %5, %9 : vector<8x288xi1>, vector<8x288xf32>
    %c0_7 = arith.constant 0 : index
    %c0_8 = arith.constant 0 : index
    %11 = vector.load %arg5[%c0_7, %c0_8] : memref<288x256xf32, #tpu.memory_space<vmem>>, vector<288x256xf32>
    %cst_9 = arith.constant dense<0.000000e+00> : vector<8x256xf32>
    %12 = tpu.matmul %10, %11, %cst_9 {dimension_numbers = #tpu.dot_dimension_numbers<[1], [0], [0], [1], [0, 0, 1, 1], [], []>} : vector<8x288xf32>, vector<288x256xf32>, vector<8x256xf32> -> vector<8x256xf32>
    %c0_10 = arith.constant 0 : index
    %c0_11 = arith.constant 0 : index
    %13 = vector.load %arg6[%c0_10, %c0_11] : memref<1x256xf32, #tpu.memory_space<vmem>>, vector<1x256xf32>
    %14 = vector.broadcast %13 : vector<1x256xf32> to vector<8x256xf32>
    %15 = arith.addf %12, %14 : vector<8x256xf32>
    %cst_12 = arith.constant 0.000000e+00 : f32
    %16 = vector.broadcast %cst_12 : f32 to vector<8x256xf32>
    %17 = arith.cmpf ogt, %15, %16 : vector<8x256xf32>
    %cst_13 = arith.constant 0.00999999977 : f32
    %18 = vector.broadcast %cst_13 : f32 to vector<8x256xf32>
    %19 = arith.mulf %18, %15 : vector<8x256xf32>
    %20 = arith.select %17, %15, %19 : vector<8x256xi1>, vector<8x256xf32>
    %c0_14 = arith.constant 0 : index
    %c0_15 = arith.constant 0 : index
    %21 = vector.load %arg7[%c0_14, %c0_15] : memref<256x224xf32, #tpu.memory_space<vmem>>, vector<256x224xf32>
    %cst_16 = arith.constant dense<0.000000e+00> : vector<8x224xf32>
    %22 = tpu.matmul %20, %21, %cst_16 {dimension_numbers = #tpu.dot_dimension_numbers<[1], [0], [0], [1], [0, 0, 1, 1], [], []>} : vector<8x256xf32>, vector<256x224xf32>, vector<8x224xf32> -> vector<8x224xf32>
    %c0_17 = arith.constant 0 : index
    %c0_18 = arith.constant 0 : index
    %23 = vector.load %arg8[%c0_17, %c0_18] : memref<1x224xf32, #tpu.memory_space<vmem>>, vector<1x224xf32>
    %24 = vector.broadcast %23 : vector<1x224xf32> to vector<8x224xf32>
    %25 = arith.addf %22, %24 : vector<8x224xf32>
    %cst_19 = arith.constant 0.000000e+00 : f32
    %26 = vector.broadcast %cst_19 : f32 to vector<8x224xf32>
    %27 = arith.cmpf ogt, %25, %26 : vector<8x224xf32>
    %cst_20 = arith.constant 0.00999999977 : f32
    %28 = vector.broadcast %cst_20 : f32 to vector<8x224xf32>
    %29 = arith.mulf %28, %25 : vector<8x224xf32>
    %30 = arith.select %27, %25, %29 : vector<8x224xi1>, vector<8x224xf32>
    %c0_21 = arith.constant 0 : index
    %c0_22 = arith.constant 0 : index
    %31 = vector.load %arg9[%c0_21, %c0_22] : memref<224x192xf32, #tpu.memory_space<vmem>>, vector<224x192xf32>
    %cst_23 = arith.constant dense<0.000000e+00> : vector<8x192xf32>
    %32 = tpu.matmul %30, %31, %cst_23 {dimension_numbers = #tpu.dot_dimension_numbers<[1], [0], [0], [1], [0, 0, 1, 1], [], []>} : vector<8x224xf32>, vector<224x192xf32>, vector<8x192xf32> -> vector<8x192xf32>
    %c0_24 = arith.constant 0 : index
    %c0_25 = arith.constant 0 : index
    %33 = vector.load %arg10[%c0_24, %c0_25] : memref<1x192xf32, #tpu.memory_space<vmem>>, vector<1x192xf32>
    %34 = vector.broadcast %33 : vector<1x192xf32> to vector<8x192xf32>
    %35 = arith.addf %32, %34 : vector<8x192xf32>
    %cst_26 = arith.constant 0.000000e+00 : f32
    %36 = vector.broadcast %cst_26 : f32 to vector<8x192xf32>
    %37 = arith.cmpf ogt, %35, %36 : vector<8x192xf32>
    %cst_27 = arith.constant 0.00999999977 : f32
    %38 = vector.broadcast %cst_27 : f32 to vector<8x192xf32>
    %39 = arith.mulf %38, %35 : vector<8x192xf32>
    %40 = arith.select %37, %35, %39 : vector<8x192xi1>, vector<8x192xf32>
    %c0_28 = arith.constant 0 : index
    %c0_29 = arith.constant 0 : index
    %41 = vector.load %arg11[%c0_28, %c0_29] : memref<192x160xf32, #tpu.memory_space<vmem>>, vector<192x160xf32>
    %cst_30 = arith.constant dense<0.000000e+00> : vector<8x160xf32>
    %42 = tpu.matmul %40, %41, %cst_30 {dimension_numbers = #tpu.dot_dimension_numbers<[1], [0], [0], [1], [0, 0, 1, 1], [], []>} : vector<8x192xf32>, vector<192x160xf32>, vector<8x160xf32> -> vector<8x160xf32>
    %c0_31 = arith.constant 0 : index
    %c0_32 = arith.constant 0 : index
    %43 = vector.load %arg12[%c0_31, %c0_32] : memref<1x160xf32, #tpu.memory_space<vmem>>, vector<1x160xf32>
    %44 = vector.broadcast %43 : vector<1x160xf32> to vector<8x160xf32>
    %45 = arith.addf %42, %44 : vector<8x160xf32>
    %cst_33 = arith.constant 0.000000e+00 : f32
    %46 = vector.broadcast %cst_33 : f32 to vector<8x160xf32>
    %47 = arith.cmpf ogt, %45, %46 : vector<8x160xf32>
    %cst_34 = arith.constant 0.00999999977 : f32
    %48 = vector.broadcast %cst_34 : f32 to vector<8x160xf32>
    %49 = arith.mulf %48, %45 : vector<8x160xf32>
    %50 = arith.select %47, %45, %49 : vector<8x160xi1>, vector<8x160xf32>
    %c0_35 = arith.constant 0 : index
    %c0_36 = arith.constant 0 : index
    %51 = vector.load %arg13[%c0_35, %c0_36] : memref<160x256xf32, #tpu.memory_space<vmem>>, vector<160x256xf32>
    %cst_37 = arith.constant dense<0.000000e+00> : vector<8x256xf32>
    %52 = tpu.matmul %50, %51, %cst_37 {dimension_numbers = #tpu.dot_dimension_numbers<[1], [0], [0], [1], [0, 0, 1, 1], [], []>} : vector<8x160xf32>, vector<160x256xf32>, vector<8x256xf32> -> vector<8x256xf32>
    %c0_38 = arith.constant 0 : index
    %c0_39 = arith.constant 0 : index
    %53 = vector.load %arg14[%c0_38, %c0_39] : memref<1x256xf32, #tpu.memory_space<vmem>>, vector<1x256xf32>
    %54 = vector.broadcast %53 : vector<1x256xf32> to vector<8x256xf32>
    %55 = arith.addf %52, %54 : vector<8x256xf32>
    %cst_40 = arith.constant 0.000000e+00 : f32
    %56 = vector.broadcast %cst_40 : f32 to vector<8x256xf32>
    %57 = arith.cmpf ogt, %55, %56 : vector<8x256xf32>
    %cst_41 = arith.constant 0.00999999977 : f32
    %58 = vector.broadcast %cst_41 : f32 to vector<8x256xf32>
    %59 = arith.mulf %58, %55 : vector<8x256xf32>
    %60 = arith.select %57, %55, %59 : vector<8x256xi1>, vector<8x256xf32>
    %c0_42 = arith.constant 0 : index
    %c0_43 = arith.constant 0 : index
    %61 = vector.load %arg15[%c0_42, %c0_43] : memref<256x128xf32, #tpu.memory_space<vmem>>, vector<256x128xf32>
    %cst_44 = arith.constant dense<0.000000e+00> : vector<8x128xf32>
    %62 = tpu.matmul %60, %61, %cst_44 {dimension_numbers = #tpu.dot_dimension_numbers<[1], [0], [0], [1], [0, 0, 1, 1], [], []>} : vector<8x256xf32>, vector<256x128xf32>, vector<8x128xf32> -> vector<8x128xf32>
    %c0_45 = arith.constant 0 : index
    %c0_46 = arith.constant 0 : index
    %63 = vector.load %arg16[%c0_45, %c0_46] : memref<1x128xf32, #tpu.memory_space<vmem>>, vector<1x128xf32>
    %64 = vector.broadcast %63 : vector<1x128xf32> to vector<8x128xf32>
    %65 = arith.addf %62, %64 : vector<8x128xf32>
    %cst_47 = arith.constant 0.000000e+00 : f32
    %66 = vector.broadcast %cst_47 : f32 to vector<8x128xf32>
    %67 = arith.cmpf ogt, %65, %66 : vector<8x128xf32>
    %cst_48 = arith.constant 0.00999999977 : f32
    %68 = vector.broadcast %cst_48 : f32 to vector<8x128xf32>
    %69 = arith.mulf %68, %65 : vector<8x128xf32>
    %70 = arith.select %67, %65, %69 : vector<8x128xi1>, vector<8x128xf32>
    %c0_49 = arith.constant 0 : index
    %c0_50 = arith.constant 0 : index
    %71 = vector.load %arg17[%c0_49, %c0_50] : memref<128x16xf32, #tpu.memory_space<vmem>>, vector<128x16xf32>
    %cst_51 = arith.constant dense<0.000000e+00> : vector<8x16xf32>
    %72 = tpu.matmul %70, %71, %cst_51 {dimension_numbers = #tpu.dot_dimension_numbers<[1], [0], [0], [1], [0, 0, 1, 1], [], []>} : vector<8x128xf32>, vector<128x16xf32>, vector<8x16xf32> -> vector<8x16xf32>
    %c0_52 = arith.constant 0 : index
    %c0_53 = arith.constant 0 : index
    %73 = vector.load %arg18[%c0_52, %c0_53] : memref<1x16xf32, #tpu.memory_space<vmem>>, vector<1x16xf32>
    %74 = vector.broadcast %73 : vector<1x16xf32> to vector<8x16xf32>
    %75 = arith.addf %72, %74 : vector<8x16xf32>
    %76 = vector.extract_strided_slice %75 {offsets = [0, 0], sizes = [8, 8], strides = [1, 1]} : vector<8x16xf32> to vector<8x8xf32>
    %77 = vector.extract_strided_slice %75 {offsets = [0, 8], sizes = [8, 8], strides = [1, 1]} : vector<8x16xf32> to vector<8x8xf32>
    %cst_54 = arith.constant 5.000000e-01 : f32
    %78 = vector.broadcast %cst_54 : f32 to vector<8x8xf32>
    %79 = arith.mulf %78, %77 : vector<8x8xf32>
    %80 = math.exp %79 : vector<8x8xf32>
    %c0_55 = arith.constant 0 : index
    %c0_56 = arith.constant 0 : index
    %81 = vector.load %arg2[%c0_55, %c0_56] : memref<8x8xf32, #tpu.memory_space<vmem>>, vector<8x8xf32>
    %82 = arith.mulf %80, %81 : vector<8x8xf32>
    %83 = arith.addf %76, %82 : vector<8x8xf32>
    %c0_57 = arith.constant 0 : index
    %c0_58 = arith.constant 0 : index
    %84 = vector.load %arg19[%c0_57, %c0_58] : memref<8x64xf32, #tpu.memory_space<vmem>>, vector<8x64xf32>
    %cst_59 = arith.constant dense<0.000000e+00> : vector<8x64xf32>
    %85 = tpu.matmul %83, %84, %cst_59 {dimension_numbers = #tpu.dot_dimension_numbers<[1], [0], [0], [1], [0, 0, 1, 1], [], []>} : vector<8x8xf32>, vector<8x64xf32>, vector<8x64xf32> -> vector<8x64xf32>
    %c0_60 = arith.constant 0 : index
    %c0_61 = arith.constant 0 : index
    %86 = vector.load %arg20[%c0_60, %c0_61] : memref<1x64xf32, #tpu.memory_space<vmem>>, vector<1x64xf32>
    %87 = vector.broadcast %86 : vector<1x64xf32> to vector<8x64xf32>
    %88 = arith.addf %85, %87 : vector<8x64xf32>
    %cst_62 = arith.constant 0.000000e+00 : f32
    %89 = vector.broadcast %cst_62 : f32 to vector<8x64xf32>
    %90 = arith.cmpf ogt, %88, %89 : vector<8x64xf32>
    %cst_63 = arith.constant 0.00999999977 : f32
    %91 = vector.broadcast %cst_63 : f32 to vector<8x64xf32>
    %92 = arith.mulf %91, %88 : vector<8x64xf32>
    %93 = arith.select %90, %88, %92 : vector<8x64xi1>, vector<8x64xf32>
    %c0_64 = arith.constant 0 : index
    %c0_65 = arith.constant 0 : index
    %94 = vector.load %arg21[%c0_64, %c0_65] : memref<64x128xf32, #tpu.memory_space<vmem>>, vector<64x128xf32>
    %cst_66 = arith.constant dense<0.000000e+00> : vector<8x128xf32>
    %95 = tpu.matmul %93, %94, %cst_66 {dimension_numbers = #tpu.dot_dimension_numbers<[1], [0], [0], [1], [0, 0, 1, 1], [], []>} : vector<8x64xf32>, vector<64x128xf32>, vector<8x128xf32> -> vector<8x128xf32>
    %c0_67 = arith.constant 0 : index
    %c0_68 = arith.constant 0 : index
    %96 = vector.load %arg22[%c0_67, %c0_68] : memref<1x128xf32, #tpu.memory_space<vmem>>, vector<1x128xf32>
    %97 = vector.broadcast %96 : vector<1x128xf32> to vector<8x128xf32>
    %98 = arith.addf %95, %97 : vector<8x128xf32>
    %cst_69 = arith.constant 0.000000e+00 : f32
    %99 = vector.broadcast %cst_69 : f32 to vector<8x128xf32>
    %100 = arith.cmpf ogt, %98, %99 : vector<8x128xf32>
    %cst_70 = arith.constant 0.00999999977 : f32
    %101 = vector.broadcast %cst_70 : f32 to vector<8x128xf32>
    %102 = arith.mulf %101, %98 : vector<8x128xf32>
    %103 = arith.select %100, %98, %102 : vector<8x128xi1>, vector<8x128xf32>
    %c0_71 = arith.constant 0 : index
    %c0_72 = arith.constant 0 : index
    %104 = vector.load %arg23[%c0_71, %c0_72] : memref<128x160xf32, #tpu.memory_space<vmem>>, vector<128x160xf32>
    %cst_73 = arith.constant dense<0.000000e+00> : vector<8x160xf32>
    %105 = tpu.matmul %103, %104, %cst_73 {dimension_numbers = #tpu.dot_dimension_numbers<[1], [0], [0], [1], [0, 0, 1, 1], [], []>} : vector<8x128xf32>, vector<128x160xf32>, vector<8x160xf32> -> vector<8x160xf32>
    %c0_74 = arith.constant 0 : index
    %c0_75 = arith.constant 0 : index
    %106 = vector.load %arg24[%c0_74, %c0_75] : memref<1x160xf32, #tpu.memory_space<vmem>>, vector<1x160xf32>
    %107 = vector.broadcast %106 : vector<1x160xf32> to vector<8x160xf32>
    %108 = arith.addf %105, %107 : vector<8x160xf32>
    %cst_76 = arith.constant 0.000000e+00 : f32
    %109 = vector.broadcast %cst_76 : f32 to vector<8x160xf32>
    %110 = arith.cmpf ogt, %108, %109 : vector<8x160xf32>
    %cst_77 = arith.constant 0.00999999977 : f32
    %111 = vector.broadcast %cst_77 : f32 to vector<8x160xf32>
    %112 = arith.mulf %111, %108 : vector<8x160xf32>
    %113 = arith.select %110, %108, %112 : vector<8x160xi1>, vector<8x160xf32>
    %c0_78 = arith.constant 0 : index
    %c0_79 = arith.constant 0 : index
    %114 = vector.load %arg25[%c0_78, %c0_79] : memref<160x192xf32, #tpu.memory_space<vmem>>, vector<160x192xf32>
    %cst_80 = arith.constant dense<0.000000e+00> : vector<8x192xf32>
    %115 = tpu.matmul %113, %114, %cst_80 {dimension_numbers = #tpu.dot_dimension_numbers<[1], [0], [0], [1], [0, 0, 1, 1], [], []>} : vector<8x160xf32>, vector<160x192xf32>, vector<8x192xf32> -> vector<8x192xf32>
    %c0_81 = arith.constant 0 : index
    %c0_82 = arith.constant 0 : index
    %116 = vector.load %arg26[%c0_81, %c0_82] : memref<1x192xf32, #tpu.memory_space<vmem>>, vector<1x192xf32>
    %117 = vector.broadcast %116 : vector<1x192xf32> to vector<8x192xf32>
    %118 = arith.addf %115, %117 : vector<8x192xf32>
    %cst_83 = arith.constant 0.000000e+00 : f32
    %119 = vector.broadcast %cst_83 : f32 to vector<8x192xf32>
    %120 = arith.cmpf ogt, %118, %119 : vector<8x192xf32>
    %cst_84 = arith.constant 0.00999999977 : f32
    %121 = vector.broadcast %cst_84 : f32 to vector<8x192xf32>
    %122 = arith.mulf %121, %118 : vector<8x192xf32>
    %123 = arith.select %120, %118, %122 : vector<8x192xi1>, vector<8x192xf32>
    %c0_85 = arith.constant 0 : index
    %c0_86 = arith.constant 0 : index
    %124 = vector.load %arg27[%c0_85, %c0_86] : memref<192x224xf32, #tpu.memory_space<vmem>>, vector<192x224xf32>
    %cst_87 = arith.constant dense<0.000000e+00> : vector<8x224xf32>
    %125 = tpu.matmul %123, %124, %cst_87 {dimension_numbers = #tpu.dot_dimension_numbers<[1], [0], [0], [1], [0, 0, 1, 1], [], []>} : vector<8x192xf32>, vector<192x224xf32>, vector<8x224xf32> -> vector<8x224xf32>
    %c0_88 = arith.constant 0 : index
    %c0_89 = arith.constant 0 : index
    %126 = vector.load %arg28[%c0_88, %c0_89] : memref<1x224xf32, #tpu.memory_space<vmem>>, vector<1x224xf32>
    %127 = vector.broadcast %126 : vector<1x224xf32> to vector<8x224xf32>
    %128 = arith.addf %125, %127 : vector<8x224xf32>
    %cst_90 = arith.constant 0.000000e+00 : f32
    %129 = vector.broadcast %cst_90 : f32 to vector<8x224xf32>
    %130 = arith.cmpf ogt, %128, %129 : vector<8x224xf32>
    %cst_91 = arith.constant 0.00999999977 : f32
    %131 = vector.broadcast %cst_91 : f32 to vector<8x224xf32>
    %132 = arith.mulf %131, %128 : vector<8x224xf32>
    %133 = arith.select %130, %128, %132 : vector<8x224xi1>, vector<8x224xf32>
    %c0_92 = arith.constant 0 : index
    %c0_93 = arith.constant 0 : index
    %134 = vector.load %arg29[%c0_92, %c0_93] : memref<224x256xf32, #tpu.memory_space<vmem>>, vector<224x256xf32>
    %cst_94 = arith.constant dense<0.000000e+00> : vector<8x256xf32>
    %135 = tpu.matmul %133, %134, %cst_94 {dimension_numbers = #tpu.dot_dimension_numbers<[1], [0], [0], [1], [0, 0, 1, 1], [], []>} : vector<8x224xf32>, vector<224x256xf32>, vector<8x256xf32> -> vector<8x256xf32>
    %c0_95 = arith.constant 0 : index
    %c0_96 = arith.constant 0 : index
    %136 = vector.load %arg30[%c0_95, %c0_96] : memref<1x256xf32, #tpu.memory_space<vmem>>, vector<1x256xf32>
    %137 = vector.broadcast %136 : vector<1x256xf32> to vector<8x256xf32>
    %138 = arith.addf %135, %137 : vector<8x256xf32>
    %cst_97 = arith.constant 0.000000e+00 : f32
    %139 = vector.broadcast %cst_97 : f32 to vector<8x256xf32>
    %140 = arith.cmpf ogt, %138, %139 : vector<8x256xf32>
    %cst_98 = arith.constant 0.00999999977 : f32
    %141 = vector.broadcast %cst_98 : f32 to vector<8x256xf32>
    %142 = arith.mulf %141, %138 : vector<8x256xf32>
    %143 = arith.select %140, %138, %142 : vector<8x256xi1>, vector<8x256xf32>
    %c0_99 = arith.constant 0 : index
    %c0_100 = arith.constant 0 : index
    %144 = vector.load %arg31[%c0_99, %c0_100] : memref<256x288xf32, #tpu.memory_space<vmem>>, vector<256x288xf32>
    %cst_101 = arith.constant dense<0.000000e+00> : vector<8x288xf32>
    %145 = tpu.matmul %143, %144, %cst_101 {dimension_numbers = #tpu.dot_dimension_numbers<[1], [0], [0], [1], [0, 0, 1, 1], [], []>} : vector<8x256xf32>, vector<256x288xf32>, vector<8x288xf32> -> vector<8x288xf32>
    %c0_102 = arith.constant 0 : index
    %c0_103 = arith.constant 0 : index
    %146 = vector.load %arg32[%c0_102, %c0_103] : memref<1x288xf32, #tpu.memory_space<vmem>>, vector<1x288xf32>
    %147 = vector.broadcast %146 : vector<1x288xf32> to vector<8x288xf32>
    %148 = arith.addf %145, %147 : vector<8x288xf32>
    %cst_104 = arith.constant 0.000000e+00 : f32
    %149 = vector.broadcast %cst_104 : f32 to vector<8x288xf32>
    %150 = arith.cmpf ogt, %148, %149 : vector<8x288xf32>
    %cst_105 = arith.constant 0.00999999977 : f32
    %151 = vector.broadcast %cst_105 : f32 to vector<8x288xf32>
    %152 = arith.mulf %151, %148 : vector<8x288xf32>
    %153 = arith.select %150, %148, %152 : vector<8x288xi1>, vector<8x288xf32>
    %c0_106 = arith.constant 0 : index
    %c0_107 = arith.constant 0 : index
    %154 = vector.load %arg33[%c0_106, %c0_107] : memref<288x80xf32, #tpu.memory_space<vmem>>, vector<288x80xf32>
    %cst_108 = arith.constant dense<0.000000e+00> : vector<8x80xf32>
    %155 = tpu.matmul %153, %154, %cst_108 {dimension_numbers = #tpu.dot_dimension_numbers<[1], [0], [0], [1], [0, 0, 1, 1], [], []>} : vector<8x288xf32>, vector<288x80xf32>, vector<8x80xf32> -> vector<8x80xf32>
    %c0_109 = arith.constant 0 : index
    %c0_110 = arith.constant 0 : index
    %156 = vector.load %arg34[%c0_109, %c0_110] : memref<1x80xf32, #tpu.memory_space<vmem>>, vector<1x80xf32>
    %157 = vector.broadcast %156 : vector<1x80xf32> to vector<8x80xf32>
    %158 = arith.addf %155, %157 : vector<8x80xf32>
    %c0_111 = arith.constant 0 : index
    %c0_112 = arith.constant 0 : index
    %159 = vector.load %arg35[%c0_111, %c0_112] : memref<8x104xf32, #tpu.memory_space<vmem>>, vector<8x80xf32>
    tpu.vector_store %arg35[%c0_111, %c0_112], %158 {strides = array<i32>} : memref<8x104xf32, #tpu.memory_space<vmem>>, vector<8x80xf32>,
    %c0_113 = arith.constant 0 : index
    %c80 = arith.constant 80 : index
    %160 = vector.load %arg35[%c0_113, %c80] : memref<8x104xf32, #tpu.memory_space<vmem>>, vector<8x8xf32>
    tpu.vector_store %arg35[%c0_113, %c80], %83 {strides = array<i32>} : memref<8x104xf32, #tpu.memory_space<vmem>>, vector<8x8xf32>,
    %c0_114 = arith.constant 0 : index
    %c88 = arith.constant 88 : index
    %161 = vector.load %arg35[%c0_114, %c88] : memref<8x104xf32, #tpu.memory_space<vmem>>, vector<8x16xf32>
    tpu.vector_store %arg35[%c0_114, %c88], %75 {strides = array<i32>} : memref<8x104xf32, #tpu.memory_space<vmem>>, vector<8x16xf32>,
    return
  }
  func.func @transform_0(%arg0: i32) -> (i32, i32) {
    %c0_i32 = arith.constant 0 : i32
    %c0_i32_0 = arith.constant 0 : i32
    return %arg0, %c0_i32 : i32, i32
  }
  func.func @transform_1(%arg0: i32) -> (i32, i32) {
    %c0_i32 = arith.constant 0 : i32
    %c0_i32_0 = arith.constant 0 : i32
    return %arg0, %c0_i32 : i32, i32
  }
  func.func @transform_2(%arg0: i32) -> (i32, i32) {
    %c0_i32 = arith.constant 0 : i32
    %c0_i32_0 = arith.constant 0 : i32
    %c0_i32_1 = arith.constant 0 : i32
    return %c0_i32, %c0_i32_0 : i32, i32
  }
  func.func @transform_3(%arg0: i32) -> (i32, i32) {
    %c0_i32 = arith.constant 0 : i32
    %c0_i32_0 = arith.constant 0 : i32
    %c0_i32_1 = arith.constant 0 : i32
    return %c0_i32, %c0_i32_0 : i32, i32
  }
  func.func @transform_4(%arg0: i32) -> (i32, i32) {
    %c0_i32 = arith.constant 0 : i32
    %c0_i32_0 = arith.constant 0 : i32
    %c0_i32_1 = arith.constant 0 : i32
    return %c0_i32, %c0_i32_0 : i32, i32
  }
  func.func @transform_5(%arg0: i32) -> (i32, i32) {
    %c0_i32 = arith.constant 0 : i32
    %c0_i32_0 = arith.constant 0 : i32
    %c0_i32_1 = arith.constant 0 : i32
    return %c0_i32, %c0_i32_0 : i32, i32
  }
  func.func @transform_6(%arg0: i32) -> (i32, i32) {
    %c0_i32 = arith.constant 0 : i32
    %c0_i32_0 = arith.constant 0 : i32
    %c0_i32_1 = arith.constant 0 : i32
    return %c0_i32, %c0_i32_0 : i32, i32
  }
  func.func @transform_7(%arg0: i32) -> (i32, i32) {
    %c0_i32 = arith.constant 0 : i32
    %c0_i32_0 = arith.constant 0 : i32
    %c0_i32_1 = arith.constant 0 : i32
    return %c0_i32, %c0_i32_0 : i32, i32
  }
  func.func @transform_8(%arg0: i32) -> (i32, i32) {
    %c0_i32 = arith.constant 0 : i32
    %c0_i32_0 = arith.constant 0 : i32
    %c0_i32_1 = arith.constant 0 : i32
    return %c0_i32, %c0_i32_0 : i32, i32
  }
  func.func @transform_9(%arg0: i32) -> (i32, i32) {
    %c0_i32 = arith.constant 0 : i32
    %c0_i32_0 = arith.constant 0 : i32
    %c0_i32_1 = arith.constant 0 : i32
    return %c0_i32, %c0_i32_0 : i32, i32
  }
  func.func @transform_10(%arg0: i32) -> (i32, i32) {
    %c0_i32 = arith.constant 0 : i32
    %c0_i32_0 = arith.constant 0 : i32
    %c0_i32_1 = arith.constant 0 : i32
    return %c0_i32, %c0_i32_0 : i32, i32
  }
  func.func @transform_11(%arg0: i32) -> (i32, i32) {
    %c0_i32 = arith.constant 0 : i32
    %c0_i32_0 = arith.constant 0 : i32
    %c0_i32_1 = arith.constant 0 : i32
    return %c0_i32, %c0_i32_0 : i32, i32
  }
  func.func @transform_12(%arg0: i32) -> (i32, i32) {
    %c0_i32 = arith.constant 0 : i32
    %c0_i32_0 = arith.constant 0 : i32
    %c0_i32_1 = arith.constant 0 : i32
    return %c0_i32, %c0_i32_0 : i32, i32
  }
  func.func @transform_13(%arg0: i32) -> (i32, i32) {
    %c0_i32 = arith.constant 0 : i32
    %c0_i32_0 = arith.constant 0 : i32
    %c0_i32_1 = arith.constant 0 : i32
    return %c0_i32, %c0_i32_0 : i32, i32
  }
  func.func @transform_14(%arg0: i32) -> (i32, i32) {
    %c0_i32 = arith.constant 0 : i32
    %c0_i32_0 = arith.constant 0 : i32
    %c0_i32_1 = arith.constant 0 : i32
    return %c0_i32, %c0_i32_0 : i32, i32
  }
  func.func @transform_15(%arg0: i32) -> (i32, i32) {
    %c0_i32 = arith.constant 0 : i32
    %c0_i32_0 = arith.constant 0 : i32
    %c0_i32_1 = arith.constant 0 : i32
    return %c0_i32, %c0_i32_0 : i32, i32
  }
  func.func @transform_16(%arg0: i32) -> (i32, i32) {
    %c0_i32 = arith.constant 0 : i32
    %c0_i32_0 = arith.constant 0 : i32
    %c0_i32_1 = arith.constant 0 : i32
    return %c0_i32, %c0_i32_0 : i32, i32
  }
  func.func @transform_17(%arg0: i32) -> (i32, i32) {
    %c0_i32 = arith.constant 0 : i32
    %c0_i32_0 = arith.constant 0 : i32
    %c0_i32_1 = arith.constant 0 : i32
    return %c0_i32, %c0_i32_0 : i32, i32
  }
  func.func @transform_18(%arg0: i32) -> (i32, i32) {
    %c0_i32 = arith.constant 0 : i32
    %c0_i32_0 = arith.constant 0 : i32
    %c0_i32_1 = arith.constant 0 : i32
    return %c0_i32, %c0_i32_0 : i32, i32
  }
  func.func @transform_19(%arg0: i32) -> (i32, i32) {
    %c0_i32 = arith.constant 0 : i32
    %c0_i32_0 = arith.constant 0 : i32
    %c0_i32_1 = arith.constant 0 : i32
    return %c0_i32, %c0_i32_0 : i32, i32
  }
  func.func @transform_20(%arg0: i32) -> (i32, i32) {
    %c0_i32 = arith.constant 0 : i32
    %c0_i32_0 = arith.constant 0 : i32
    %c0_i32_1 = arith.constant 0 : i32
    return %c0_i32, %c0_i32_0 : i32, i32
  }
  func.func @transform_21(%arg0: i32) -> (i32, i32) {
    %c0_i32 = arith.constant 0 : i32
    %c0_i32_0 = arith.constant 0 : i32
    %c0_i32_1 = arith.constant 0 : i32
    return %c0_i32, %c0_i32_0 : i32, i32
  }
  func.func @transform_22(%arg0: i32) -> (i32, i32) {
    %c0_i32 = arith.constant 0 : i32
    %c0_i32_0 = arith.constant 0 : i32
    %c0_i32_1 = arith.constant 0 : i32
    return %c0_i32, %c0_i32_0 : i32, i32
  }
  func.func @transform_23(%arg0: i32) -> (i32, i32) {
    %c0_i32 = arith.constant 0 : i32
    %c0_i32_0 = arith.constant 0 : i32
    %c0_i32_1 = arith.constant 0 : i32
    return %c0_i32, %c0_i32_0 : i32, i32
  }
  func.func @transform_24(%arg0: i32) -> (i32, i32) {
    %c0_i32 = arith.constant 0 : i32
    %c0_i32_0 = arith.constant 0 : i32
    %c0_i32_1 = arith.constant 0 : i32
    return %c0_i32, %c0_i32_0 : i32, i32
  }
  func.func @transform_25(%arg0: i32) -> (i32, i32) {
    %c0_i32 = arith.constant 0 : i32
    %c0_i32_0 = arith.constant 0 : i32
    %c0_i32_1 = arith.constant 0 : i32
    return %c0_i32, %c0_i32_0 : i32, i32
  }
  func.func @transform_26(%arg0: i32) -> (i32, i32) {
    %c0_i32 = arith.constant 0 : i32
    %c0_i32_0 = arith.constant 0 : i32
    %c0_i32_1 = arith.constant 0 : i32
    return %c0_i32, %c0_i32_0 : i32, i32
  }
  func.func @transform_27(%arg0: i32) -> (i32, i32) {
    %c0_i32 = arith.constant 0 : i32
    %c0_i32_0 = arith.constant 0 : i32
    %c0_i32_1 = arith.constant 0 : i32
    return %c0_i32, %c0_i32_0 : i32, i32
  }
  func.func @transform_28(%arg0: i32) -> (i32, i32) {
    %c0_i32 = arith.constant 0 : i32
    %c0_i32_0 = arith.constant 0 : i32
    %c0_i32_1 = arith.constant 0 : i32
    return %c0_i32, %c0_i32_0 : i32, i32
  }
  func.func @transform_29(%arg0: i32) -> (i32, i32) {
    %c0_i32 = arith.constant 0 : i32
    %c0_i32_0 = arith.constant 0 : i32
    %c0_i32_1 = arith.constant 0 : i32
    return %c0_i32, %c0_i32_0 : i32, i32
  }
  func.func @transform_30(%arg0: i32) -> (i32, i32) {
    %c0_i32 = arith.constant 0 : i32
    %c0_i32_0 = arith.constant 0 : i32
    %c0_i32_1 = arith.constant 0 : i32
    return %c0_i32, %c0_i32_0 : i32, i32
  }
  func.func @transform_31(%arg0: i32) -> (i32, i32) {
    %c0_i32 = arith.constant 0 : i32
    %c0_i32_0 = arith.constant 0 : i32
    %c0_i32_1 = arith.constant 0 : i32
    return %c0_i32, %c0_i32_0 : i32, i32
  }
  func.func @transform_32(%arg0: i32) -> (i32, i32) {
    %c0_i32 = arith.constant 0 : i32
    %c0_i32_0 = arith.constant 0 : i32
    %c0_i32_1 = arith.constant 0 : i32
    return %c0_i32, %c0_i32_0 : i32, i32
  }
  func.func @transform_33(%arg0: i32) -> (i32, i32) {
    %c0_i32 = arith.constant 0 : i32
    %c0_i32_0 = arith.constant 0 : i32
    %c0_i32_1 = arith.constant 0 : i32
    return %c0_i32, %c0_i32_0 : i32, i32
  }
  func.func @transform_34(%arg0: i32) -> (i32, i32) {
    %c0_i32 = arith.constant 0 : i32
    %c0_i32_0 = arith.constant 0 : i32
    return %arg0, %c0_i32 : i32, i32
  }
}

</mosaic_0001>

<llo_original>
// kernel: vae_forward.1
$region0: #{vae_forward.1}
  #allocation0 [shape = 'u32[]', space=smem, size = 0x4, offset = 0x4, fixed_abs, tag = 'smem constant byte address 0x4 - core index']
  #allocation1 [shape = 'u32[144,128]{1,0:T(1,128)}', space=vmem, size = 0x12000, scoped, tag = 'internal scratch']
  %s0 = inlined_call_operand.smem [shape: u32[35], index: -1, kind: input, shape index: {}]
  %s1 = sld [smem:[%s0]]
  %s2 = scalar_lea.smem %s0, 1
  %s3 = sld [smem:[%s2]]
  %s4 = scalar_lea.smem %s0, 2
  %s5 = sld [smem:[%s4]]
  %s6 = scalar_lea.smem %s0, 3
  %s7 = sld [smem:[%s6]]
  %s8 = scalar_lea.smem %s0, 4
  %s9 = sld [smem:[%s8]]
  %s10 = scalar_lea.smem %s0, 5
  %s11 = sld [smem:[%s10]]
  %s12 = scalar_lea.smem %s0, 6
  %s13 = sld [smem:[%s12]]
  %s14 = scalar_lea.smem %s0, 7
  %s15 = sld [smem:[%s14]]
  %s16 = scalar_lea.smem %s0, 8
  %s17 = sld [smem:[%s16]]
  %s18 = scalar_lea.smem %s0, 9
  %s19 = sld [smem:[%s18]]
  %s20 = scalar_lea.smem %s0, 10
  %s21 = sld [smem:[%s20]]
  %s22 = scalar_lea.smem %s0, 11
  %s23 = sld [smem:[%s22]]
  %s24 = scalar_lea.smem %s0, 12
  %s25 = sld [smem:[%s24]]
  %s26 = scalar_lea.smem %s0, 13
  %s27 = sld [smem:[%s26]]
  %s28 = scalar_lea.smem %s0, 14
  %s29 = sld [smem:[%s28]]
  %s30 = scalar_lea.smem %s0, 15
  %s31 = sld [smem:[%s30]]
  %s32 = scalar_lea.smem %s0, 16
  %s33 = sld [smem:[%s32]]
  %s34 = scalar_lea.smem %s0, 17
  %s35 = sld [smem:[%s34]]
  %s36 = scalar_lea.smem %s0, 18
  %s37 = sld [smem:[%s36]]
  %s38 = scalar_lea.smem %s0, 19
  %s39 = sld [smem:[%s38]]
  %s40 = scalar_lea.smem %s0, 20
  %s41 = sld [smem:[%s40]]
  %s42 = scalar_lea.smem %s0, 21
  %s43 = sld [smem:[%s42]]
  %s44 = scalar_lea.smem %s0, 22
  %s45 = sld [smem:[%s44]]
  %s46 = scalar_lea.smem %s0, 23
  %s47 = sld [smem:[%s46]]
  %s48 = scalar_lea.smem %s0, 24
  %s49 = sld [smem:[%s48]]
  %s50 = scalar_lea.smem %s0, 25
  %s51 = sld [smem:[%s50]]
  %s52 = scalar_lea.smem %s0, 26
  %s53 = sld [smem:[%s52]]
  %s54 = scalar_lea.smem %s0, 27
  %s55 = sld [smem:[%s54]]
  %s56 = scalar_lea.smem %s0, 28
  %s57 = sld [smem:[%s56]]
  %s58 = scalar_lea.smem %s0, 29
  %s59 = sld [smem:[%s58]]
  %s60 = scalar_lea.smem %s0, 30
  %s61 = sld [smem:[%s60]]
  %s62 = scalar_lea.smem %s0, 31
  %s63 = sld [smem:[%s62]]
  %s64 = scalar_lea.smem %s0, 32
  %s65 = sld [smem:[%s64]]
  %s66 = scalar_lea.smem %s0, 33
  %s67 = sld [smem:[%s66]]
  %s68 = scalar_lea.smem %s0, 34
  %s69 = sld [smem:[%s68]]
  %s70 = sld [smem:[#allocation0]]
  $region169: #{vae_forward.1} parent=0
    _
  %s72 = ssub.s32 1, %s70
  %s73 = scalar_select 0, %s72, %s70
  loop: start=0, step=1, limit=4
  $region2: #{vae_forward.1} parent=0 // loop_pre_header
    _
  $region3: #{vae_forward.1} parent=0 // loop_header
    %s75 = sphi 0, %s79
    %p76 = scmp.ge.s32.totalorder %s75, 4
    %s85 = sphi 0, %s87
    %s88 = sphi 0, %s85
    %s89 = sphi 0, %s88
    %s105 = sphi 0, %s89
    %s111 = sphi 0, %s113
    %s114 = sphi 0, %s111
    %s115 = sphi 0, %s114
    %s131 = sphi 0, %s115
    %s135 = sphi 0, %s135
    %s137 = sphi 0, %s135
    %s138 = sphi 0, %s137
    %s152 = sphi 0, %s138
    %s156 = sphi 0, %s156
    %s158 = sphi 0, %s156
    %s159 = sphi 0, %s158
    %s173 = sphi 0, %s159
    %s177 = sphi 0, %s177
    %s179 = sphi 0, %s177
    %s180 = sphi 0, %s179
    %s194 = sphi 0, %s180
    %s198 = sphi 0, %s198
    %s200 = sphi 0, %s198
    %s201 = sphi 0, %s200
    %s215 = sphi 0, %s201
    %s219 = sphi 0, %s219
    %s221 = sphi 0, %s219
    %s222 = sphi 0, %s221
    %s236 = sphi 0, %s222
    %s240 = sphi 0, %s240
    %s242 = sphi 0, %s240
    %s243 = sphi 0, %s242
    %s257 = sphi 0, %s243
    %s261 = sphi 0, %s261
    %s263 = sphi 0, %s261
    %s264 = sphi 0, %s263
    %s278 = sphi 0, %s264
    %s282 = sphi 0, %s282
    %s284 = sphi 0, %s282
    %s285 = sphi 0, %s284
    %s299 = sphi 0, %s285
    %s303 = sphi 0, %s303
    %s305 = sphi 0, %s303
    %s306 = sphi 0, %s305
    %s320 = sphi 0, %s306
    %s324 = sphi 0, %s324
    %s326 = sphi 0, %s324
    %s327 = sphi 0, %s326
    %s341 = sphi 0, %s327
    %s345 = sphi 0, %s345
    %s347 = sphi 0, %s345
    %s348 = sphi 0, %s347
    %s362 = sphi 0, %s348
    %s366 = sphi 0, %s366
    %s368 = sphi 0, %s366
    %s369 = sphi 0, %s368
    %s383 = sphi 0, %s369
    %s387 = sphi 0, %s387
    %s389 = sphi 0, %s387
    %s390 = sphi 0, %s389
    %s404 = sphi 0, %s390
    %s408 = sphi 0, %s408
    %s410 = sphi 0, %s408
    %s411 = sphi 0, %s410
    %s425 = sphi 0, %s411
    %s429 = sphi 0, %s429
    %s431 = sphi 0, %s429
    %s432 = sphi 0, %s431
    %s446 = sphi 0, %s432
    %s450 = sphi 0, %s450
    %s452 = sphi 0, %s450
    %s453 = sphi 0, %s452
    %s467 = sphi 0, %s453
    %s471 = sphi 0, %s471
    %s473 = sphi 0, %s471
    %s474 = sphi 0, %s473
    %s488 = sphi 0, %s474
    %s492 = sphi 0, %s492
    %s494 = sphi 0, %s492
    %s495 = sphi 0, %s494
    %s509 = sphi 0, %s495
    %s513 = sphi 0, %s513
    %s515 = sphi 0, %s513
    %s516 = sphi 0, %s515
    %s530 = sphi 0, %s516
    %s534 = sphi 0, %s534
    %s536 = sphi 0, %s534
    %s537 = sphi 0, %s536
    %s551 = sphi 0, %s537
    %s555 = sphi 0, %s555
    %s557 = sphi 0, %s555
    %s558 = sphi 0, %s557
    %s572 = sphi 0, %s558
    %s576 = sphi 0, %s576
    %s578 = sphi 0, %s576
    %s579 = sphi 0, %s578
    %s593 = sphi 0, %s579
    %s597 = sphi 0, %s597
    %s599 = sphi 0, %s597
    %s600 = sphi 0, %s599
    %s614 = sphi 0, %s600
    %s618 = sphi 0, %s618
    %s620 = sphi 0, %s618
    %s621 = sphi 0, %s620
    %s635 = sphi 0, %s621
    %s639 = sphi 0, %s639
    %s641 = sphi 0, %s639
    %s642 = sphi 0, %s641
    %s656 = sphi 0, %s642
    %s660 = sphi 0, %s660
    %s662 = sphi 0, %s660
    %s663 = sphi 0, %s662
    %s677 = sphi 0, %s663
    %s681 = sphi 0, %s681
    %s683 = sphi 0, %s681
    %s684 = sphi 0, %s683
    %s698 = sphi 0, %s684
    %s702 = sphi 0, %s702
    %s704 = sphi 0, %s702
    %s705 = sphi 0, %s704
    %s719 = sphi 0, %s705
    %s723 = sphi 0, %s723
    %s725 = sphi 0, %s723
    %s726 = sphi 0, %s725
    %s740 = sphi 0, %s726
    %s744 = sphi 0, %s744
    %s746 = sphi 0, %s744
    %s747 = sphi 0, %s746
    %s761 = sphi 0, %s747
    %s765 = sphi 0, %s765
    %s767 = sphi 0, %s765
    %s768 = sphi 0, %s767
    %s782 = sphi 0, %s768
    %s786 = sphi 0, %s786
    %s788 = sphi 0, %s786
    %s789 = sphi 0, %s788
    %s803 = sphi 0, %s789
    %s809 = sphi 0, %s811
    %s812 = sphi 0, %s809
    %s813 = sphi 0, %s812
    %s829 = sphi 0, %s813
  $region4: #{vae_forward.1} parent=0 // loop_header_branch
    %78 = sbr.rel (%p76) target = $region8
  $region5: #{vae_forward.1} parent=0 // loop_body
    %s80 = ssub.s32 %s75, 1
    %s81 = ssub.s32 %s75, 2
    %s82 = sadd.s32 %s75, 1
    %s83 = ssub.s32 %s75, %s82
    %p84 = scmp.eq.s32.totalorder %s83, 0
    %s86 = sadd.s32 %s85, 1
    %s87 = scalar_select %p84, %s85, %s86
    %p90 = pneg %p84
    %p91 = scmp.eq.s32.totalorder %s75, 1
    %p92 = por %p90, %p91
    %p93 = scmp.ne.s32.totalorder %s85, %s88
    %p94 = scmp.eq.s32.totalorder %s75, 0
    %p95 = por %p93, %p94
    %p96 = scmp.ne.s32.totalorder %s85, %s88
    %p97 = scmp.eq.s32.totalorder %s80, 1
    %p98 = por %p96, %p97
    %p99 = scmp.ne.s32.totalorder %s88, %s89
    %p100 = scmp.eq.s32.totalorder %s80, 0
    %p101 = por %p99, %p100
    %p102 = scmp.ne.s32.totalorder %s88, %s89
    %p103 = scmp.eq.s32.totalorder %s81, 1
    %p104 = por %p102, %p103
    %p106 = scmp.ne.s32.totalorder %s89, %s105
    %p107 = scmp.eq.s32.totalorder %s81, 0
    %p108 = por %p106, %p107
    %s109 = ssub.s32 %s75, %s82
    %p110 = scmp.eq.s32.totalorder %s109, 0
    %s112 = sadd.s32 %s111, 1
    %s113 = scalar_select %p110, %s111, %s112
    %p116 = pneg %p110
    %p117 = scmp.eq.s32.totalorder %s75, 1
    %p118 = por %p116, %p117
    %p119 = scmp.ne.s32.totalorder %s111, %s114
    %p120 = scmp.eq.s32.totalorder %s75, 0
    %p121 = por %p119, %p120
    %p122 = scmp.ne.s32.totalorder %s111, %s114
    %p123 = scmp.eq.s32.totalorder %s80, 1
    %p124 = por %p122, %p123
    %p125 = scmp.ne.s32.totalorder %s114, %s115
    %p126 = scmp.eq.s32.totalorder %s80, 0
    %p127 = por %p125, %p126
    %p128 = scmp.ne.s32.totalorder %s114, %s115
    %p129 = scmp.eq.s32.totalorder %s81, 1
    %p130 = por %p128, %p129
    %p132 = scmp.ne.s32.totalorder %s115, %s131
    %p133 = scmp.eq.s32.totalorder %s81, 0
    %p134 = por %p132, %p133
    %s136 = sadd.s32 %s135, 1
    %p139 = scmp.eq.s32.totalorder %s75, 1
    %p140 = scmp.ne.s32.totalorder %s135, %s137
    %p141 = scmp.eq.s32.totalorder %s75, 0
    %p142 = por %p140, %p141
    %p143 = scmp.ne.s32.totalorder %s135, %s137
    %p144 = scmp.eq.s32.totalorder %s80, 1
    %p145 = por %p143, %p144
    %p146 = scmp.ne.s32.totalorder %s137, %s138
    %p147 = scmp.eq.s32.totalorder %s80, 0
    %p148 = por %p146, %p147
    %p149 = scmp.ne.s32.totalorder %s137, %s138
    %p150 = scmp.eq.s32.totalorder %s81, 1
    %p151 = por %p149, %p150
    %p153 = scmp.ne.s32.totalorder %s138, %s152
    %p154 = scmp.eq.s32.totalorder %s81, 0
    %p155 = por %p153, %p154
    %s157 = sadd.s32 %s156, 1
    %p160 = scmp.eq.s32.totalorder %s75, 1
    %p161 = scmp.ne.s32.totalorder %s156, %s158
    %p162 = scmp.eq.s32.totalorder %s75, 0
    %p163 = por %p161, %p162
    %p164 = scmp.ne.s32.totalorder %s156, %s158
    %p165 = scmp.eq.s32.totalorder %s80, 1
    %p166 = por %p164, %p165
    %p167 = scmp.ne.s32.totalorder %s158, %s159
    %p168 = scmp.eq.s32.totalorder %s80, 0
    %p169 = por %p167, %p168
    %p170 = scmp.ne.s32.totalorder %s158, %s159
    %p171 = scmp.eq.s32.totalorder %s81, 1
    %p172 = por %p170, %p171
    %p174 = scmp.ne.s32.totalorder %s159, %s173
    %p175 = scmp.eq.s32.totalorder %s81, 0
    %p176 = por %p174, %p175
    %s178 = sadd.s32 %s177, 1
    %p181 = scmp.eq.s32.totalorder %s75, 1
    %p182 = scmp.ne.s32.totalorder %s177, %s179
    %p183 = scmp.eq.s32.totalorder %s75, 0
    %p184 = por %p182, %p183
    %p185 = scmp.ne.s32.totalorder %s177, %s179
    %p186 = scmp.eq.s32.totalorder %s80, 1
    %p187 = por %p185, %p186
    %p188 = scmp.ne.s32.totalorder %s179, %s180
    %p189 = scmp.eq.s32.totalorder %s80, 0
    %p190 = por %p188, %p189
    %p191 = scmp.ne.s32.totalorder %s179, %s180
    %p192 = scmp.eq.s32.totalorder %s81, 1
    %p193 = por %p191, %p192
    %p195 = scmp.ne.s32.totalorder %s180, %s194
    %p196 = scmp.eq.s32.totalorder %s81, 0
    %p197 = por %p195, %p196
    %s199 = sadd.s32 %s198, 1
    %p202 = scmp.eq.s32.totalorder %s75, 1
    %p203 = scmp.ne.s32.totalorder %s198, %s200
    %p204 = scmp.eq.s32.totalorder %s75, 0
    %p205 = por %p203, %p204
    %p206 = scmp.ne.s32.totalorder %s198, %s200
    %p207 = scmp.eq.s32.totalorder %s80, 1
    %p208 = por %p206, %p207
    %p209 = scmp.ne.s32.totalorder %s200, %s201
    %p210 = scmp.eq.s32.totalorder %s80, 0
    %p211 = por %p209, %p210
    %p212 = scmp.ne.s32.totalorder %s200, %s201
    %p213 = scmp.eq.s32.totalorder %s81, 1
    %p214 = por %p212, %p213
    %p216 = scmp.ne.s32.totalorder %s201, %s215
    %p217 = scmp.eq.s32.totalorder %s81, 0
    %p218 = por %p216, %p217
    %s220 = sadd.s32 %s219, 1
    %p223 = scmp.eq.s32.totalorder %s75, 1
    %p224 = scmp.ne.s32.totalorder %s219, %s221
    %p225 = scmp.eq.s32.totalorder %s75, 0
    %p226 = por %p224, %p225
    %p227 = scmp.ne.s32.totalorder %s219, %s221
    %p228 = scmp.eq.s32.totalorder %s80, 1
    %p229 = por %p227, %p228
    %p230 = scmp.ne.s32.totalorder %s221, %s222
    %p231 = scmp.eq.s32.totalorder %s80, 0
    %p232 = por %p230, %p231
    %p233 = scmp.ne.s32.totalorder %s221, %s222
    %p234 = scmp.eq.s32.totalorder %s81, 1
    %p235 = por %p233, %p234
    %p237 = scmp.ne.s32.totalorder %s222, %s236
    %p238 = scmp.eq.s32.totalorder %s81, 0
    %p239 = por %p237, %p238
    %s241 = sadd.s32 %s240, 1
    %p244 = scmp.eq.s32.totalorder %s75, 1
    %p245 = scmp.ne.s32.totalorder %s240, %s242
    %p246 = scmp.eq.s32.totalorder %s75, 0
    %p247 = por %p245, %p246
    %p248 = scmp.ne.s32.totalorder %s240, %s242
    %p249 = scmp.eq.s32.totalorder %s80, 1
    %p250 = por %p248, %p249
    %p251 = scmp.ne.s32.totalorder %s242, %s243
    %p252 = scmp.eq.s32.totalorder %s80, 0
    %p253 = por %p251, %p252
    %p254 = scmp.ne.s32.totalorder %s242, %s243
    %p255 = scmp.eq.s32.totalorder %s81, 1
    %p256 = por %p254, %p255
    %p258 = scmp.ne.s32.totalorder %s243, %s257
    %p259 = scmp.eq.s32.totalorder %s81, 0
    %p260 = por %p258, %p259
    %s262 = sadd.s32 %s261, 1
    %p265 = scmp.eq.s32.totalorder %s75, 1
    %p266 = scmp.ne.s32.totalorder %s261, %s263
    %p267 = scmp.eq.s32.totalorder %s75, 0
    %p268 = por %p266, %p267
    %p269 = scmp.ne.s32.totalorder %s261, %s263
    %p270 = scmp.eq.s32.totalorder %s80, 1
    %p271 = por %p269, %p270
    %p272 = scmp.ne.s32.totalorder %s263, %s264
    %p273 = scmp.eq.s32.totalorder %s80, 0
    %p274 = por %p272, %p273
    %p275 = scmp.ne.s32.totalorder %s263, %s264
    %p276 = scmp.eq.s32.totalorder %s81, 1
    %p277 = por %p275, %p276
    %p279 = scmp.ne.s32.totalorder %s264, %s278
    %p280 = scmp.eq.s32.totalorder %s81, 0
    %p281 = por %p279, %p280
    %s283 = sadd.s32 %s282, 1
    %p286 = scmp.eq.s32.totalorder %s75, 1
    %p287 = scmp.ne.s32.totalorder %s282, %s284
    %p288 = scmp.eq.s32.totalorder %s75, 0
    %p289 = por %p287, %p288
    %p290 = scmp.ne.s32.totalorder %s282, %s284
    %p291 = scmp.eq.s32.totalorder %s80, 1
    %p292 = por %p290, %p291
    %p293 = scmp.ne.s32.totalorder %s284, %s285
    %p294 = scmp.eq.s32.totalorder %s80, 0
    %p295 = por %p293, %p294
    %p296 = scmp.ne.s32.totalorder %s284, %s285
    %p297 = scmp.eq.s32.totalorder %s81, 1
    %p298 = por %p296, %p297
    %p300 = scmp.ne.s32.totalorder %s285, %s299
    %p301 = scmp.eq.s32.totalorder %s81, 0
    %p302 = por %p300, %p301
    %s304 = sadd.s32 %s303, 1
    %p307 = scmp.eq.s32.totalorder %s75, 1
    %p308 = scmp.ne.s32.totalorder %s303, %s305
    %p309 = scmp.eq.s32.totalorder %s75, 0
    %p310 = por %p308, %p309
    %p311 = scmp.ne.s32.totalorder %s303, %s305
    %p312 = scmp.eq.s32.totalorder %s80, 1
    %p313 = por %p311, %p312
    %p314 = scmp.ne.s32.totalorder %s305, %s306
    %p315 = scmp.eq.s32.totalorder %s80, 0
    %p316 = por %p314, %p315
    %p317 = scmp.ne.s32.totalorder %s305, %s306
    %p318 = scmp.eq.s32.totalorder %s81, 1
    %p319 = por %p317, %p318
    %p321 = scmp.ne.s32.totalorder %s306, %s320
    %p322 = scmp.eq.s32.totalorder %s81, 0
    %p323 = por %p321, %p322
    %s325 = sadd.s32 %s324, 1
    %p328 = scmp.eq.s32.totalorder %s75, 1
    %p329 = scmp.ne.s32.totalorder %s324, %s326
    %p330 = scmp.eq.s32.totalorder %s75, 0
    %p331 = por %p329, %p330
    %p332 = scmp.ne.s32.totalorder %s324, %s326
    %p333 = scmp.eq.s32.totalorder %s80, 1
    %p334 = por %p332, %p333
    %p335 = scmp.ne.s32.totalorder %s326, %s327
    %p336 = scmp.eq.s32.totalorder %s80, 0
    %p337 = por %p335, %p336
    %p338 = scmp.ne.s32.totalorder %s326, %s327
    %p339 = scmp.eq.s32.totalorder %s81, 1
    %p340 = por %p338, %p339
    %p342 = scmp.ne.s32.totalorder %s327, %s341
    %p343 = scmp.eq.s32.totalorder %s81, 0
    %p344 = por %p342, %p343
    %s346 = sadd.s32 %s345, 1
    %p349 = scmp.eq.s32.totalorder %s75, 1
    %p350 = scmp.ne.s32.totalorder %s345, %s347
    %p351 = scmp.eq.s32.totalorder %s75, 0
    %p352 = por %p350, %p351
    %p353 = scmp.ne.s32.totalorder %s345, %s347
    %p354 = scmp.eq.s32.totalorder %s80, 1
    %p355 = por %p353, %p354
    %p356 = scmp.ne.s32.totalorder %s347, %s348
    %p357 = scmp.eq.s32.totalorder %s80, 0
    %p358 = por %p356, %p357
    %p359 = scmp.ne.s32.totalorder %s347, %s348
    %p360 = scmp.eq.s32.totalorder %s81, 1
    %p361 = por %p359, %p360
    %p363 = scmp.ne.s32.totalorder %s348, %s362
    %p364 = scmp.eq.s32.totalorder %s81, 0
    %p365 = por %p363, %p364
    %s367 = sadd.s32 %s366, 1
    %p370 = scmp.eq.s32.totalorder %s75, 1
    %p371 = scmp.ne.s32.totalorder %s366, %s368
    %p372 = scmp.eq.s32.totalorder %s75, 0
    %p373 = por %p371, %p372
    %p374 = scmp.ne.s32.totalorder %s366, %s368
    %p375 = scmp.eq.s32.totalorder %s80, 1
    %p376 = por %p374, %p375
    %p377 = scmp.ne.s32.totalorder %s368, %s369
    %p378 = scmp.eq.s32.totalorder %s80, 0
    %p379 = por %p377, %p378
    %p380 = scmp.ne.s32.totalorder %s368, %s369
    %p381 = scmp.eq.s32.totalorder %s81, 1
    %p382 = por %p380, %p381
    %p384 = scmp.ne.s32.totalorder %s369, %s383
    %p385 = scmp.eq.s32.totalorder %s81, 0
    %p386 = por %p384, %p385
    %s388 = sadd.s32 %s387, 1
    %p391 = scmp.eq.s32.totalorder %s75, 1
    %p392 = scmp.ne.s32.totalorder %s387, %s389
    %p393 = scmp.eq.s32.totalorder %s75, 0
    %p394 = por %p392, %p393
    %p395 = scmp.ne.s32.totalorder %s387, %s389
    %p396 = scmp.eq.s32.totalorder %s80, 1
    %p397 = por %p395, %p396
    %p398 = scmp.ne.s32.totalorder %s389, %s390
    %p399 = scmp.eq.s32.totalorder %s80, 0
    %p400 = por %p398, %p399
    %p401 = scmp.ne.s32.totalorder %s389, %s390
    %p402 = scmp.eq.s32.totalorder %s81, 1
    %p403 = por %p401, %p402
    %p405 = scmp.ne.s32.totalorder %s390, %s404
    %p406 = scmp.eq.s32.totalorder %s81, 0
    %p407 = por %p405, %p406
    %s409 = sadd.s32 %s408, 1
    %p412 = scmp.eq.s32.totalorder %s75, 1
    %p413 = scmp.ne.s32.totalorder %s408, %s410
    %p414 = scmp.eq.s32.totalorder %s75, 0
    %p415 = por %p413, %p414
    %p416 = scmp.ne.s32.totalorder %s408, %s410
    %p417 = scmp.eq.s32.totalorder %s80, 1
    %p418 = por %p416, %p417
    %p419 = scmp.ne.s32.totalorder %s410, %s411
    %p420 = scmp.eq.s32.totalorder %s80, 0
    %p421 = por %p419, %p420
    %p422 = scmp.ne.s32.totalorder %s410, %s411
    %p423 = scmp.eq.s32.totalorder %s81, 1
    %p424 = por %p422, %p423
    %p426 = scmp.ne.s32.totalorder %s411, %s425
    %p427 = scmp.eq.s32.totalorder %s81, 0
    %p428 = por %p426, %p427
    %s430 = sadd.s32 %s429, 1
    %p433 = scmp.eq.s32.totalorder %s75, 1
    %p434 = scmp.ne.s32.totalorder %s429, %s431
    %p435 = scmp.eq.s32.totalorder %s75, 0
    %p436 = por %p434, %p435
    %p437 = scmp.ne.s32.totalorder %s429, %s431
    %p438 = scmp.eq.s32.totalorder %s80, 1
    %p439 = por %p437, %p438
    %p440 = scmp.ne.s32.totalorder %s431, %s432
    %p441 = scmp.eq.s32.totalorder %s80, 0
    %p442 = por %p440, %p441
    %p443 = scmp.ne.s32.totalorder %s431, %s432
    %p444 = scmp.eq.s32.totalorder %s81, 1
    %p445 = por %p443, %p444
    %p447 = scmp.ne.s32.totalorder %s432, %s446
    %p448 = scmp.eq.s32.totalorder %s81, 0
    %p449 = por %p447, %p448
    %s451 = sadd.s32 %s450, 1
    %p454 = scmp.eq.s32.totalorder %s75, 1
    %p455 = scmp.ne.s32.totalorder %s450, %s452
    %p456 = scmp.eq.s32.totalorder %s75, 0
    %p457 = por %p455, %p456
    %p458 = scmp.ne.s32.totalorder %s450, %s452
    %p459 = scmp.eq.s32.totalorder %s80, 1
    %p460 = por %p458, %p459
    %p461 = scmp.ne.s32.totalorder %s452, %s453
    %p462 = scmp.eq.s32.totalorder %s80, 0
    %p463 = por %p461, %p462
    %p464 = scmp.ne.s32.totalorder %s452, %s453
    %p465 = scmp.eq.s32.totalorder %s81, 1
    %p466 = por %p464, %p465
    %p468 = scmp.ne.s32.totalorder %s453, %s467
    %p469 = scmp.eq.s32.totalorder %s81, 0
    %p470 = por %p468, %p469
    %s472 = sadd.s32 %s471, 1
    %p475 = scmp.eq.s32.totalorder %s75, 1
    %p476 = scmp.ne.s32.totalorder %s471, %s473
    %p477 = scmp.eq.s32.totalorder %s75, 0
    %p478 = por %p476, %p477
    %p479 = scmp.ne.s32.totalorder %s471, %s473
    %p480 = scmp.eq.s32.totalorder %s80, 1
    %p481 = por %p479, %p480
    %p482 = scmp.ne.s32.totalorder %s473, %s474
    %p483 = scmp.eq.s32.totalorder %s80, 0
    %p484 = por %p482, %p483
    %p485 = scmp.ne.s32.totalorder %s473, %s474
    %p486 = scmp.eq.s32.totalorder %s81, 1
    %p487 = por %p485, %p486
    %p489 = scmp.ne.s32.totalorder %s474, %s488
    %p490 = scmp.eq.s32.totalorder %s81, 0
    %p491 = por %p489, %p490
    %s493 = sadd.s32 %s492, 1
    %p496 = scmp.eq.s32.totalorder %s75, 1
    %p497 = scmp.ne.s32.totalorder %s492, %s494
    %p498 = scmp.eq.s32.totalorder %s75, 0
    %p499 = por %p497, %p498
    %p500 = scmp.ne.s32.totalorder %s492, %s494
    %p501 = scmp.eq.s32.totalorder %s80, 1
    %p502 = por %p500, %p501
    %p503 = scmp.ne.s32.totalorder %s494, %s495
    %p504 = scmp.eq.s32.totalorder %s80, 0
    %p505 = por %p503, %p504
    %p506 = scmp.ne.s32.totalorder %s494, %s495
    %p507 = scmp.eq.s32.totalorder %s81, 1
    %p508 = por %p506, %p507
    %p510 = scmp.ne.s32.totalorder %s495, %s509
    %p511 = scmp.eq.s32.totalorder %s81, 0
    %p512 = por %p510, %p511
    %s514 = sadd.s32 %s513, 1
    %p517 = scmp.eq.s32.totalorder %s75, 1
    %p518 = scmp.ne.s32.totalorder %s513, %s515
    %p519 = scmp.eq.s32.totalorder %s75, 0
    %p520 = por %p518, %p519
    %p521 = scmp.ne.s32.totalorder %s513, %s515
    %p522 = scmp.eq.s32.totalorder %s80, 1
    %p523 = por %p521, %p522
    %p524 = scmp.ne.s32.totalorder %s515, %s516
    %p525 = scmp.eq.s32.totalorder %s80, 0
    %p526 = por %p524, %p525
    %p527 = scmp.ne.s32.totalorder %s515, %s516
    %p528 = scmp.eq.s32.totalorder %s81, 1
    %p529 = por %p527, %p528
    %p531 = scmp.ne.s32.totalorder %s516, %s530
    %p532 = scmp.eq.s32.totalorder %s81, 0
    %p533 = por %p531, %p532
    %s535 = sadd.s32 %s534, 1
    %p538 = scmp.eq.s32.totalorder %s75, 1
    %p539 = scmp.ne.s32.totalorder %s534, %s536
    %p540 = scmp.eq.s32.totalorder %s75, 0
    %p541 = por %p539, %p540
    %p542 = scmp.ne.s32.totalorder %s534, %s536
    %p543 = scmp.eq.s32.totalorder %s80, 1
    %p544 = por %p542, %p543
    %p545 = scmp.ne.s32.totalorder %s536, %s537
    %p546 = scmp.eq.s32.totalorder %s80, 0
    %p547 = por %p545, %p546
    %p548 = scmp.ne.s32.totalorder %s536, %s537
    %p549 = scmp.eq.s32.totalorder %s81, 1
    %p550 = por %p548, %p549
    %p552 = scmp.ne.s32.totalorder %s537, %s551
    %p553 = scmp.eq.s32.totalorder %s81, 0
    %p554 = por %p552, %p553
    %s556 = sadd.s32 %s555, 1
    %p559 = scmp.eq.s32.totalorder %s75, 1
    %p560 = scmp.ne.s32.totalorder %s555, %s557
    %p561 = scmp.eq.s32.totalorder %s75, 0
    %p562 = por %p560, %p561
    %p563 = scmp.ne.s32.totalorder %s555, %s557
    %p564 = scmp.eq.s32.totalorder %s80, 1
    %p565 = por %p563, %p564
    %p566 = scmp.ne.s32.totalorder %s557, %s558
    %p567 = scmp.eq.s32.totalorder %s80, 0
    %p568 = por %p566, %p567
    %p569 = scmp.ne.s32.totalorder %s557, %s558
    %p570 = scmp.eq.s32.totalorder %s81, 1
    %p571 = por %p569, %p570
    %p573 = scmp.ne.s32.totalorder %s558, %s572
    %p574 = scmp.eq.s32.totalorder %s81, 0
    %p575 = por %p573, %p574
    %s577 = sadd.s32 %s576, 1
    %p580 = scmp.eq.s32.totalorder %s75, 1
    %p581 = scmp.ne.s32.totalorder %s576, %s578
    %p582 = scmp.eq.s32.totalorder %s75, 0
    %p583 = por %p581, %p582
    %p584 = scmp.ne.s32.totalorder %s576, %s578
    %p585 = scmp.eq.s32.totalorder %s80, 1
    %p586 = por %p584, %p585
    %p587 = scmp.ne.s32.totalorder %s578, %s579
    %p588 = scmp.eq.s32.totalorder %s80, 0
    %p589 = por %p587, %p588
    %p590 = scmp.ne.s32.totalorder %s578, %s579
    %p591 = scmp.eq.s32.totalorder %s81, 1
    %p592 = por %p590, %p591
    %p594 = scmp.ne.s32.totalorder %s579, %s593
    %p595 = scmp.eq.s32.totalorder %s81, 0
    %p596 = por %p594, %p595
    %s598 = sadd.s32 %s597, 1
    %p601 = scmp.eq.s32.totalorder %s75, 1
    %p602 = scmp.ne.s32.totalorder %s597, %s599
    %p603 = scmp.eq.s32.totalorder %s75, 0
    %p604 = por %p602, %p603
    %p605 = scmp.ne.s32.totalorder %s597, %s599
    %p606 = scmp.eq.s32.totalorder %s80, 1
    %p607 = por %p605, %p606
    %p608 = scmp.ne.s32.totalorder %s599, %s600
    %p609 = scmp.eq.s32.totalorder %s80, 0
    %p610 = por %p608, %p609
    %p611 = scmp.ne.s32.totalorder %s599, %s600
    %p612 = scmp.eq.s32.totalorder %s81, 1
    %p613 = por %p611, %p612
    %p615 = scmp.ne.s32.totalorder %s600, %s614
    %p616 = scmp.eq.s32.totalorder %s81, 0
    %p617 = por %p615, %p616
    %s619 = sadd.s32 %s618, 1
    %p622 = scmp.eq.s32.totalorder %s75, 1
    %p623 = scmp.ne.s32.totalorder %s618, %s620
    %p624 = scmp.eq.s32.totalorder %s75, 0
    %p625 = por %p623, %p624
    %p626 = scmp.ne.s32.totalorder %s618, %s620
    %p627 = scmp.eq.s32.totalorder %s80, 1
    %p628 = por %p626, %p627
    %p629 = scmp.ne.s32.totalorder %s620, %s621
    %p630 = scmp.eq.s32.totalorder %s80, 0
    %p631 = por %p629, %p630
    %p632 = scmp.ne.s32.totalorder %s620, %s621
    %p633 = scmp.eq.s32.totalorder %s81, 1
    %p634 = por %p632, %p633
    %p636 = scmp.ne.s32.totalorder %s621, %s635
    %p637 = scmp.eq.s32.totalorder %s81, 0
    %p638 = por %p636, %p637
    %s640 = sadd.s32 %s639, 1
    %p643 = scmp.eq.s32.totalorder %s75, 1
    %p644 = scmp.ne.s32.totalorder %s639, %s641
    %p645 = scmp.eq.s32.totalorder %s75, 0
    %p646 = por %p644, %p645
    %p647 = scmp.ne.s32.totalorder %s639, %s641
    %p648 = scmp.eq.s32.totalorder %s80, 1
    %p649 = por %p647, %p648
    %p650 = scmp.ne.s32.totalorder %s641, %s642
    %p651 = scmp.eq.s32.totalorder %s80, 0
    %p652 = por %p650, %p651
    %p653 = scmp.ne.s32.totalorder %s641, %s642
    %p654 = scmp.eq.s32.totalorder %s81, 1
    %p655 = por %p653, %p654
    %p657 = scmp.ne.s32.totalorder %s642, %s656
    %p658 = scmp.eq.s32.totalorder %s81, 0
    %p659 = por %p657, %p658
    %s661 = sadd.s32 %s660, 1
    %p664 = scmp.eq.s32.totalorder %s75, 1
    %p665 = scmp.ne.s32.totalorder %s660, %s662
    %p666 = scmp.eq.s32.totalorder %s75, 0
    %p667 = por %p665, %p666
    %p668 = scmp.ne.s32.totalorder %s660, %s662
    %p669 = scmp.eq.s32.totalorder %s80, 1
    %p670 = por %p668, %p669
    %p671 = scmp.ne.s32.totalorder %s662, %s663
    %p672 = scmp.eq.s32.totalorder %s80, 0
    %p673 = por %p671, %p672
    %p674 = scmp.ne.s32.totalorder %s662, %s663
    %p675 = scmp.eq.s32.totalorder %s81, 1
    %p676 = por %p674, %p675
    %p678 = scmp.ne.s32.totalorder %s663, %s677
    %p679 = scmp.eq.s32.totalorder %s81, 0
    %p680 = por %p678, %p679
    %s682 = sadd.s32 %s681, 1
    %p685 = scmp.eq.s32.totalorder %s75, 1
    %p686 = scmp.ne.s32.totalorder %s681, %s683
    %p687 = scmp.eq.s32.totalorder %s75, 0
    %p688 = por %p686, %p687
    %p689 = scmp.ne.s32.totalorder %s681, %s683
    %p690 = scmp.eq.s32.totalorder %s80, 1
    %p691 = por %p689, %p690
    %p692 = scmp.ne.s32.totalorder %s683, %s684
    %p693 = scmp.eq.s32.totalorder %s80, 0
    %p694 = por %p692, %p693
    %p695 = scmp.ne.s32.totalorder %s683, %s684
    %p696 = scmp.eq.s32.totalorder %s81, 1
    %p697 = por %p695, %p696
    %p699 = scmp.ne.s32.totalorder %s684, %s698
    %p700 = scmp.eq.s32.totalorder %s81, 0
    %p701 = por %p699, %p700
    %s703 = sadd.s32 %s702, 1
    %p706 = scmp.eq.s32.totalorder %s75, 1
    %p707 = scmp.ne.s32.totalorder %s702, %s704
    %p708 = scmp.eq.s32.totalorder %s75, 0
    %p709 = por %p707, %p708
    %p710 = scmp.ne.s32.totalorder %s702, %s704
    %p711 = scmp.eq.s32.totalorder %s80, 1
    %p712 = por %p710, %p711
    %p713 = scmp.ne.s32.totalorder %s704, %s705
    %p714 = scmp.eq.s32.totalorder %s80, 0
    %p715 = por %p713, %p714
    %p716 = scmp.ne.s32.totalorder %s704, %s705
    %p717 = scmp.eq.s32.totalorder %s81, 1
    %p718 = por %p716, %p717
    %p720 = scmp.ne.s32.totalorder %s705, %s719
    %p721 = scmp.eq.s32.totalorder %s81, 0
    %p722 = por %p720, %p721
    %s724 = sadd.s32 %s723, 1
    %p727 = scmp.eq.s32.totalorder %s75, 1
    %p728 = scmp.ne.s32.totalorder %s723, %s725
    %p729 = scmp.eq.s32.totalorder %s75, 0
    %p730 = por %p728, %p729
    %p731 = scmp.ne.s32.totalorder %s723, %s725
    %p732 = scmp.eq.s32.totalorder %s80, 1
    %p733 = por %p731, %p732
    %p734 = scmp.ne.s32.totalorder %s725, %s726
    %p735 = scmp.eq.s32.totalorder %s80, 0
    %p736 = por %p734, %p735
    %p737 = scmp.ne.s32.totalorder %s725, %s726
    %p738 = scmp.eq.s32.totalorder %s81, 1
    %p739 = por %p737, %p738
    %p741 = scmp.ne.s32.totalorder %s726, %s740
    %p742 = scmp.eq.s32.totalorder %s81, 0
    %p743 = por %p741, %p742
    %s745 = sadd.s32 %s744, 1
    %p748 = scmp.eq.s32.totalorder %s75, 1
    %p749 = scmp.ne.s32.totalorder %s744, %s746
    %p750 = scmp.eq.s32.totalorder %s75, 0
    %p751 = por %p749, %p750
    %p752 = scmp.ne.s32.totalorder %s744, %s746
    %p753 = scmp.eq.s32.totalorder %s80, 1
    %p754 = por %p752, %p753
    %p755 = scmp.ne.s32.totalorder %s746, %s747
    %p756 = scmp.eq.s32.totalorder %s80, 0
    %p757 = por %p755, %p756
    %p758 = scmp.ne.s32.totalorder %s746, %s747
    %p759 = scmp.eq.s32.totalorder %s81, 1
    %p760 = por %p758, %p759
    %p762 = scmp.ne.s32.totalorder %s747, %s761
    %p763 = scmp.eq.s32.totalorder %s81, 0
    %p764 = por %p762, %p763
    %s766 = sadd.s32 %s765, 1
    %p769 = scmp.eq.s32.totalorder %s75, 1
    %p770 = scmp.ne.s32.totalorder %s765, %s767
    %p771 = scmp.eq.s32.totalorder %s75, 0
    %p772 = por %p770, %p771
    %p773 = scmp.ne.s32.totalorder %s765, %s767
    %p774 = scmp.eq.s32.totalorder %s80, 1
    %p775 = por %p773, %p774
    %p776 = scmp.ne.s32.totalorder %s767, %s768
    %p777 = scmp.eq.s32.totalorder %s80, 0
    %p778 = por %p776, %p777
    %p779 = scmp.ne.s32.totalorder %s767, %s768
    %p780 = scmp.eq.s32.totalorder %s81, 1
    %p781 = por %p779, %p780
    %p783 = scmp.ne.s32.totalorder %s768, %s782
    %p784 = scmp.eq.s32.totalorder %s81, 0
    %p785 = por %p783, %p784
    %s787 = sadd.s32 %s786, 1
    %p790 = scmp.eq.s32.totalorder %s75, 1
    %p791 = scmp.ne.s32.totalorder %s786, %s788
    %p792 = scmp.eq.s32.totalorder %s75, 0
    %p793 = por %p791, %p792
    %p794 = scmp.ne.s32.totalorder %s786, %s788
    %p795 = scmp.eq.s32.totalorder %s80, 1
    %p796 = por %p794, %p795
    %p797 = scmp.ne.s32.totalorder %s788, %s789
    %p798 = scmp.eq.s32.totalorder %s80, 0
    %p799 = por %p797, %p798
    %p800 = scmp.ne.s32.totalorder %s788, %s789
    %p801 = scmp.eq.s32.totalorder %s81, 1
    %p802 = por %p800, %p801
    %p804 = scmp.ne.s32.totalorder %s789, %s803
    %p805 = scmp.eq.s32.totalorder %s81, 0
    %p806 = por %p804, %p805
    %s807 = ssub.s32 %s75, %s82
    %p808 = scmp.eq.s32.totalorder %s807, 0
    %s810 = sadd.s32 %s809, 1
    %s811 = scalar_select %p808, %s809, %s810
    %p814 = pneg %p808
    %p815 = scmp.eq.s32.totalorder %s75, 1
    %p816 = por %p814, %p815
    %p817 = scmp.ne.s32.totalorder %s809, %s812
    %p818 = scmp.eq.s32.totalorder %s75, 0
    %p819 = por %p817, %p818
    %p820 = scmp.ne.s32.totalorder %s809, %s812
    %p821 = scmp.eq.s32.totalorder %s80, 1
    %p822 = por %p820, %p821
    %p823 = scmp.ne.s32.totalorder %s812, %s813
    %p824 = scmp.eq.s32.totalorder %s80, 0
    %p825 = por %p823, %p824
    %p826 = scmp.ne.s32.totalorder %s812, %s813
    %p827 = scmp.eq.s32.totalorder %s81, 1
    %p828 = por %p826, %p827
    %p830 = scmp.ne.s32.totalorder %s813, %s829
    %p831 = scmp.eq.s32.totalorder %s81, 0
    %p832 = por %p830, %p831
    %p833 = scmp.le.s32.totalorder 1, %s75
    %p834 = scmp.lt.s32.totalorder %s75, 3
    %p835 = pnand %p833, %p834
    %p836 = pneg %p835
    // Predicated region
    $region9: #{vae_forward.1} parent=5 // pred_check
      _
    $region10: #{vae_forward.1} parent=5 // pred_check_branch
      %838 = sbr.rel (%p835) target = $region12
    $region11: #{vae_forward.1} parent=5 // pred_region
      %s839 = ssub.s32 %s75, 1
      // Predicated region
      $region13: #{vae_forward.1} parent=11 // pred_check
        %p840 = pneg %p148
      $region14: #{vae_forward.1} parent=11 // pred_check_branch
        %842 = sbr.rel (%p840) target = $region16
      $region15: #{vae_forward.1} parent=11 // pred_region
        _
      $region16: #{vae_forward.1} parent=11 // pred_fallthru
        _
      // Predicated region
      $region17: #{vae_forward.1} parent=11 // pred_check
        %p843 = pneg %p169
      $region18: #{vae_forward.1} parent=11 // pred_check_branch
        %845 = sbr.rel (%p843) target = $region20
      $region19: #{vae_forward.1} parent=11 // pred_region
        _
      $region20: #{vae_forward.1} parent=11 // pred_fallthru
        _
      // Predicated region
      $region21: #{vae_forward.1} parent=11 // pred_check
        %p846 = pneg %p190
      $region22: #{vae_forward.1} parent=11 // pred_check_branch
        %848 = sbr.rel (%p846) target = $region24
      $region23: #{vae_forward.1} parent=11 // pred_region
        _
      $region24: #{vae_forward.1} parent=11 // pred_fallthru
        _
      // Predicated region
      $region25: #{vae_forward.1} parent=11 // pred_check
        %p849 = pneg %p211
      $region26: #{vae_forward.1} parent=11 // pred_check_branch
        %851 = sbr.rel (%p849) target = $region28
      $region27: #{vae_forward.1} parent=11 // pred_region
        _
      $region28: #{vae_forward.1} parent=11 // pred_fallthru
        _
      // Predicated region
      $region29: #{vae_forward.1} parent=11 // pred_check
        %p852 = pneg %p232
      $region30: #{vae_forward.1} parent=11 // pred_check_branch
        %854 = sbr.rel (%p852) target = $region32
      $region31: #{vae_forward.1} parent=11 // pred_region
        _
      $region32: #{vae_forward.1} parent=11 // pred_fallthru
        _
      // Predicated region
      $region33: #{vae_forward.1} parent=11 // pred_check
        %p855 = pneg %p253
      $region34: #{vae_forward.1} parent=11 // pred_check_branch
        %857 = sbr.rel (%p855) target = $region36
      $region35: #{vae_forward.1} parent=11 // pred_region
        _
      $region36: #{vae_forward.1} parent=11 // pred_fallthru
        _
      // Predicated region
      $region37: #{vae_forward.1} parent=11 // pred_check
        %p858 = pneg %p274
      $region38: #{vae_forward.1} parent=11 // pred_check_branch
        %860 = sbr.rel (%p858) target = $region40
      $region39: #{vae_forward.1} parent=11 // pred_region
        _
      $region40: #{vae_forward.1} parent=11 // pred_fallthru
        _
      // Predicated region
      $region41: #{vae_forward.1} parent=11 // pred_check
        %p861 = pneg %p295
      $region42: #{vae_forward.1} parent=11 // pred_check_branch
        %863 = sbr.rel (%p861) target = $region44
      $region43: #{vae_forward.1} parent=11 // pred_region
        _
      $region44: #{vae_forward.1} parent=11 // pred_fallthru
        _
      // Predicated region
      $region45: #{vae_forward.1} parent=11 // pred_check
        %p864 = pneg %p316
      $region46: #{vae_forward.1} parent=11 // pred_check_branch
        %866 = sbr.rel (%p864) target = $region48
      $region47: #{vae_forward.1} parent=11 // pred_region
        _
      $region48: #{vae_forward.1} parent=11 // pred_fallthru
        _
      // Predicated region
      $region49: #{vae_forward.1} parent=11 // pred_check
        %p867 = pneg %p337
      $region50: #{vae_forward.1} parent=11 // pred_check_branch
        %869 = sbr.rel (%p867) target = $region52
      $region51: #{vae_forward.1} parent=11 // pred_region
        _
      $region52: #{vae_forward.1} parent=11 // pred_fallthru
        _
      // Predicated region
      $region53: #{vae_forward.1} parent=11 // pred_check
        %p870 = pneg %p358
      $region54: #{vae_forward.1} parent=11 // pred_check_branch
        %872 = sbr.rel (%p870) target = $region56
      $region55: #{vae_forward.1} parent=11 // pred_region
        _
      $region56: #{vae_forward.1} parent=11 // pred_fallthru
        _
      // Predicated region
      $region57: #{vae_forward.1} parent=11 // pred_check
        %p873 = pneg %p379
      $region58: #{vae_forward.1} parent=11 // pred_check_branch
        %875 = sbr.rel (%p873) target = $region60
      $region59: #{vae_forward.1} parent=11 // pred_region
        _
      $region60: #{vae_forward.1} parent=11 // pred_fallthru
        _
      // Predicated region
      $region61: #{vae_forward.1} parent=11 // pred_check
        %p876 = pneg %p400
      $region62: #{vae_forward.1} parent=11 // pred_check_branch
        %878 = sbr.rel (%p876) target = $region64
      $region63: #{vae_forward.1} parent=11 // pred_region
        _
      $region64: #{vae_forward.1} parent=11 // pred_fallthru
        _
      // Predicated region
      $region65: #{vae_forward.1} parent=11 // pred_check
        %p879 = pneg %p421
      $region66: #{vae_forward.1} parent=11 // pred_check_branch
        %881 = sbr.rel (%p879) target = $region68
      $region67: #{vae_forward.1} parent=11 // pred_region
        _
      $region68: #{vae_forward.1} parent=11 // pred_fallthru
        _
      // Predicated region
      $region69: #{vae_forward.1} parent=11 // pred_check
        %p882 = pneg %p442
      $region70: #{vae_forward.1} parent=11 // pred_check_branch
        %884 = sbr.rel (%p882) target = $region72
      $region71: #{vae_forward.1} parent=11 // pred_region
        _
      $region72: #{vae_forward.1} parent=11 // pred_fallthru
        _
      // Predicated region
      $region73: #{vae_forward.1} parent=11 // pred_check
        %p885 = pneg %p463
      $region74: #{vae_forward.1} parent=11 // pred_check_branch
        %887 = sbr.rel (%p885) target = $region76
      $region75: #{vae_forward.1} parent=11 // pred_region
        _
      $region76: #{vae_forward.1} parent=11 // pred_fallthru
        _
      // Predicated region
      $region77: #{vae_forward.1} parent=11 // pred_check
        %p888 = pneg %p484
      $region78: #{vae_forward.1} parent=11 // pred_check_branch
        %890 = sbr.rel (%p888) target = $region80
      $region79: #{vae_forward.1} parent=11 // pred_region
        _
      $region80: #{vae_forward.1} parent=11 // pred_fallthru
        _
      // Predicated region
      $region81: #{vae_forward.1} parent=11 // pred_check
        %p891 = pneg %p505
      $region82: #{vae_forward.1} parent=11 // pred_check_branch
        %893 = sbr.rel (%p891) target = $region84
      $region83: #{vae_forward.1} parent=11 // pred_region
        _
      $region84: #{vae_forward.1} parent=11 // pred_fallthru
        _
      // Predicated region
      $region85: #{vae_forward.1} parent=11 // pred_check
        %p894 = pneg %p526
      $region86: #{vae_forward.1} parent=11 // pred_check_branch
        %896 = sbr.rel (%p894) target = $region88
      $region87: #{vae_forward.1} parent=11 // pred_region
        _
      $region88: #{vae_forward.1} parent=11 // pred_fallthru
        _
      // Predicated region
      $region89: #{vae_forward.1} parent=11 // pred_check
        %p897 = pneg %p547
      $region90: #{vae_forward.1} parent=11 // pred_check_branch
        %899 = sbr.rel (%p897) target = $region92
      $region91: #{vae_forward.1} parent=11 // pred_region
        _
      $region92: #{vae_forward.1} parent=11 // pred_fallthru
        _
      // Predicated region
      $region93: #{vae_forward.1} parent=11 // pred_check
        %p900 = pneg %p568
      $region94: #{vae_forward.1} parent=11 // pred_check_branch
        %902 = sbr.rel (%p900) target = $region96
      $region95: #{vae_forward.1} parent=11 // pred_region
        _
      $region96: #{vae_forward.1} parent=11 // pred_fallthru
        _
      // Predicated region
      $region97: #{vae_forward.1} parent=11 // pred_check
        %p903 = pneg %p589
      $region98: #{vae_forward.1} parent=11 // pred_check_branch
        %905 = sbr.rel (%p903) target = $region100
      $region99: #{vae_forward.1} parent=11 // pred_region
        _
      $region100: #{vae_forward.1} parent=11 // pred_fallthru
        _
      // Predicated region
      $region101: #{vae_forward.1} parent=11 // pred_check
        %p906 = pneg %p610
      $region102: #{vae_forward.1} parent=11 // pred_check_branch
        %908 = sbr.rel (%p906) target = $region104
      $region103: #{vae_forward.1} parent=11 // pred_region
        _
      $region104: #{vae_forward.1} parent=11 // pred_fallthru
        _
      // Predicated region
      $region105: #{vae_forward.1} parent=11 // pred_check
        %p909 = pneg %p631
      $region106: #{vae_forward.1} parent=11 // pred_check_branch
        %911 = sbr.rel (%p909) target = $region108
      $region107: #{vae_forward.1} parent=11 // pred_region
        _
      $region108: #{vae_forward.1} parent=11 // pred_fallthru
        _
      // Predicated region
      $region109: #{vae_forward.1} parent=11 // pred_check
        %p912 = pneg %p652
      $region110: #{vae_forward.1} parent=11 // pred_check_branch
        %914 = sbr.rel (%p912) target = $region112
      $region111: #{vae_forward.1} parent=11 // pred_region
        _
      $region112: #{vae_forward.1} parent=11 // pred_fallthru
        _
      // Predicated region
      $region113: #{vae_forward.1} parent=11 // pred_check
        %p915 = pneg %p673
      $region114: #{vae_forward.1} parent=11 // pred_check_branch
        %917 = sbr.rel (%p915) target = $region116
      $region115: #{vae_forward.1} parent=11 // pred_region
        _
      $region116: #{vae_forward.1} parent=11 // pred_fallthru
        _
      // Predicated region
      $region117: #{vae_forward.1} parent=11 // pred_check
        %p918 = pneg %p694
      $region118: #{vae_forward.1} parent=11 // pred_check_branch
        %920 = sbr.rel (%p918) target = $region120
      $region119: #{vae_forward.1} parent=11 // pred_region
        _
      $region120: #{vae_forward.1} parent=11 // pred_fallthru
        _
      // Predicated region
      $region121: #{vae_forward.1} parent=11 // pred_check
        %p921 = pneg %p715
      $region122: #{vae_forward.1} parent=11 // pred_check_branch
        %923 = sbr.rel (%p921) target = $region124
      $region123: #{vae_forward.1} parent=11 // pred_region
        _
      $region124: #{vae_forward.1} parent=11 // pred_fallthru
        _
      // Predicated region
      $region125: #{vae_forward.1} parent=11 // pred_check
        %p924 = pneg %p736
      $region126: #{vae_forward.1} parent=11 // pred_check_branch
        %926 = sbr.rel (%p924) target = $region128
      $region127: #{vae_forward.1} parent=11 // pred_region
        _
      $region128: #{vae_forward.1} parent=11 // pred_fallthru
        _
      // Predicated region
      $region129: #{vae_forward.1} parent=11 // pred_check
        %p927 = pneg %p757
      $region130: #{vae_forward.1} parent=11 // pred_check_branch
        %929 = sbr.rel (%p927) target = $region132
      $region131: #{vae_forward.1} parent=11 // pred_region
        _
      $region132: #{vae_forward.1} parent=11 // pred_fallthru
        _
      // Predicated region
      $region133: #{vae_forward.1} parent=11 // pred_check
        %p930 = pneg %p778
      $region134: #{vae_forward.1} parent=11 // pred_check_branch
        %932 = sbr.rel (%p930) target = $region136
      $region135: #{vae_forward.1} parent=11 // pred_region
        _
      $region136: #{vae_forward.1} parent=11 // pred_fallthru
        _
      // Predicated region
      $region137: #{vae_forward.1} parent=11 // pred_check
        %p933 = pneg %p799
      $region138: #{vae_forward.1} parent=11 // pred_check_branch
        %935 = sbr.rel (%p933) target = $region140
      $region139: #{vae_forward.1} parent=11 // pred_region
        _
      $region140: #{vae_forward.1} parent=11 // pred_fallthru
        _
    $region12: #{vae_forward.1} parent=5 // pred_fallthru
      _
    %p936 = scmp.lt.s32.totalorder %s75, 2
    // Predicated region
    $region141: #{vae_forward.1} parent=5 // pred_check
      %p937 = pneg %p936
    $region142: #{vae_forward.1} parent=5 // pred_check_branch
      %939 = sbr.rel (%p937) target = $region144
    $region143: #{vae_forward.1} parent=5 // pred_region
      // Predicated region
      $region145: #{vae_forward.1} parent=143 // pred_check
        %p940 = pneg %p95
      $region146: #{vae_forward.1} parent=143 // pred_check_branch
        %942 = sbr.rel (%p940) target = $region148
      $region147: #{vae_forward.1} parent=143 // pred_region
        %p943 = scmp.lt.s32.totalorder %s75, 1
        %s944 = scalar_select %p943, %s75, 1
        %s945 = smul.addr %s944, 8
        %s946 = scalar_lea.vmem %s1, %s945
      $region148: #{vae_forward.1} parent=143 // pred_fallthru
        _
      // Predicated region
      $region149: #{vae_forward.1} parent=143 // pred_check
        %p947 = pneg %p121
      $region150: #{vae_forward.1} parent=143 // pred_check_branch
        %949 = sbr.rel (%p947) target = $region152
      $region151: #{vae_forward.1} parent=143 // pred_region
        %p950 = scmp.lt.s32.totalorder %s75, 1
        %s951 = scalar_select %p950, %s75, 1
        %s952 = smul.addr %s951, 8
        %s953 = scalar_lea.vmem %s3, %s952
      $region152: #{vae_forward.1} parent=143 // pred_fallthru
        _
    $region144: #{vae_forward.1} parent=5 // pred_fallthru
      _
    %p954 = scmp.le.s32.totalorder 1, %s75
    %p955 = scmp.lt.s32.totalorder %s75, 3
    %p956 = pnand %p954, %p955
    %p957 = pneg %p956
    // Predicated region
    $region153: #{vae_forward.1} parent=5 // pred_check
      _
    $region154: #{vae_forward.1} parent=5 // pred_check_branch
      %959 = sbr.rel (%p956) target = $region156
    $region155: #{vae_forward.1} parent=5 // pred_region
      %s960 = ssub.s32 %s75, 1
      %p961 = scmp.lt.s32.totalorder %s80, 1
      %s962 = scalar_select %p961, %s80, 1
      %s963 = smul.addr %s962, 8
      %s964 = scalar_lea.vmem %s1, %s963
      %p965 = pneg %p101
      %p966 = pneg %p98
      %p967 = scmp.lt.s32.totalorder %s80, 1
      %s968 = scalar_select %p967, %s80, 1
      %s969 = smul.addr %s968, 8
      %s970 = scalar_lea.vmem %s3, %s969
      %p971 = pneg %p127
      %p972 = pneg %p124
      %p973 = pneg %p148
      %p974 = pneg %p145
      %p975 = pneg %p169
      %p976 = pneg %p166
      %p977 = pneg %p190
      %p978 = pneg %p187
      %p979 = pneg %p211
      %p980 = pneg %p208
      %p981 = pneg %p232
      %p982 = pneg %p229
      %p983 = pneg %p253
      %p984 = pneg %p250
      %p985 = pneg %p274
      %p986 = pneg %p271
      %p987 = pneg %p295
      %p988 = pneg %p292
      %p989 = pneg %p316
      %p990 = pneg %p313
      %p991 = pneg %p337
      %p992 = pneg %p334
      %p993 = pneg %p358
      %p994 = pneg %p355
      %p995 = pneg %p379
      %p996 = pneg %p376
      %p997 = pneg %p400
      %p998 = pneg %p397
      %p999 = pneg %p421
      %p1000 = pneg %p418
      %p1001 = pneg %p442
      %p1002 = pneg %p439
      %p1003 = pneg %p463
      %p1004 = pneg %p460
      %p1005 = pneg %p484
      %p1006 = pneg %p481
      %p1007 = pneg %p505
      %p1008 = pneg %p502
      %p1009 = pneg %p526
      %p1010 = pneg %p523
      %p1011 = pneg %p547
      %p1012 = pneg %p544
      %p1013 = pneg %p568
      %p1014 = pneg %p565
      %p1015 = pneg %p589
      %p1016 = pneg %p586
      %p1017 = pneg %p610
      %p1018 = pneg %p607
      %p1019 = pneg %p631
      %p1020 = pneg %p628
      %p1021 = pneg %p652
      %p1022 = pneg %p649
      %p1023 = pneg %p673
      %p1024 = pneg %p670
      %p1025 = pneg %p694
      %p1026 = pneg %p691
      %p1027 = pneg %p715
      %p1028 = pneg %p712
      %p1029 = pneg %p736
      %p1030 = pneg %p733
      %p1031 = pneg %p757
      %p1032 = pneg %p754
      %p1033 = pneg %p778
      %p1034 = pneg %p775
      %p1035 = pneg %p799
      %p1036 = pneg %p796
      %p1037 = pneg %p825
      %p1038 = pneg %p822
      %p1039 = scmp.lt.s32.totalorder %s80, 1
      %s1040 = scalar_select %p1039, %s80, 1
      %s1041 = smul.addr %s1040, 8
      %s1042 = scalar_lea.vmem %s69, %s1041
      %p1043 = scmp.lt.s32.totalorder %s80, 1
      %s1044 = scalar_select %p1043, %s80, 1
      %s1045 = smul.addr %s1044, 8
      %s1046 = scalar_lea.vmem %s1, %s1045
      %p1047 = scmp.lt.s32.totalorder %s80, 1
      %s1048 = scalar_select %p1047, %s80, 1
      %s1049 = smul.addr %s1048, 8
      %s1050 = scalar_lea.vmem %s3, %s1049
      %p1051 = scmp.lt.s32.totalorder %s80, 1
      %s1052 = scalar_select %p1051, %s80, 1
      %s1053 = smul.addr %s1052, 8
      %s1054 = scalar_lea.vmem %s69, %s1053
      %v1055 = vld [vmem:[%s1046] sm:$0xff]
      %v1056 = vld [vmem:[%s5] sm:$0xff]
      %v1057 = vld [vmem:[%s5 + $0x8] sm:$0xff]
      %v1058 = vld [vmem:[%s5 + $0x10] sm:$0xff]
      %v1059 = vld [vmem:[%s5 + $0x18] sm:$0xff]
      %v1060 = vld [vmem:[%s5 + $0x20] sm:$0xff]
      %v1061 = vld [vmem:[%s5 + $0x28] sm:$0xff]
      %v1062 = vld [vmem:[%s5 + $0x30] sm:$0xff]
      %v1063 = vld [vmem:[%s5 + $0x38] sm:$0xff]
      %v1064 = vld [vmem:[%s5 + $0x40] sm:$0xff]
      %v1065 = vld [vmem:[%s5 + $0x48] sm:$0xff]
      %v1066 = vld [vmem:[%s5 + $0x50] sm:$0xff]
      %v1067 = vld [vmem:[%s5 + $0x58] sm:$0xff]
      %v1068 = vld [vmem:[%s5 + $0x60] sm:$0xff]
      %v1069 = vld [vmem:[%s5 + $0x68] sm:$0xff]
      %v1070 = vld [vmem:[%s5 + $0x70] sm:$0xff]
      %v1071 = vld [vmem:[%s5 + $0x78] sm:$0xff]
      %v1072 = vld [vmem:[%s5 + $0x80] sm:$0xff]
      %v1073 = vld [vmem:[%s5 + $0x88] sm:$0xff]
      %v1074 = vld [vmem:[%s5 + $0x90] sm:$0xff]
      %v1075 = vld [vmem:[%s5 + $0x98] sm:$0xff]
      %v1076 = vld [vmem:[%s5 + $0xa0] sm:$0xff]
      %v1077 = vld [vmem:[%s5 + $0xa8] sm:$0xff]
      %v1078 = vld [vmem:[%s5 + $0xb0] sm:$0xff]
      %v1079 = vld [vmem:[%s5 + $0xb8] sm:$0xff]
      %v1080 = vld [vmem:[%s5 + $0xc0] sm:$0xff]
      %v1081 = vld [vmem:[%s5 + $0xc8] sm:$0xff]
      %v1082 = vld [vmem:[%s5 + $0xd0] sm:$0xff]
      %v1083 = vld [vmem:[%s5 + $0xd8] sm:$0xff]
      %v1084 = vld [vmem:[%s5 + $0xe0] sm:$0xff]
      %v1085 = vld [vmem:[%s5 + $0xe8] sm:$0xff]
      %v1086 = vld [vmem:[%s7] sm:$0x7]
      %v1088 = vlaneseq
      %v1089 = vshrl.u32 %v1088, 7
      %v1090 = vsub.s32 0, %v1089
      %v1091 = vrot.slane %v1086, %v1090
      %v1092 = vlaneseq
      %v1093 = vshrl.u32 %v1092, 7
      %v1094 = vsub.s32 1, %v1093
      %v1095 = vrot.slane %v1086, %v1094
      %v1096 = vlaneseq
      %v1097 = vshrl.u32 %v1096, 7
      %v1098 = vsub.s32 2, %v1097
      %v1099 = vrot.slane %v1086, %v1098
      %vm1103 = vcmask 654336
      %v1105 = vsel %vm1103, %v1055, 0
      %1107 = vmatprep.subr.mxu0 0.0
      %1108 = vmatpush1.msra.mxu0 0.0
      %1109 = vmatprep.subr.mxu0 0.0
      %1110 = vmatpush1.msra.mxu0 0.0
      %1111 = vmatprep.subr.mxu0 0.0
      %1112 = vmatpush1.msra.mxu0 0.0
      %1113 = vmatprep.subr.mxu0 0.0
      %1114 = vmatpush1.msra.mxu0 0.0
      %1115 = vmatprep.subr.mxu0 0.0
      %1116 = vmatpush1.msra.mxu0 0.0
      %1117 = vmatprep.subr.mxu0 0.0
      %1118 = vmatpush1.msra.mxu0 0.0
      %1119 = vmatprep.subr.mxu0 %v1084
      %1120 = vmatpush1.msra.mxu0 %v1083
      %1121 = vmatprep.subr.mxu0 %v1081
      %1122 = vmatpush1.msra.mxu0 %v1080
      %1123 = vmatprep.subr.mxu0 %v1078
      %1124 = vmatpush1.msra.mxu0 %v1077
      %1125 = vmatprep.subr.mxu0 %v1075
      %1126 = vmatpush1.msra.mxu0 %v1074
      %1127 = vmatprep.subr.mxu0 %v1072
      %1128 = vmatpush1.msra.mxu0 %v1071
      %1129 = vmatprep.subr.mxu0 %v1069
      %1130 = vmatpush1.msra.mxu0 %v1068
      %1131 = vmatprep.subr.mxu0 %v1066
      %1132 = vmatpush1.msra.mxu0 %v1065
      %1133 = vmatprep.subr.mxu0 %v1063
      %1134 = vmatpush1.msra.mxu0 %v1062
      %1135 = vmatprep.subr.mxu0 %v1060
      %1136 = vmatpush1.msra.mxu0 %v1059
      %1137 = vmatprep.subr.mxu0 %v1057
      %1138 = vmatpush1.msra.mxu0 %v1056
      %1139 = vmatprep.subr.mxu0 0.0
      %1140 = vmatpush2.msra.mxu0 0.0
      %1141 = vmatprep.subr.mxu0 0.0
      %1142 = vmatpush2.msra.mxu0 0.0
      %1143 = vmatprep.subr.mxu0 0.0
      %1144 = vmatpush2.msra.mxu0 0.0
      %1145 = vmatprep.subr.mxu0 0.0
      %1146 = vmatpush2.msra.mxu0 0.0
      %1147 = vmatprep.subr.mxu0 0.0
      %1148 = vmatpush2.msra.mxu0 0.0
      %1149 = vmatprep.subr.mxu0 0.0
      %1150 = vmatpush2.msra.mxu0 0.0
      %1151 = vmatprep.subr.mxu0 0.0
      %1152 = vmatpush2.msra.mxu0 0.0
      %1153 = vmatprep.subr.mxu0 0.0
      %1154 = vmatpush2.msra.mxu0 0.0
      %1155 = vmatprep.subr.mxu0 0.0
      %1156 = vmatpush2.msra.mxu0 0.0
      %1157 = vmatprep.subr.mxu0 0.0
      %1158 = vmatpush2.msra.mxu0 0.0
      %1159 = vmatprep.subr.mxu0 0.0
      %1160 = vmatpush2.msra.mxu0 0.0
      %1161 = vmatprep.subr.mxu0 0.0
      %1162 = vmatpush2.msra.mxu0 0.0
      %1163 = vmatprep.subr.mxu0 0.0
      %1164 = vmatpush2.msra.mxu0 0.0
      %1165 = vmatprep.subr.mxu0 0.0
      %1166 = vmatpush2.msra.mxu0 0.0
      %1167 = vmatprep.subr.mxu0 0.0
      %1168 = vmatpush2.msra.mxu0 0.0
      %1169 = vmatprep.subr.mxu0 0.0
      %1170 = vmatpush2.msra.mxu0 0.0
      %1171 = vmatprep.mubr.f32.mxu0 0.0
      %1172 = vmatmul.mubr.f32.gmra.mxu0 %v1105
      %v1173 = vpop.f32.mrf.mxu0
      %v1174 = vadd.f32 %v1091, %v1173
      %v1175 = vpop.f32.mrf.mxu0
      %v1176 = vadd.f32 %v1095, %v1175
      %1177 = vdwg.mxu0
      %1178 = vmatprep.subr.mxu0 0.0
      %1179 = vmatpush1.msra.mxu0 0.0
      %1180 = vmatprep.subr.mxu0 0.0
      %1181 = vmatpush1.msra.mxu0 0.0
      %1182 = vmatprep.subr.mxu0 0.0
      %1183 = vmatpush1.msra.mxu0 0.0
      %1184 = vmatprep.subr.mxu0 0.0
      %1185 = vmatpush1.msra.mxu0 0.0
      %1186 = vmatprep.subr.mxu0 0.0
      %1187 = vmatpush1.msra.mxu0 0.0
      %1188 = vmatprep.subr.mxu0 0.0
      %1189 = vmatpush1.msra.mxu0 0.0
      %1190 = vmatprep.subr.mxu0 0.0
      %1191 = vmatpush1.msra.mxu0 %v1085
      %1192 = vmatprep.subr.mxu0 0.0
      %1193 = vmatpush1.msra.mxu0 %v1082
      %1194 = vmatprep.subr.mxu0 0.0
      %1195 = vmatpush1.msra.mxu0 %v1079
      %1196 = vmatprep.subr.mxu0 0.0
      %1197 = vmatpush1.msra.mxu0 %v1076
      %1198 = vmatprep.subr.mxu0 0.0
      %1199 = vmatpush1.msra.mxu0 %v1073
      %1200 = vmatprep.subr.mxu0 0.0
      %1201 = vmatpush1.msra.mxu0 %v1070
      %1202 = vmatprep.subr.mxu0 0.0
      %1203 = vmatpush1.msra.mxu0 %v1067
      %1204 = vmatprep.subr.mxu0 0.0
      %1205 = vmatpush1.msra.mxu0 %v1064
      %1206 = vmatprep.subr.mxu0 0.0
      %1207 = vmatpush1.msra.mxu0 %v1061
      %1208 = vmatprep.subr.mxu0 0.0
      %1209 = vmatpush1.msra.mxu0 %v1058
      %1210 = vmatprep.subr.mxu0 0.0
      %1211 = vmatpush2.msra.mxu0 0.0
      %1212 = vmatprep.subr.mxu0 0.0
      %1213 = vmatpush2.msra.mxu0 0.0
      %1214 = vmatprep.subr.mxu0 0.0
      %1215 = vmatpush2.msra.mxu0 0.0
      %1216 = vmatprep.subr.mxu0 0.0
      %1217 = vmatpush2.msra.mxu0 0.0
      %1218 = vmatprep.subr.mxu0 0.0
      %1219 = vmatpush2.msra.mxu0 0.0
      %1220 = vmatprep.subr.mxu0 0.0
      %1221 = vmatpush2.msra.mxu0 0.0
      %1222 = vmatprep.subr.mxu0 0.0
      %1223 = vmatpush2.msra.mxu0 0.0
      %1224 = vmatprep.subr.mxu0 0.0
      %1225 = vmatpush2.msra.mxu0 0.0
      %1226 = vmatprep.subr.mxu0 0.0
      %1227 = vmatpush2.msra.mxu0 0.0
      %1228 = vmatprep.subr.mxu0 0.0
      %1229 = vmatpush2.msra.mxu0 0.0
      %1230 = vmatprep.subr.mxu0 0.0
      %1231 = vmatpush2.msra.mxu0 0.0
      %1232 = vmatprep.subr.mxu0 0.0
      %1233 = vmatpush2.msra.mxu0 0.0
      %1234 = vmatprep.subr.mxu0 0.0
      %1235 = vmatpush2.msra.mxu0 0.0
      %1236 = vmatprep.subr.mxu0 0.0
      %1237 = vmatpush2.msra.mxu0 0.0
      %1238 = vmatprep.subr.mxu0 0.0
      %1239 = vmatpush2.msra.mxu0 0.0
      %1240 = vmatprep.subr.mxu0 0.0
      %1241 = vmatpush2.msra.mxu0 0.0
      %1242 = vmatprep.mubr.f32.mxu0 0.0
      %1243 = vmatmul.mubr.f32.gmra.mxu0 %v1105
      %v1244 = vpop.f32.mrf.mxu0
      %v1245 = vadd.f32 %v1099, %v1244
      %v1246 = vpop.f32.mrf.mxu0
      %1247 = vdwg.mxu0
      %vm1248 = vcmp.gt.f32.partialorder %v1174, 0.0
      %vm1249 = vcmp.gt.f32.partialorder %v1176, 0.0
      %vm1250 = vcmp.gt.f32.partialorder %v1245, 0.0
      %v1251 = vmul.f32 %v1174, 0.01
      %v1252 = vmul.f32 %v1176, 0.01
      %v1253 = vmul.f32 %v1245, 0.01
      %v1254 = vsel %vm1248, %v1174, %v1251
      %v1255 = vsel %vm1249, %v1176, %v1252
      %v1256 = vsel %vm1250, %v1245, %v1253
      %v1257 = vld [vmem:[%s9] sm:$0xff]
      %v1258 = vld [vmem:[%s9 + $0x8] sm:$0xff]
      %v1259 = vld [vmem:[%s9 + $0x10] sm:$0xff]
      %v1260 = vld [vmem:[%s9 + $0x18] sm:$0xff]
      %v1261 = vld [vmem:[%s9 + $0x20] sm:$0xff]
      %v1262 = vld [vmem:[%s9 + $0x28] sm:$0xff]
      %v1263 = vld [vmem:[%s9 + $0x30] sm:$0xff]
      %v1264 = vld [vmem:[%s9 + $0x38] sm:$0xff]
      %v1265 = vld [vmem:[%s9 + $0x40] sm:$0xff]
      %v1266 = vld [vmem:[%s9 + $0x48] sm:$0xff]
      %v1267 = vld [vmem:[%s9 + $0x50] sm:$0xff]
      %v1268 = vld [vmem:[%s9 + $0x58] sm:$0xff]
      %v1269 = vld [vmem:[%s9 + $0x60] sm:$0xff]
      %v1270 = vld [vmem:[%s9 + $0x68] sm:$0xff]
      %v1271 = vld [vmem:[%s9 + $0x70] sm:$0xff]
      %v1272 = vld [vmem:[%s9 + $0x78] sm:$0xff]
      %v1273 = vld [vmem:[%s9 + $0x80] sm:$0xff]
      %v1274 = vld [vmem:[%s9 + $0x88] sm:$0xff]
      %v1275 = vld [vmem:[%s9 + $0x90] sm:$0xff]
      %v1276 = vld [vmem:[%s9 + $0x98] sm:$0xff]
      %v1277 = vld [vmem:[%s9 + $0xa0] sm:$0xff]
      %v1278 = vld [vmem:[%s9 + $0xa8] sm:$0xff]
      %v1279 = vld [vmem:[%s9 + $0xb0] sm:$0xff]
      %v1280 = vld [vmem:[%s9 + $0xb8] sm:$0xff]
      %v1281 = vld [vmem:[%s9 + $0xc0] sm:$0xff]
      %v1282 = vld [vmem:[%s9 + $0xc8] sm:$0xff]
      %v1283 = vld [vmem:[%s9 + $0xd0] sm:$0xff]
      %v1284 = vld [vmem:[%s9 + $0xd8] sm:$0xff]
      %v1285 = vld [vmem:[%s9 + $0xe0] sm:$0xff]
      %v1286 = vld [vmem:[%s9 + $0xe8] sm:$0xff]
      %v1287 = vld [vmem:[%s9 + $0xf0] sm:$0xff]
      %v1288 = vld [vmem:[%s9 + $0xf8] sm:$0xff]
      %v1289 = vld [vmem:[%s9 + $0x100] sm:$0xff]
      %v1290 = vld [vmem:[%s9 + $0x108] sm:$0xff]
      %v1291 = vld [vmem:[%s9 + $0x110] sm:$0xff]
      %v1292 = vld [vmem:[%s9 + $0x118] sm:$0xff]
      %v1293 = vld [vmem:[%s9 + $0x120] sm:$0xff]
      %v1294 = vld [vmem:[%s9 + $0x128] sm:$0xff]
      %v1295 = vld [vmem:[%s9 + $0x130] sm:$0xff]
      %v1296 = vld [vmem:[%s9 + $0x138] sm:$0xff]
      %v1297 = vld [vmem:[%s9 + $0x140] sm:$0xff]
      %v1298 = vld [vmem:[%s9 + $0x148] sm:$0xff]
      %v1299 = vld [vmem:[%s9 + $0x150] sm:$0xff]
      %v1300 = vld [vmem:[%s9 + $0x158] sm:$0xff]
      %v1301 = vld [vmem:[%s9 + $0x160] sm:$0xff]
      %v1302 = vld [vmem:[%s9 + $0x168] sm:$0xff]
      %v1303 = vld [vmem:[%s9 + $0x170] sm:$0xff]
      %v1304 = vld [vmem:[%s9 + $0x178] sm:$0xff]
      %v1305 = vld [vmem:[%s9 + $0x180] sm:$0xff]
      %v1306 = vld [vmem:[%s9 + $0x188] sm:$0xff]
      %v1307 = vld [vmem:[%s9 + $0x190] sm:$0xff]
      %v1308 = vld [vmem:[%s9 + $0x198] sm:$0xff]
      %v1309 = vld [vmem:[%s9 + $0x1a0] sm:$0xff]
      %v1310 = vld [vmem:[%s9 + $0x1a8] sm:$0xff]
      %v1311 = vld [vmem:[%s9 + $0x1b0] sm:$0xff]
      %v1312 = vld [vmem:[%s9 + $0x1b8] sm:$0xff]
      %v1313 = vld [vmem:[%s9 + $0x1c0] sm:$0xff]
      %v1314 = vld [vmem:[%s9 + $0x1c8] sm:$0xff]
      %v1315 = vld [vmem:[%s9 + $0x1d0] sm:$0xff]
      %v1316 = vld [vmem:[%s9 + $0x1d8] sm:$0xff]
      %v1317 = vld [vmem:[%s9 + $0x1e0] sm:$0xff]
      %v1318 = vld [vmem:[%s9 + $0x1e8] sm:$0xff]
      %v1319 = vld [vmem:[%s9 + $0x1f0] sm:$0xff]
      %v1320 = vld [vmem:[%s9 + $0x1f8] sm:$0xff]
      %v1321 = vld [vmem:[%s9 + $0x200] sm:$0xff]
      %v1322 = vld [vmem:[%s9 + $0x208] sm:$0xff]
      %v1323 = vld [vmem:[%s9 + $0x210] sm:$0xff]
      %v1324 = vld [vmem:[%s9 + $0x218] sm:$0xff]
      %v1325 = vld [vmem:[%s9 + $0x220] sm:$0xff]
      %v1326 = vld [vmem:[%s9 + $0x228] sm:$0xff]
      %v1327 = vld [vmem:[%s9 + $0x230] sm:$0xff]
      %v1328 = vld [vmem:[%s9 + $0x238] sm:$0xff]
      %v1329 = vld [vmem:[%s11] sm:$0x3]
      %v1331 = vlaneseq
      %v1332 = vshrl.u32 %v1331, 7
      %v1333 = vsub.s32 0, %v1332
      %v1334 = vrot.slane %v1329, %v1333
      %v1335 = vlaneseq
      %v1336 = vshrl.u32 %v1335, 7
      %v1337 = vsub.s32 1, %v1336
      %v1338 = vrot.slane %v1329, %v1337
      %vm1341 = vcmask 261120
      %v1343 = vsel %vm1341, %v1256, 0
      %1345 = vmatprep.subr.mxu0 %v1288
      %1346 = vmatpush1.msra.mxu0 %v1287
      %1347 = vmatprep.subr.mxu0 %v1286
      %1348 = vmatpush1.msra.mxu0 %v1285
      %1349 = vmatprep.subr.mxu0 %v1284
      %1350 = vmatpush1.msra.mxu0 %v1283
      %1351 = vmatprep.subr.mxu0 %v1282
      %1352 = vmatpush1.msra.mxu0 %v1281
      %1353 = vmatprep.subr.mxu0 %v1280
      %1354 = vmatpush1.msra.mxu0 %v1279
      %1355 = vmatprep.subr.mxu0 %v1278
      %1356 = vmatpush1.msra.mxu0 %v1277
      %1357 = vmatprep.subr.mxu0 %v1276
      %1358 = vmatpush1.msra.mxu0 %v1275
      %1359 = vmatprep.subr.mxu0 %v1274
      %1360 = vmatpush1.msra.mxu0 %v1273
      %1361 = vmatprep.subr.mxu0 %v1272
      %1362 = vmatpush1.msra.mxu0 %v1271
      %1363 = vmatprep.subr.mxu0 %v1270
      %1364 = vmatpush1.msra.mxu0 %v1269
      %1365 = vmatprep.subr.mxu0 %v1268
      %1366 = vmatpush1.msra.mxu0 %v1267
      %1367 = vmatprep.subr.mxu0 %v1266
      %1368 = vmatpush1.msra.mxu0 %v1265
      %1369 = vmatprep.subr.mxu0 %v1264
      %1370 = vmatpush1.msra.mxu0 %v1263
      %1371 = vmatprep.subr.mxu0 %v1262
      %1372 = vmatpush1.msra.mxu0 %v1261
      %1373 = vmatprep.subr.mxu0 %v1260
      %1374 = vmatpush1.msra.mxu0 %v1259
      %1375 = vmatprep.subr.mxu0 %v1258
      %1376 = vmatpush1.msra.mxu0 %v1257
      %1377 = vmatprep.subr.mxu0 %v1320
      %1378 = vmatpush2.msra.mxu0 %v1319
      %1379 = vmatprep.subr.mxu0 %v1318
      %1380 = vmatpush2.msra.mxu0 %v1317
      %1381 = vmatprep.subr.mxu0 %v1316
      %1382 = vmatpush2.msra.mxu0 %v1315
      %1383 = vmatprep.subr.mxu0 %v1314
      %1384 = vmatpush2.msra.mxu0 %v1313
      %1385 = vmatprep.subr.mxu0 %v1312
      %1386 = vmatpush2.msra.mxu0 %v1311
      %1387 = vmatprep.subr.mxu0 %v1310
      %1388 = vmatpush2.msra.mxu0 %v1309
      %1389 = vmatprep.subr.mxu0 %v1308
      %1390 = vmatpush2.msra.mxu0 %v1307
      %1391 = vmatprep.subr.mxu0 %v1306
      %1392 = vmatpush2.msra.mxu0 %v1305
      %1393 = vmatprep.subr.mxu0 %v1304
      %1394 = vmatpush2.msra.mxu0 %v1303
      %1395 = vmatprep.subr.mxu0 %v1302
      %1396 = vmatpush2.msra.mxu0 %v1301
      %1397 = vmatprep.subr.mxu0 %v1300
      %1398 = vmatpush2.msra.mxu0 %v1299
      %1399 = vmatprep.subr.mxu0 %v1298
      %1400 = vmatpush2.msra.mxu0 %v1297
      %1401 = vmatprep.subr.mxu0 %v1296
      %1402 = vmatpush2.msra.mxu0 %v1295
      %1403 = vmatprep.subr.mxu0 %v1294
      %1404 = vmatpush2.msra.mxu0 %v1293
      %1405 = vmatprep.subr.mxu0 %v1292
      %1406 = vmatpush2.msra.mxu0 %v1291
      %1407 = vmatprep.subr.mxu0 %v1290
      %1408 = vmatpush2.msra.mxu0 %v1289
      %1409 = vmatprep.mubr.f32.mxu0 %v1255
      %1410 = vmatmul.mubr.f32.gmra.mxu0 %v1254
      %v1411 = vpop.f32.mrf.mxu0
      %v1412 = vadd.f32 %v1334, %v1411
      %v1413 = vpop.f32.mrf.mxu0
      %v1414 = vadd.f32 %v1338, %v1413
      %1415 = vdwg.mxu0
      %1416 = vmatprep.subr.mxu0 0.0
      %1417 = vmatpush1.msra.mxu0 0.0
      %1418 = vmatprep.subr.mxu0 0.0
      %1419 = vmatpush1.msra.mxu0 0.0
      %1420 = vmatprep.subr.mxu0 0.0
      %1421 = vmatpush1.msra.mxu0 0.0
      %1422 = vmatprep.subr.mxu0 0.0
      %1423 = vmatpush1.msra.mxu0 0.0
      %1424 = vmatprep.subr.mxu0 0.0
      %1425 = vmatpush1.msra.mxu0 0.0
      %1426 = vmatprep.subr.mxu0 0.0
      %1427 = vmatpush1.msra.mxu0 0.0
      %1428 = vmatprep.subr.mxu0 0.0
      %1429 = vmatpush1.msra.mxu0 0.0
      %1430 = vmatprep.subr.mxu0 0.0
      %1431 = vmatpush1.msra.mxu0 0.0
      %1432 = vmatprep.subr.mxu0 0.0
      %1433 = vmatpush1.msra.mxu0 0.0
      %1434 = vmatprep.subr.mxu0 0.0
      %1435 = vmatpush1.msra.mxu0 0.0
      %1436 = vmatprep.subr.mxu0 0.0
      %1437 = vmatpush1.msra.mxu0 0.0
      %1438 = vmatprep.subr.mxu0 0.0
      %1439 = vmatpush1.msra.mxu0 0.0
      %1440 = vmatprep.subr.mxu0 %v1328
      %1441 = vmatpush1.msra.mxu0 %v1327
      %1442 = vmatprep.subr.mxu0 %v1326
      %1443 = vmatpush1.msra.mxu0 %v1325
      %1444 = vmatprep.subr.mxu0 %v1324
      %1445 = vmatpush1.msra.mxu0 %v1323
      %1446 = vmatprep.subr.mxu0 %v1322
      %1447 = vmatpush1.msra.mxu0 %v1321
      %1448 = vmatprep.subr.mxu0 0.0
      %1449 = vmatpush2.msra.mxu0 0.0
      %1450 = vmatprep.subr.mxu0 0.0
      %1451 = vmatpush2.msra.mxu0 0.0
      %1452 = vmatprep.subr.mxu0 0.0
      %1453 = vmatpush2.msra.mxu0 0.0
      %1454 = vmatprep.subr.mxu0 0.0
      %1455 = vmatpush2.msra.mxu0 0.0
      %1456 = vmatprep.subr.mxu0 0.0
      %1457 = vmatpush2.msra.mxu0 0.0
      %1458 = vmatprep.subr.mxu0 0.0
      %1459 = vmatpush2.msra.mxu0 0.0
      %1460 = vmatprep.subr.mxu0 0.0
      %1461 = vmatpush2.msra.mxu0 0.0
      %1462 = vmatprep.subr.mxu0 0.0
      %1463 = vmatpush2.msra.mxu0 0.0
      %1464 = vmatprep.subr.mxu0 0.0
      %1465 = vmatpush2.msra.mxu0 0.0
      %1466 = vmatprep.subr.mxu0 0.0
      %1467 = vmatpush2.msra.mxu0 0.0
      %1468 = vmatprep.subr.mxu0 0.0
      %1469 = vmatpush2.msra.mxu0 0.0
      %1470 = vmatprep.subr.mxu0 0.0
      %1471 = vmatpush2.msra.mxu0 0.0
      %1472 = vmatprep.subr.mxu0 0.0
      %1473 = vmatpush2.msra.mxu0 0.0
      %1474 = vmatprep.subr.mxu0 0.0
      %1475 = vmatpush2.msra.mxu0 0.0
      %1476 = vmatprep.subr.mxu0 0.0
      %1477 = vmatpush2.msra.mxu0 0.0
      %1478 = vmatprep.subr.mxu0 0.0
      %1479 = vmatpush2.msra.mxu0 0.0
      %1480 = vmatprep.mubr.f32.mxu0 0.0
      %1481 = vmatmul.mubr.f32.gmra.mxu0 %v1343
      %v1482 = vpop.f32.mrf.mxu0
      %v1483 = vadd.f32 %v1412, %v1482
      %v1484 = vpop.f32.mrf.mxu0
      %v1485 = vadd.f32 %v1414, %v1484
      %1486 = vdwg.mxu0
      %vm1487 = vcmp.gt.f32.partialorder %v1483, 0.0
      %vm1488 = vcmp.gt.f32.partialorder %v1485, 0.0
      %v1489 = vmul.f32 %v1483, 0.01
      %v1490 = vmul.f32 %v1485, 0.01
      %v1491 = vsel %vm1487, %v1483, %v1489
      %v1492 = vsel %vm1488, %v1485, %v1490
      %v1493 = vld [vmem:[%s13] sm:$0xff]
      %v1494 = vld [vmem:[%s13 + $0x8] sm:$0xff]
      %v1495 = vld [vmem:[%s13 + $0x10] sm:$0xff]
      %v1496 = vld [vmem:[%s13 + $0x18] sm:$0xff]
      %v1497 = vld [vmem:[%s13 + $0x20] sm:$0xff]
      %v1498 = vld [vmem:[%s13 + $0x28] sm:$0xff]
      %v1499 = vld [vmem:[%s13 + $0x30] sm:$0xff]
      %v1500 = vld [vmem:[%s13 + $0x38] sm:$0xff]
      %v1501 = vld [vmem:[%s13 + $0x40] sm:$0xff]
      %v1502 = vld [vmem:[%s13 + $0x48] sm:$0xff]
      %v1503 = vld [vmem:[%s13 + $0x50] sm:$0xff]
      %v1504 = vld [vmem:[%s13 + $0x58] sm:$0xff]
      %v1505 = vld [vmem:[%s13 + $0x60] sm:$0xff]
      %v1506 = vld [vmem:[%s13 + $0x68] sm:$0xff]
      %v1507 = vld [vmem:[%s13 + $0x70] sm:$0xff]
      %v1508 = vld [vmem:[%s13 + $0x78] sm:$0xff]
      %v1509 = vld [vmem:[%s13 + $0x80] sm:$0xff]
      %v1510 = vld [vmem:[%s13 + $0x88] sm:$0xff]
      %v1511 = vld [vmem:[%s13 + $0x90] sm:$0xff]
      %v1512 = vld [vmem:[%s13 + $0x98] sm:$0xff]
      %v1513 = vld [vmem:[%s13 + $0xa0] sm:$0xff]
      %v1514 = vld [vmem:[%s13 + $0xa8] sm:$0xff]
      %v1515 = vld [vmem:[%s13 + $0xb0] sm:$0xff]
      %v1516 = vld [vmem:[%s13 + $0xb8] sm:$0xff]
      %v1517 = vld [vmem:[%s13 + $0xc0] sm:$0xff]
      %v1518 = vld [vmem:[%s13 + $0xc8] sm:$0xff]
      %v1519 = vld [vmem:[%s13 + $0xd0] sm:$0xff]
      %v1520 = vld [vmem:[%s13 + $0xd8] sm:$0xff]
      %v1521 = vld [vmem:[%s13 + $0xe0] sm:$0xff]
      %v1522 = vld [vmem:[%s13 + $0xe8] sm:$0xff]
      %v1523 = vld [vmem:[%s13 + $0xf0] sm:$0xff]
      %v1524 = vld [vmem:[%s13 + $0xf8] sm:$0xff]
      %v1525 = vld [vmem:[%s13 + $0x100] sm:$0xff]
      %v1526 = vld [vmem:[%s13 + $0x108] sm:$0xff]
      %v1527 = vld [vmem:[%s13 + $0x110] sm:$0xff]
      %v1528 = vld [vmem:[%s13 + $0x118] sm:$0xff]
      %v1529 = vld [vmem:[%s13 + $0x120] sm:$0xff]
      %v1530 = vld [vmem:[%s13 + $0x128] sm:$0xff]
      %v1531 = vld [vmem:[%s13 + $0x130] sm:$0xff]
      %v1532 = vld [vmem:[%s13 + $0x138] sm:$0xff]
      %v1533 = vld [vmem:[%s13 + $0x140] sm:$0xff]
      %v1534 = vld [vmem:[%s13 + $0x148] sm:$0xff]
      %v1535 = vld [vmem:[%s13 + $0x150] sm:$0xff]
      %v1536 = vld [vmem:[%s13 + $0x158] sm:$0xff]
      %v1537 = vld [vmem:[%s13 + $0x160] sm:$0xff]
      %v1538 = vld [vmem:[%s13 + $0x168] sm:$0xff]
      %v1539 = vld [vmem:[%s13 + $0x170] sm:$0xff]
      %v1540 = vld [vmem:[%s13 + $0x178] sm:$0xff]
      %v1541 = vld [vmem:[%s13 + $0x180] sm:$0xff]
      %v1542 = vld [vmem:[%s13 + $0x188] sm:$0xff]
      %v1543 = vld [vmem:[%s13 + $0x190] sm:$0xff]
      %v1544 = vld [vmem:[%s13 + $0x198] sm:$0xff]
      %v1545 = vld [vmem:[%s13 + $0x1a0] sm:$0xff]
      %v1546 = vld [vmem:[%s13 + $0x1a8] sm:$0xff]
      %v1547 = vld [vmem:[%s13 + $0x1b0] sm:$0xff]
      %v1548 = vld [vmem:[%s13 + $0x1b8] sm:$0xff]
      %v1549 = vld [vmem:[%s13 + $0x1c0] sm:$0xff]
      %v1550 = vld [vmem:[%s13 + $0x1c8] sm:$0xff]
      %v1551 = vld [vmem:[%s13 + $0x1d0] sm:$0xff]
      %v1552 = vld [vmem:[%s13 + $0x1d8] sm:$0xff]
      %v1553 = vld [vmem:[%s13 + $0x1e0] sm:$0xff]
      %v1554 = vld [vmem:[%s13 + $0x1e8] sm:$0xff]
      %v1555 = vld [vmem:[%s13 + $0x1f0] sm:$0xff]
      %v1556 = vld [vmem:[%s13 + $0x1f8] sm:$0xff]
      %v1557 = vld [vmem:[%s15] sm:$0x3]
      %v1559 = vlaneseq
      %v1560 = vshrl.u32 %v1559, 7
      %v1561 = vsub.s32 0, %v1560
      %v1562 = vrot.slane %v1557, %v1561
      %v1563 = vlaneseq
      %v1564 = vshrl.u32 %v1563, 7
      %v1565 = vsub.s32 1, %v1564
      %v1566 = vrot.slane %v1557, %v1565
      %1569 = vmatprep.subr.mxu0 %v1524
      %1570 = vmatpush1.msra.mxu0 %v1523
      %1571 = vmatprep.subr.mxu0 %v1522
      %1572 = vmatpush1.msra.mxu0 %v1521
      %1573 = vmatprep.subr.mxu0 %v1520
      %1574 = vmatpush1.msra.mxu0 %v1519
      %1575 = vmatprep.subr.mxu0 %v1518
      %1576 = vmatpush1.msra.mxu0 %v1517
      %1577 = vmatprep.subr.mxu0 %v1516
      %1578 = vmatpush1.msra.mxu0 %v1515
      %1579 = vmatprep.subr.mxu0 %v1514
      %1580 = vmatpush1.msra.mxu0 %v1513
      %1581 = vmatprep.subr.mxu0 %v1512
      %1582 = vmatpush1.msra.mxu0 %v1511
      %1583 = vmatprep.subr.mxu0 %v1510
      %1584 = vmatpush1.msra.mxu0 %v1509
      %1585 = vmatprep.subr.mxu0 %v1508
      %1586 = vmatpush1.msra.mxu0 %v1507
      %1587 = vmatprep.subr.mxu0 %v1506
      %1588 = vmatpush1.msra.mxu0 %v1505
      %1589 = vmatprep.subr.mxu0 %v1504
      %1590 = vmatpush1.msra.mxu0 %v1503
      %1591 = vmatprep.subr.mxu0 %v1502
      %1592 = vmatpush1.msra.mxu0 %v1501
      %1593 = vmatprep.subr.mxu0 %v1500
      %1594 = vmatpush1.msra.mxu0 %v1499
      %1595 = vmatprep.subr.mxu0 %v1498
      %1596 = vmatpush1.msra.mxu0 %v1497
      %1597 = vmatprep.subr.mxu0 %v1496
      %1598 = vmatpush1.msra.mxu0 %v1495
      %1599 = vmatprep.subr.mxu0 %v1494
      %1600 = vmatpush1.msra.mxu0 %v1493
      %1601 = vmatprep.subr.mxu0 %v1556
      %1602 = vmatpush2.msra.mxu0 %v1555
      %1603 = vmatprep.subr.mxu0 %v1554
      %1604 = vmatpush2.msra.mxu0 %v1553
      %1605 = vmatprep.subr.mxu0 %v1552
      %1606 = vmatpush2.msra.mxu0 %v1551
      %1607 = vmatprep.subr.mxu0 %v1550
      %1608 = vmatpush2.msra.mxu0 %v1549
      %1609 = vmatprep.subr.mxu0 %v1548
      %1610 = vmatpush2.msra.mxu0 %v1547
      %1611 = vmatprep.subr.mxu0 %v1546
      %1612 = vmatpush2.msra.mxu0 %v1545
      %1613 = vmatprep.subr.mxu0 %v1544
      %1614 = vmatpush2.msra.mxu0 %v1543
      %1615 = vmatprep.subr.mxu0 %v1542
      %1616 = vmatpush2.msra.mxu0 %v1541
      %1617 = vmatprep.subr.mxu0 %v1540
      %1618 = vmatpush2.msra.mxu0 %v1539
      %1619 = vmatprep.subr.mxu0 %v1538
      %1620 = vmatpush2.msra.mxu0 %v1537
      %1621 = vmatprep.subr.mxu0 %v1536
      %1622 = vmatpush2.msra.mxu0 %v1535
      %1623 = vmatprep.subr.mxu0 %v1534
      %1624 = vmatpush2.msra.mxu0 %v1533
      %1625 = vmatprep.subr.mxu0 %v1532
      %1626 = vmatpush2.msra.mxu0 %v1531
      %1627 = vmatprep.subr.mxu0 %v1530
      %1628 = vmatpush2.msra.mxu0 %v1529
      %1629 = vmatprep.subr.mxu0 %v1528
      %1630 = vmatpush2.msra.mxu0 %v1527
      %1631 = vmatprep.subr.mxu0 %v1526
      %1632 = vmatpush2.msra.mxu0 %v1525
      %1633 = vmatprep.mubr.f32.mxu0 %v1492
      %1634 = vmatmul.mubr.f32.gmra.mxu0 %v1491
      %v1635 = vpop.f32.mrf.mxu0
      %v1636 = vadd.f32 %v1562, %v1635
      %v1637 = vpop.f32.mrf.mxu0
      %v1638 = vadd.f32 %v1566, %v1637
      %1639 = vdwg.mxu0
      %vm1640 = vcmp.gt.f32.partialorder %v1636, 0.0
      %vm1641 = vcmp.gt.f32.partialorder %v1638, 0.0
      %v1642 = vmul.f32 %v1636, 0.01
      %v1643 = vmul.f32 %v1638, 0.01
      %v1644 = vsel %vm1640, %v1636, %v1642
      %v1645 = vsel %vm1641, %v1638, %v1643
      %v1646 = vld [vmem:[%s17] sm:$0xff]
      %v1647 = vld [vmem:[%s17 + $0x8] sm:$0xff]
      %v1648 = vld [vmem:[%s17 + $0x10] sm:$0xff]
      %v1649 = vld [vmem:[%s17 + $0x18] sm:$0xff]
      %v1650 = vld [vmem:[%s17 + $0x20] sm:$0xff]
      %v1651 = vld [vmem:[%s17 + $0x28] sm:$0xff]
      %v1652 = vld [vmem:[%s17 + $0x30] sm:$0xff]
      %v1653 = vld [vmem:[%s17 + $0x38] sm:$0xff]
      %v1654 = vld [vmem:[%s17 + $0x40] sm:$0xff]
      %v1655 = vld [vmem:[%s17 + $0x48] sm:$0xff]
      %v1656 = vld [vmem:[%s17 + $0x50] sm:$0xff]
      %v1657 = vld [vmem:[%s17 + $0x58] sm:$0xff]
      %v1658 = vld [vmem:[%s17 + $0x60] sm:$0xff]
      %v1659 = vld [vmem:[%s17 + $0x68] sm:$0xff]
      %v1660 = vld [vmem:[%s17 + $0x70] sm:$0xff]
      %v1661 = vld [vmem:[%s17 + $0x78] sm:$0xff]
      %v1662 = vld [vmem:[%s17 + $0x80] sm:$0xff]
      %v1663 = vld [vmem:[%s17 + $0x88] sm:$0xff]
      %v1664 = vld [vmem:[%s17 + $0x90] sm:$0xff]
      %v1665 = vld [vmem:[%s17 + $0x98] sm:$0xff]
      %v1666 = vld [vmem:[%s17 + $0xa0] sm:$0xff]
      %v1667 = vld [vmem:[%s17 + $0xa8] sm:$0xff]
      %v1668 = vld [vmem:[%s17 + $0xb0] sm:$0xff]
      %v1669 = vld [vmem:[%s17 + $0xb8] sm:$0xff]
      %v1670 = vld [vmem:[%s17 + $0xc0] sm:$0xff]
      %v1671 = vld [vmem:[%s17 + $0xc8] sm:$0xff]
      %v1672 = vld [vmem:[%s17 + $0xd0] sm:$0xff]
      %v1673 = vld [vmem:[%s17 + $0xd8] sm:$0xff]
      %v1674 = vld [vmem:[%s17 + $0xe0] sm:$0xff]
      %v1675 = vld [vmem:[%s17 + $0xe8] sm:$0xff]
      %v1676 = vld [vmem:[%s17 + $0xf0] sm:$0xff]
      %v1677 = vld [vmem:[%s17 + $0xf8] sm:$0xff]
      %v1678 = vld [vmem:[%s17 + $0x100] sm:$0xff]
      %v1679 = vld [vmem:[%s17 + $0x108] sm:$0xff]
      %v1680 = vld [vmem:[%s17 + $0x110] sm:$0xff]
      %v1681 = vld [vmem:[%s17 + $0x118] sm:$0xff]
      %v1682 = vld [vmem:[%s17 + $0x120] sm:$0xff]
      %v1683 = vld [vmem:[%s17 + $0x128] sm:$0xff]
      %v1684 = vld [vmem:[%s17 + $0x130] sm:$0xff]
      %v1685 = vld [vmem:[%s17 + $0x138] sm:$0xff]
      %v1686 = vld [vmem:[%s17 + $0x140] sm:$0xff]
      %v1687 = vld [vmem:[%s17 + $0x148] sm:$0xff]
      %v1688 = vld [vmem:[%s17 + $0x150] sm:$0xff]
      %v1689 = vld [vmem:[%s17 + $0x158] sm:$0xff]
      %v1690 = vld [vmem:[%s17 + $0x160] sm:$0xff]
      %v1691 = vld [vmem:[%s17 + $0x168] sm:$0xff]
      %v1692 = vld [vmem:[%s17 + $0x170] sm:$0xff]
      %v1693 = vld [vmem:[%s17 + $0x178] sm:$0xff]
      %v1694 = vld [vmem:[%s17 + $0x180] sm:$0xff]
      %v1695 = vld [vmem:[%s17 + $0x188] sm:$0xff]
      %v1696 = vld [vmem:[%s17 + $0x190] sm:$0xff]
      %v1697 = vld [vmem:[%s17 + $0x198] sm:$0xff]
      %v1698 = vld [vmem:[%s17 + $0x1a0] sm:$0xff]
      %v1699 = vld [vmem:[%s17 + $0x1a8] sm:$0xff]
      %v1700 = vld [vmem:[%s17 + $0x1b0] sm:$0xff]
      %v1701 = vld [vmem:[%s17 + $0x1b8] sm:$0xff]
      %v1702 = vld [vmem:[%s19] sm:$0x3]
      %v1704 = vlaneseq
      %v1705 = vshrl.u32 %v1704, 7
      %v1706 = vsub.s32 0, %v1705
      %v1707 = vrot.slane %v1702, %v1706
      %v1708 = vlaneseq
      %v1709 = vshrl.u32 %v1708, 7
      %v1710 = vsub.s32 1, %v1709
      %v1711 = vrot.slane %v1702, %v1710
      %vm1714 = vcmask 785408
      %v1716 = vsel %vm1714, %v1645, 0
      %1718 = vmatprep.subr.mxu0 %v1677
      %1719 = vmatpush1.msra.mxu0 %v1676
      %1720 = vmatprep.subr.mxu0 %v1675
      %1721 = vmatpush1.msra.mxu0 %v1674
      %1722 = vmatprep.subr.mxu0 %v1673
      %1723 = vmatpush1.msra.mxu0 %v1672
      %1724 = vmatprep.subr.mxu0 %v1671
      %1725 = vmatpush1.msra.mxu0 %v1670
      %1726 = vmatprep.subr.mxu0 %v1669
      %1727 = vmatpush1.msra.mxu0 %v1668
      %1728 = vmatprep.subr.mxu0 %v1667
      %1729 = vmatpush1.msra.mxu0 %v1666
      %1730 = vmatprep.subr.mxu0 %v1665
      %1731 = vmatpush1.msra.mxu0 %v1664
      %1732 = vmatprep.subr.mxu0 %v1663
      %1733 = vmatpush1.msra.mxu0 %v1662
      %1734 = vmatprep.subr.mxu0 %v1661
      %1735 = vmatpush1.msra.mxu0 %v1660
      %1736 = vmatprep.subr.mxu0 %v1659
      %1737 = vmatpush1.msra.mxu0 %v1658
      %1738 = vmatprep.subr.mxu0 %v1657
      %1739 = vmatpush1.msra.mxu0 %v1656
      %1740 = vmatprep.subr.mxu0 %v1655
      %1741 = vmatpush1.msra.mxu0 %v1654
      %1742 = vmatprep.subr.mxu0 %v1653
      %1743 = vmatpush1.msra.mxu0 %v1652
      %1744 = vmatprep.subr.mxu0 %v1651
      %1745 = vmatpush1.msra.mxu0 %v1650
      %1746 = vmatprep.subr.mxu0 %v1649
      %1747 = vmatpush1.msra.mxu0 %v1648
      %1748 = vmatprep.subr.mxu0 %v1647
      %1749 = vmatpush1.msra.mxu0 %v1646
      %1750 = vmatprep.subr.mxu0 0.0
      %1751 = vmatpush2.msra.mxu0 0.0
      %1752 = vmatprep.subr.mxu0 0.0
      %1753 = vmatpush2.msra.mxu0 0.0
      %1754 = vmatprep.subr.mxu0 0.0
      %1755 = vmatpush2.msra.mxu0 0.0
      %1756 = vmatprep.subr.mxu0 0.0
      %1757 = vmatpush2.msra.mxu0 0.0
      %1758 = vmatprep.subr.mxu0 %v1701
      %1759 = vmatpush2.msra.mxu0 %v1700
      %1760 = vmatprep.subr.mxu0 %v1699
      %1761 = vmatpush2.msra.mxu0 %v1698
      %1762 = vmatprep.subr.mxu0 %v1697
      %1763 = vmatpush2.msra.mxu0 %v1696
      %1764 = vmatprep.subr.mxu0 %v1695
      %1765 = vmatpush2.msra.mxu0 %v1694
      %1766 = vmatprep.subr.mxu0 %v1693
      %1767 = vmatpush2.msra.mxu0 %v1692
      %1768 = vmatprep.subr.mxu0 %v1691
      %1769 = vmatpush2.msra.mxu0 %v1690
      %1770 = vmatprep.subr.mxu0 %v1689
      %1771 = vmatpush2.msra.mxu0 %v1688
      %1772 = vmatprep.subr.mxu0 %v1687
      %1773 = vmatpush2.msra.mxu0 %v1686
      %1774 = vmatprep.subr.mxu0 %v1685
      %1775 = vmatpush2.msra.mxu0 %v1684
      %1776 = vmatprep.subr.mxu0 %v1683
      %1777 = vmatpush2.msra.mxu0 %v1682
      %1778 = vmatprep.subr.mxu0 %v1681
      %1779 = vmatpush2.msra.mxu0 %v1680
      %1780 = vmatprep.subr.mxu0 %v1679
      %1781 = vmatpush2.msra.mxu0 %v1678
      %1782 = vmatprep.mubr.f32.mxu0 %v1716
      %1783 = vmatmul.mubr.f32.gmra.mxu0 %v1644
      %v1784 = vpop.f32.mrf.mxu0
      %v1785 = vadd.f32 %v1707, %v1784
      %v1786 = vpop.f32.mrf.mxu0
      %v1787 = vadd.f32 %v1711, %v1786
      %1788 = vdwg.mxu0
      %vm1789 = vcmp.gt.f32.partialorder %v1785, 0.0
      %vm1790 = vcmp.gt.f32.partialorder %v1787, 0.0
      %v1791 = vmul.f32 %v1785, 0.01
      %v1792 = vmul.f32 %v1787, 0.01
      %v1793 = vsel %vm1789, %v1785, %v1791
      %v1794 = vsel %vm1790, %v1787, %v1792
      %v1795 = vld [vmem:[%s21] sm:$0xff]
      %v1796 = vld [vmem:[%s21 + $0x8] sm:$0xff]
      %v1797 = vld [vmem:[%s21 + $0x10] sm:$0xff]
      %v1798 = vld [vmem:[%s21 + $0x18] sm:$0xff]
      %v1799 = vld [vmem:[%s21 + $0x20] sm:$0xff]
      %v1800 = vld [vmem:[%s21 + $0x28] sm:$0xff]
      %v1801 = vld [vmem:[%s21 + $0x30] sm:$0xff]
      %v1802 = vld [vmem:[%s21 + $0x38] sm:$0xff]
      %v1803 = vld [vmem:[%s21 + $0x40] sm:$0xff]
      %v1804 = vld [vmem:[%s21 + $0x48] sm:$0xff]
      %v1805 = vld [vmem:[%s21 + $0x50] sm:$0xff]
      %v1806 = vld [vmem:[%s21 + $0x58] sm:$0xff]
      %v1807 = vld [vmem:[%s21 + $0x60] sm:$0xff]
      %v1808 = vld [vmem:[%s21 + $0x68] sm:$0xff]
      %v1809 = vld [vmem:[%s21 + $0x70] sm:$0xff]
      %v1810 = vld [vmem:[%s21 + $0x78] sm:$0xff]
      %v1811 = vld [vmem:[%s21 + $0x80] sm:$0xff]
      %v1812 = vld [vmem:[%s21 + $0x88] sm:$0xff]
      %v1813 = vld [vmem:[%s21 + $0x90] sm:$0xff]
      %v1814 = vld [vmem:[%s21 + $0x98] sm:$0xff]
      %v1815 = vld [vmem:[%s21 + $0xa0] sm:$0xff]
      %v1816 = vld [vmem:[%s21 + $0xa8] sm:$0xff]
      %v1817 = vld [vmem:[%s21 + $0xb0] sm:$0xff]
      %v1818 = vld [vmem:[%s21 + $0xb8] sm:$0xff]
      %v1819 = vld [vmem:[%s21 + $0xc0] sm:$0xff]
      %v1820 = vld [vmem:[%s21 + $0xc8] sm:$0xff]
      %v1821 = vld [vmem:[%s21 + $0xd0] sm:$0xff]
      %v1822 = vld [vmem:[%s21 + $0xd8] sm:$0xff]
      %v1823 = vld [vmem:[%s21 + $0xe0] sm:$0xff]
      %v1824 = vld [vmem:[%s21 + $0xe8] sm:$0xff]
      %v1825 = vld [vmem:[%s21 + $0xf0] sm:$0xff]
      %v1826 = vld [vmem:[%s21 + $0xf8] sm:$0xff]
      %v1827 = vld [vmem:[%s21 + $0x100] sm:$0xff]
      %v1828 = vld [vmem:[%s21 + $0x108] sm:$0xff]
      %v1829 = vld [vmem:[%s21 + $0x110] sm:$0xff]
      %v1830 = vld [vmem:[%s21 + $0x118] sm:$0xff]
      %v1831 = vld [vmem:[%s21 + $0x120] sm:$0xff]
      %v1832 = vld [vmem:[%s21 + $0x128] sm:$0xff]
      %v1833 = vld [vmem:[%s21 + $0x130] sm:$0xff]
      %v1834 = vld [vmem:[%s21 + $0x138] sm:$0xff]
      %v1835 = vld [vmem:[%s21 + $0x140] sm:$0xff]
      %v1836 = vld [vmem:[%s21 + $0x148] sm:$0xff]
      %v1837 = vld [vmem:[%s21 + $0x150] sm:$0xff]
      %v1838 = vld [vmem:[%s21 + $0x158] sm:$0xff]
      %v1839 = vld [vmem:[%s21 + $0x160] sm:$0xff]
      %v1840 = vld [vmem:[%s21 + $0x168] sm:$0xff]
      %v1841 = vld [vmem:[%s21 + $0x170] sm:$0xff]
      %v1842 = vld [vmem:[%s21 + $0x178] sm:$0xff]
      %v1843 = vld [vmem:[%s23] sm:$0x3]
      %v1845 = vlaneseq
      %v1846 = vshrl.u32 %v1845, 7
      %v1847 = vsub.s32 0, %v1846
      %v1848 = vrot.slane %v1843, %v1847
      %v1849 = vlaneseq
      %v1850 = vshrl.u32 %v1849, 7
      %v1851 = vsub.s32 1, %v1850
      %v1852 = vrot.slane %v1843, %v1851
      %vm1855 = vcmask 523264
      %v1857 = vsel %vm1855, %v1794, 0
      %1859 = vmatprep.subr.mxu0 %v1826
      %1860 = vmatpush1.msra.mxu0 %v1825
      %1861 = vmatprep.subr.mxu0 %v1824
      %1862 = vmatpush1.msra.mxu0 %v1823
      %1863 = vmatprep.subr.mxu0 %v1822
      %1864 = vmatpush1.msra.mxu0 %v1821
      %1865 = vmatprep.subr.mxu0 %v1820
      %1866 = vmatpush1.msra.mxu0 %v1819
      %1867 = vmatprep.subr.mxu0 %v1818
      %1868 = vmatpush1.msra.mxu0 %v1817
      %1869 = vmatprep.subr.mxu0 %v1816
      %1870 = vmatpush1.msra.mxu0 %v1815
      %1871 = vmatprep.subr.mxu0 %v1814
      %1872 = vmatpush1.msra.mxu0 %v1813
      %1873 = vmatprep.subr.mxu0 %v1812
      %1874 = vmatpush1.msra.mxu0 %v1811
      %1875 = vmatprep.subr.mxu0 %v1810
      %1876 = vmatpush1.msra.mxu0 %v1809
      %1877 = vmatprep.subr.mxu0 %v1808
      %1878 = vmatpush1.msra.mxu0 %v1807
      %1879 = vmatprep.subr.mxu0 %v1806
      %1880 = vmatpush1.msra.mxu0 %v1805
      %1881 = vmatprep.subr.mxu0 %v1804
      %1882 = vmatpush1.msra.mxu0 %v1803
      %1883 = vmatprep.subr.mxu0 %v1802
      %1884 = vmatpush1.msra.mxu0 %v1801
      %1885 = vmatprep.subr.mxu0 %v1800
      %1886 = vmatpush1.msra.mxu0 %v1799
      %1887 = vmatprep.subr.mxu0 %v1798
      %1888 = vmatpush1.msra.mxu0 %v1797
      %1889 = vmatprep.subr.mxu0 %v1796
      %1890 = vmatpush1.msra.mxu0 %v1795
      %1891 = vmatprep.subr.mxu0 0.0
      %1892 = vmatpush2.msra.mxu0 0.0
      %1893 = vmatprep.subr.mxu0 0.0
      %1894 = vmatpush2.msra.mxu0 0.0
      %1895 = vmatprep.subr.mxu0 0.0
      %1896 = vmatpush2.msra.mxu0 0.0
      %1897 = vmatprep.subr.mxu0 0.0
      %1898 = vmatpush2.msra.mxu0 0.0
      %1899 = vmatprep.subr.mxu0 0.0
      %1900 = vmatpush2.msra.mxu0 0.0
      %1901 = vmatprep.subr.mxu0 0.0
      %1902 = vmatpush2.msra.mxu0 0.0
      %1903 = vmatprep.subr.mxu0 0.0
      %1904 = vmatpush2.msra.mxu0 0.0
      %1905 = vmatprep.subr.mxu0 0.0
      %1906 = vmatpush2.msra.mxu0 0.0
      %1907 = vmatprep.subr.mxu0 %v1842
      %1908 = vmatpush2.msra.mxu0 %v1841
      %1909 = vmatprep.subr.mxu0 %v1840
      %1910 = vmatpush2.msra.mxu0 %v1839
      %1911 = vmatprep.subr.mxu0 %v1838
      %1912 = vmatpush2.msra.mxu0 %v1837
      %1913 = vmatprep.subr.mxu0 %v1836
      %1914 = vmatpush2.msra.mxu0 %v1835
      %1915 = vmatprep.subr.mxu0 %v1834
      %1916 = vmatpush2.msra.mxu0 %v1833
      %1917 = vmatprep.subr.mxu0 %v1832
      %1918 = vmatpush2.msra.mxu0 %v1831
      %1919 = vmatprep.subr.mxu0 %v1830
      %1920 = vmatpush2.msra.mxu0 %v1829
      %1921 = vmatprep.subr.mxu0 %v1828
      %1922 = vmatpush2.msra.mxu0 %v1827
      %1923 = vmatprep.mubr.f32.mxu0 %v1857
      %1924 = vmatmul.mubr.f32.gmra.mxu0 %v1793
      %v1925 = vpop.f32.mrf.mxu0
      %v1926 = vadd.f32 %v1848, %v1925
      %v1927 = vpop.f32.mrf.mxu0
      %v1928 = vadd.f32 %v1852, %v1927
      %1929 = vdwg.mxu0
      %vm1930 = vcmp.gt.f32.partialorder %v1926, 0.0
      %vm1931 = vcmp.gt.f32.partialorder %v1928, 0.0
      %v1932 = vmul.f32 %v1926, 0.01
      %v1933 = vmul.f32 %v1928, 0.01
      %v1934 = vsel %vm1930, %v1926, %v1932
      %v1935 = vsel %vm1931, %v1928, %v1933
      %v1936 = vld [vmem:[%s25] sm:$0xff]
      %v1937 = vld [vmem:[%s25 + $0x8] sm:$0xff]
      %v1938 = vld [vmem:[%s25 + $0x10] sm:$0xff]
      %v1939 = vld [vmem:[%s25 + $0x18] sm:$0xff]
      %v1940 = vld [vmem:[%s25 + $0x20] sm:$0xff]
      %v1941 = vld [vmem:[%s25 + $0x28] sm:$0xff]
      %v1942 = vld [vmem:[%s25 + $0x30] sm:$0xff]
      %v1943 = vld [vmem:[%s25 + $0x38] sm:$0xff]
      %v1944 = vld [vmem:[%s25 + $0x40] sm:$0xff]
      %v1945 = vld [vmem:[%s25 + $0x48] sm:$0xff]
      %v1946 = vld [vmem:[%s25 + $0x50] sm:$0xff]
      %v1947 = vld [vmem:[%s25 + $0x58] sm:$0xff]
      %v1948 = vld [vmem:[%s25 + $0x60] sm:$0xff]
      %v1949 = vld [vmem:[%s25 + $0x68] sm:$0xff]
      %v1950 = vld [vmem:[%s25 + $0x70] sm:$0xff]
      %v1951 = vld [vmem:[%s25 + $0x78] sm:$0xff]
      %v1952 = vld [vmem:[%s25 + $0x80] sm:$0xff]
      %v1953 = vld [vmem:[%s25 + $0x88] sm:$0xff]
      %v1954 = vld [vmem:[%s25 + $0x90] sm:$0xff]
      %v1955 = vld [vmem:[%s25 + $0x98] sm:$0xff]
      %v1956 = vld [vmem:[%s25 + $0xa0] sm:$0xff]
      %v1957 = vld [vmem:[%s25 + $0xa8] sm:$0xff]
      %v1958 = vld [vmem:[%s25 + $0xb0] sm:$0xff]
      %v1959 = vld [vmem:[%s25 + $0xb8] sm:$0xff]
      %v1960 = vld [vmem:[%s25 + $0xc0] sm:$0xff]
      %v1961 = vld [vmem:[%s25 + $0xc8] sm:$0xff]
      %v1962 = vld [vmem:[%s25 + $0xd0] sm:$0xff]
      %v1963 = vld [vmem:[%s25 + $0xd8] sm:$0xff]
      %v1964 = vld [vmem:[%s25 + $0xe0] sm:$0xff]
      %v1965 = vld [vmem:[%s25 + $0xe8] sm:$0xff]
      %v1966 = vld [vmem:[%s25 + $0xf0] sm:$0xff]
      %v1967 = vld [vmem:[%s25 + $0xf8] sm:$0xff]
      %v1968 = vld [vmem:[%s25 + $0x100] sm:$0xff]
      %v1969 = vld [vmem:[%s25 + $0x108] sm:$0xff]
      %v1970 = vld [vmem:[%s25 + $0x110] sm:$0xff]
      %v1971 = vld [vmem:[%s25 + $0x118] sm:$0xff]
      %v1972 = vld [vmem:[%s25 + $0x120] sm:$0xff]
      %v1973 = vld [vmem:[%s25 + $0x128] sm:$0xff]
      %v1974 = vld [vmem:[%s25 + $0x130] sm:$0xff]
      %v1975 = vld [vmem:[%s25 + $0x138] sm:$0xff]
      %v1976 = vld [vmem:[%s27] sm:$0x3]
      %v1978 = vlaneseq
      %v1979 = vshrl.u32 %v1978, 7
      %v1980 = vsub.s32 0, %v1979
      %v1981 = vrot.slane %v1976, %v1980
      %v1982 = vlaneseq
      %v1983 = vshrl.u32 %v1982, 7
      %v1984 = vsub.s32 1, %v1983
      %v1985 = vrot.slane %v1976, %v1984
      %v1989 = vsel %vm1341, %v1935, 0
      %1991 = vmatprep.subr.mxu0 %v1967
      %1992 = vmatpush1.msra.mxu0 %v1966
      %1993 = vmatprep.subr.mxu0 %v1965
      %1994 = vmatpush1.msra.mxu0 %v1964
      %1995 = vmatprep.subr.mxu0 %v1963
      %1996 = vmatpush1.msra.mxu0 %v1962
      %1997 = vmatprep.subr.mxu0 %v1961
      %1998 = vmatpush1.msra.mxu0 %v1960
      %1999 = vmatprep.subr.mxu0 %v1959
      %2000 = vmatpush1.msra.mxu0 %v1958
      %2001 = vmatprep.subr.mxu0 %v1957
      %2002 = vmatpush1.msra.mxu0 %v1956
      %2003 = vmatprep.subr.mxu0 %v1955
      %2004 = vmatpush1.msra.mxu0 %v1954
      %2005 = vmatprep.subr.mxu0 %v1953
      %2006 = vmatpush1.msra.mxu0 %v1952
      %2007 = vmatprep.subr.mxu0 %v1951
      %2008 = vmatpush1.msra.mxu0 %v1950
      %2009 = vmatprep.subr.mxu0 %v1949
      %2010 = vmatpush1.msra.mxu0 %v1948
      %2011 = vmatprep.subr.mxu0 %v1947
      %2012 = vmatpush1.msra.mxu0 %v1946
      %2013 = vmatprep.subr.mxu0 %v1945
      %2014 = vmatpush1.msra.mxu0 %v1944
      %2015 = vmatprep.subr.mxu0 %v1943
      %2016 = vmatpush1.msra.mxu0 %v1942
      %2017 = vmatprep.subr.mxu0 %v1941
      %2018 = vmatpush1.msra.mxu0 %v1940
      %2019 = vmatprep.subr.mxu0 %v1939
      %2020 = vmatpush1.msra.mxu0 %v1938
      %2021 = vmatprep.subr.mxu0 %v1937
      %2022 = vmatpush1.msra.mxu0 %v1936
      %2023 = vmatprep.subr.mxu0 0.0
      %2024 = vmatpush2.msra.mxu0 0.0
      %2025 = vmatprep.subr.mxu0 0.0
      %2026 = vmatpush2.msra.mxu0 0.0
      %2027 = vmatprep.subr.mxu0 0.0
      %2028 = vmatpush2.msra.mxu0 0.0
      %2029 = vmatprep.subr.mxu0 0.0
      %2030 = vmatpush2.msra.mxu0 0.0
      %2031 = vmatprep.subr.mxu0 0.0
      %2032 = vmatpush2.msra.mxu0 0.0
      %2033 = vmatprep.subr.mxu0 0.0
      %2034 = vmatpush2.msra.mxu0 0.0
      %2035 = vmatprep.subr.mxu0 0.0
      %2036 = vmatpush2.msra.mxu0 0.0
      %2037 = vmatprep.subr.mxu0 0.0
      %2038 = vmatpush2.msra.mxu0 0.0
      %2039 = vmatprep.subr.mxu0 0.0
      %2040 = vmatpush2.msra.mxu0 0.0
      %2041 = vmatprep.subr.mxu0 0.0
      %2042 = vmatpush2.msra.mxu0 0.0
      %2043 = vmatprep.subr.mxu0 0.0
      %2044 = vmatpush2.msra.mxu0 0.0
      %2045 = vmatprep.subr.mxu0 0.0
      %2046 = vmatpush2.msra.mxu0 0.0
      %2047 = vmatprep.subr.mxu0 %v1975
      %2048 = vmatpush2.msra.mxu0 %v1974
      %2049 = vmatprep.subr.mxu0 %v1973
      %2050 = vmatpush2.msra.mxu0 %v1972
      %2051 = vmatprep.subr.mxu0 %v1971
      %2052 = vmatpush2.msra.mxu0 %v1970
      %2053 = vmatprep.subr.mxu0 %v1969
      %2054 = vmatpush2.msra.mxu0 %v1968
      %2055 = vmatprep.mubr.f32.mxu0 %v1989
      %2056 = vmatmul.mubr.f32.gmra.mxu0 %v1934
      %v2057 = vpop.f32.mrf.mxu0
      %v2058 = vadd.f32 %v1981, %v2057
      %v2059 = vpop.f32.mrf.mxu0
      %v2060 = vadd.f32 %v1985, %v2059
      %2061 = vdwg.mxu0
      %vm2062 = vcmp.gt.f32.partialorder %v2058, 0.0
      %vm2063 = vcmp.gt.f32.partialorder %v2060, 0.0
      %v2064 = vmul.f32 %v2058, 0.01
      %v2065 = vmul.f32 %v2060, 0.01
      %v2066 = vsel %vm2062, %v2058, %v2064
      %v2067 = vsel %vm2063, %v2060, %v2065
      %v2068 = vld [vmem:[%s29] sm:$0xff]
      %v2069 = vld [vmem:[%s29 + $0x8] sm:$0xff]
      %v2070 = vld [vmem:[%s29 + $0x10] sm:$0xff]
      %v2071 = vld [vmem:[%s29 + $0x18] sm:$0xff]
      %v2072 = vld [vmem:[%s29 + $0x20] sm:$0xff]
      %v2073 = vld [vmem:[%s29 + $0x28] sm:$0xff]
      %v2074 = vld [vmem:[%s29 + $0x30] sm:$0xff]
      %v2075 = vld [vmem:[%s29 + $0x38] sm:$0xff]
      %v2076 = vld [vmem:[%s29 + $0x40] sm:$0xff]
      %v2077 = vld [vmem:[%s29 + $0x48] sm:$0xff]
      %v2078 = vld [vmem:[%s29 + $0x50] sm:$0xff]
      %v2079 = vld [vmem:[%s29 + $0x58] sm:$0xff]
      %v2080 = vld [vmem:[%s29 + $0x60] sm:$0xff]
      %v2081 = vld [vmem:[%s29 + $0x68] sm:$0xff]
      %v2082 = vld [vmem:[%s29 + $0x70] sm:$0xff]
      %v2083 = vld [vmem:[%s29 + $0x78] sm:$0xff]
      %v2084 = vld [vmem:[%s29 + $0x80] sm:$0xff]
      %v2085 = vld [vmem:[%s29 + $0x88] sm:$0xff]
      %v2086 = vld [vmem:[%s29 + $0x90] sm:$0xff]
      %v2087 = vld [vmem:[%s29 + $0x98] sm:$0xff]
      %v2088 = vld [vmem:[%s29 + $0xa0] sm:$0xff]
      %v2089 = vld [vmem:[%s29 + $0xa8] sm:$0xff]
      %v2090 = vld [vmem:[%s29 + $0xb0] sm:$0xff]
      %v2091 = vld [vmem:[%s29 + $0xb8] sm:$0xff]
      %v2092 = vld [vmem:[%s29 + $0xc0] sm:$0xff]
      %v2093 = vld [vmem:[%s29 + $0xc8] sm:$0xff]
      %v2094 = vld [vmem:[%s29 + $0xd0] sm:$0xff]
      %v2095 = vld [vmem:[%s29 + $0xd8] sm:$0xff]
      %v2096 = vld [vmem:[%s29 + $0xe0] sm:$0xff]
      %v2097 = vld [vmem:[%s29 + $0xe8] sm:$0xff]
      %v2098 = vld [vmem:[%s29 + $0xf0] sm:$0xff]
      %v2099 = vld [vmem:[%s29 + $0xf8] sm:$0xff]
      %v2100 = vld [vmem:[%s31] sm:$0x1]
      %v2102 = vlaneseq
      %v2103 = vshrl.u32 %v2102, 7
      %v2104 = vsub.s32 0, %v2103
      %v2105 = vrot.slane %v2100, %v2104
      %2107 = vmatprep.subr.mxu0 0.0
      %2108 = vmatpush1.msra.mxu0 %v2083
      %2109 = vmatprep.subr.mxu0 0.0
      %2110 = vmatpush1.msra.mxu0 %v2082
      %2111 = vmatprep.subr.mxu0 0.0
      %2112 = vmatpush1.msra.mxu0 %v2081
      %2113 = vmatprep.subr.mxu0 0.0
      %2114 = vmatpush1.msra.mxu0 %v2080
      %2115 = vmatprep.subr.mxu0 0.0
      %2116 = vmatpush1.msra.mxu0 %v2079
      %2117 = vmatprep.subr.mxu0 0.0
      %2118 = vmatpush1.msra.mxu0 %v2078
      %2119 = vmatprep.subr.mxu0 0.0
      %2120 = vmatpush1.msra.mxu0 %v2077
      %2121 = vmatprep.subr.mxu0 0.0
      %2122 = vmatpush1.msra.mxu0 %v2076
      %2123 = vmatprep.subr.mxu0 0.0
      %2124 = vmatpush1.msra.mxu0 %v2075
      %2125 = vmatprep.subr.mxu0 0.0
      %2126 = vmatpush1.msra.mxu0 %v2074
      %2127 = vmatprep.subr.mxu0 0.0
      %2128 = vmatpush1.msra.mxu0 %v2073
      %2129 = vmatprep.subr.mxu0 0.0
      %2130 = vmatpush1.msra.mxu0 %v2072
      %2131 = vmatprep.subr.mxu0 0.0
      %2132 = vmatpush1.msra.mxu0 %v2071
      %2133 = vmatprep.subr.mxu0 0.0
      %2134 = vmatpush1.msra.mxu0 %v2070
      %2135 = vmatprep.subr.mxu0 0.0
      %2136 = vmatpush1.msra.mxu0 %v2069
      %2137 = vmatprep.subr.mxu0 0.0
      %2138 = vmatpush1.msra.mxu0 %v2068
      %2139 = vmatprep.subr.mxu0 0.0
      %2140 = vmatpush2.msra.mxu0 %v2099
      %2141 = vmatprep.subr.mxu0 0.0
      %2142 = vmatpush2.msra.mxu0 %v2098
      %2143 = vmatprep.subr.mxu0 0.0
      %2144 = vmatpush2.msra.mxu0 %v2097
      %2145 = vmatprep.subr.mxu0 0.0
      %2146 = vmatpush2.msra.mxu0 %v2096
      %2147 = vmatprep.subr.mxu0 0.0
      %2148 = vmatpush2.msra.mxu0 %v2095
      %2149 = vmatprep.subr.mxu0 0.0
      %2150 = vmatpush2.msra.mxu0 %v2094
      %2151 = vmatprep.subr.mxu0 0.0
      %2152 = vmatpush2.msra.mxu0 %v2093
      %2153 = vmatprep.subr.mxu0 0.0
      %2154 = vmatpush2.msra.mxu0 %v2092
      %2155 = vmatprep.subr.mxu0 0.0
      %2156 = vmatpush2.msra.mxu0 %v2091
      %2157 = vmatprep.subr.mxu0 0.0
      %2158 = vmatpush2.msra.mxu0 %v2090
      %2159 = vmatprep.subr.mxu0 0.0
      %2160 = vmatpush2.msra.mxu0 %v2089
      %2161 = vmatprep.subr.mxu0 0.0
      %2162 = vmatpush2.msra.mxu0 %v2088
      %2163 = vmatprep.subr.mxu0 0.0
      %2164 = vmatpush2.msra.mxu0 %v2087
      %2165 = vmatprep.subr.mxu0 0.0
      %2166 = vmatpush2.msra.mxu0 %v2086
      %2167 = vmatprep.subr.mxu0 0.0
      %2168 = vmatpush2.msra.mxu0 %v2085
      %2169 = vmatprep.subr.mxu0 0.0
      %2170 = vmatpush2.msra.mxu0 %v2084
      %2171 = vmatprep.mubr.f32.mxu0 %v2067
      %2172 = vmatmul.mubr.f32.gmra.mxu0 %v2066
      %v2173 = vpop.f32.mrf.mxu0
      %v2174 = vadd.f32 %v2105, %v2173
      %v2175 = vpop.f32.mrf.mxu0
      %2176 = vdwg.mxu0
      %vm2177 = vcmp.gt.f32.partialorder %v2174, 0.0
      %v2178 = vmul.f32 %v2174, 0.01
      %v2179 = vsel %vm2177, %v2174, %v2178
      %v2180 = vld [vmem:[%s33] sm:$0xff]
      %v2181 = vld [vmem:[%s33 + $0x8] sm:$0xff]
      %v2182 = vld [vmem:[%s33 + $0x10] sm:$0xff]
      %v2183 = vld [vmem:[%s33 + $0x18] sm:$0xff]
      %v2184 = vld [vmem:[%s33 + $0x20] sm:$0xff]
      %v2185 = vld [vmem:[%s33 + $0x28] sm:$0xff]
      %v2186 = vld [vmem:[%s33 + $0x30] sm:$0xff]
      %v2187 = vld [vmem:[%s33 + $0x38] sm:$0xff]
      %v2188 = vld [vmem:[%s33 + $0x40] sm:$0xff]
      %v2189 = vld [vmem:[%s33 + $0x48] sm:$0xff]
      %v2190 = vld [vmem:[%s33 + $0x50] sm:$0xff]
      %v2191 = vld [vmem:[%s33 + $0x58] sm:$0xff]
      %v2192 = vld [vmem:[%s33 + $0x60] sm:$0xff]
      %v2193 = vld [vmem:[%s33 + $0x68] sm:$0xff]
      %v2194 = vld [vmem:[%s33 + $0x70] sm:$0xff]
      %v2195 = vld [vmem:[%s33 + $0x78] sm:$0xff]
      %v2196 = vld [vmem:[%s35] sm:$0x1]
      %v2198 = vlaneseq
      %v2199 = vshrl.u32 %v2198, 7
      %v2200 = vsub.s32 0, %v2199
      %v2201 = vrot.slane %v2196, %v2200
      %2203 = vmatprep.subr.mxu0 0.0
      %2204 = vmatpush1.msra.mxu0 %v2195
      %2205 = vmatprep.subr.mxu0 0.0
      %2206 = vmatpush1.msra.mxu0 %v2194
      %2207 = vmatprep.subr.mxu0 0.0
      %2208 = vmatpush1.msra.mxu0 %v2193
      %2209 = vmatprep.subr.mxu0 0.0
      %2210 = vmatpush1.msra.mxu0 %v2192
      %2211 = vmatprep.subr.mxu0 0.0
      %2212 = vmatpush1.msra.mxu0 %v2191
      %2213 = vmatprep.subr.mxu0 0.0
      %2214 = vmatpush1.msra.mxu0 %v2190
      %2215 = vmatprep.subr.mxu0 0.0
      %2216 = vmatpush1.msra.mxu0 %v2189
      %2217 = vmatprep.subr.mxu0 0.0
      %2218 = vmatpush1.msra.mxu0 %v2188
      %2219 = vmatprep.subr.mxu0 0.0
      %2220 = vmatpush1.msra.mxu0 %v2187
      %2221 = vmatprep.subr.mxu0 0.0
      %2222 = vmatpush1.msra.mxu0 %v2186
      %2223 = vmatprep.subr.mxu0 0.0
      %2224 = vmatpush1.msra.mxu0 %v2185
      %2225 = vmatprep.subr.mxu0 0.0
      %2226 = vmatpush1.msra.mxu0 %v2184
      %2227 = vmatprep.subr.mxu0 0.0
      %2228 = vmatpush1.msra.mxu0 %v2183
      %2229 = vmatprep.subr.mxu0 0.0
      %2230 = vmatpush1.msra.mxu0 %v2182
      %2231 = vmatprep.subr.mxu0 0.0
      %2232 = vmatpush1.msra.mxu0 %v2181
      %2233 = vmatprep.subr.mxu0 0.0
      %2234 = vmatpush1.msra.mxu0 %v2180
      %2235 = vmatprep.subr.mxu0 0.0
      %2236 = vmatpush2.msra.mxu0 0.0
      %2237 = vmatprep.subr.mxu0 0.0
      %2238 = vmatpush2.msra.mxu0 0.0
      %2239 = vmatprep.subr.mxu0 0.0
      %2240 = vmatpush2.msra.mxu0 0.0
      %2241 = vmatprep.subr.mxu0 0.0
      %2242 = vmatpush2.msra.mxu0 0.0
      %2243 = vmatprep.subr.mxu0 0.0
      %2244 = vmatpush2.msra.mxu0 0.0
      %2245 = vmatprep.subr.mxu0 0.0
      %2246 = vmatpush2.msra.mxu0 0.0
      %2247 = vmatprep.subr.mxu0 0.0
      %2248 = vmatpush2.msra.mxu0 0.0
      %2249 = vmatprep.subr.mxu0 0.0
      %2250 = vmatpush2.msra.mxu0 0.0
      %2251 = vmatprep.subr.mxu0 0.0
      %2252 = vmatpush2.msra.mxu0 0.0
      %2253 = vmatprep.subr.mxu0 0.0
      %2254 = vmatpush2.msra.mxu0 0.0
      %2255 = vmatprep.subr.mxu0 0.0
      %2256 = vmatpush2.msra.mxu0 0.0
      %2257 = vmatprep.subr.mxu0 0.0
      %2258 = vmatpush2.msra.mxu0 0.0
      %2259 = vmatprep.subr.mxu0 0.0
      %2260 = vmatpush2.msra.mxu0 0.0
      %2261 = vmatprep.subr.mxu0 0.0
      %2262 = vmatpush2.msra.mxu0 0.0
      %2263 = vmatprep.subr.mxu0 0.0
      %2264 = vmatpush2.msra.mxu0 0.0
      %2265 = vmatprep.subr.mxu0 0.0
      %2266 = vmatpush2.msra.mxu0 0.0
      %2267 = vmatprep.mubr.f32.mxu0 0.0
      %2268 = vmatmul.mubr.f32.gmra.mxu0 %v2179
      %v2269 = vpop.f32.mrf.mxu0
      %v2270 = vadd.f32 %v2201, %v2269
      %v2271 = vpop.f32.mrf.mxu0
      %2272 = vdwg.mxu0
      %v2273 = vmul.f32 %v2270, 0.5
      %v2274 = vmul.f32 %v2273, 1.442695
      %v2275 = vpow.pop %v2274
      %v2276 = vld [vmem:[%s1050] sm:$0xff]
      %2278 = vrot.lane.b32.xlu0 %v2276, 8
      %v2279 = vpop.permute.xlu0 %2278
      %v2281 = vmul.f32 %v2275, %v2279
      %2283 = vrot.lane.b32.xlu0 %v2281, 120
      %v2284 = vpop.permute.xlu0 %2283
      %v2286 = vadd.f32 %v2270, %v2284
      %v2287 = vld [vmem:[%s37] sm:$0xff]
      %v2288 = vld [vmem:[%s39] sm:$0x1]
      %v2290 = vlaneseq
      %v2291 = vshrl.u32 %v2290, 7
      %v2292 = vsub.s32 0, %v2291
      %v2293 = vrot.slane %v2288, %v2292
      %vm2295 = vcmask 64512
      %v2297 = vsel %vm2295, %v2286, 0
      %2299 = vmatprep.subr.mxu0 0.0
      %2300 = vmatpush1.msra.mxu0 0.0
      %2301 = vmatprep.subr.mxu0 0.0
      %2302 = vmatpush1.msra.mxu0 0.0
      %2303 = vmatprep.subr.mxu0 0.0
      %2304 = vmatpush1.msra.mxu0 0.0
      %2305 = vmatprep.subr.mxu0 0.0
      %2306 = vmatpush1.msra.mxu0 0.0
      %2307 = vmatprep.subr.mxu0 0.0
      %2308 = vmatpush1.msra.mxu0 0.0
      %2309 = vmatprep.subr.mxu0 0.0
      %2310 = vmatpush1.msra.mxu0 0.0
      %2311 = vmatprep.subr.mxu0 0.0
      %2312 = vmatpush1.msra.mxu0 0.0
      %2313 = vmatprep.subr.mxu0 0.0
      %2314 = vmatpush1.msra.mxu0 0.0
      %2315 = vmatprep.subr.mxu0 0.0
      %2316 = vmatpush1.msra.mxu0 0.0
      %2317 = vmatprep.subr.mxu0 0.0
      %2318 = vmatpush1.msra.mxu0 0.0
      %2319 = vmatprep.subr.mxu0 0.0
      %2320 = vmatpush1.msra.mxu0 0.0
      %2321 = vmatprep.subr.mxu0 0.0
      %2322 = vmatpush1.msra.mxu0 0.0
      %2323 = vmatprep.subr.mxu0 0.0
      %2324 = vmatpush1.msra.mxu0 0.0
      %2325 = vmatprep.subr.mxu0 0.0
      %2326 = vmatpush1.msra.mxu0 0.0
      %2327 = vmatprep.subr.mxu0 0.0
      %2328 = vmatpush1.msra.mxu0 0.0
      %2329 = vmatprep.subr.mxu0 0.0
      %2330 = vmatpush1.msra.mxu0 %v2287
      %2331 = vmatprep.subr.mxu0 0.0
      %2332 = vmatpush2.msra.mxu0 0.0
      %2333 = vmatprep.subr.mxu0 0.0
      %2334 = vmatpush2.msra.mxu0 0.0
      %2335 = vmatprep.subr.mxu0 0.0
      %2336 = vmatpush2.msra.mxu0 0.0
      %2337 = vmatprep.subr.mxu0 0.0
      %2338 = vmatpush2.msra.mxu0 0.0
      %2339 = vmatprep.subr.mxu0 0.0
      %2340 = vmatpush2.msra.mxu0 0.0
      %2341 = vmatprep.subr.mxu0 0.0
      %2342 = vmatpush2.msra.mxu0 0.0
      %2343 = vmatprep.subr.mxu0 0.0
      %2344 = vmatpush2.msra.mxu0 0.0
      %2345 = vmatprep.subr.mxu0 0.0
      %2346 = vmatpush2.msra.mxu0 0.0
      %2347 = vmatprep.subr.mxu0 0.0
      %2348 = vmatpush2.msra.mxu0 0.0
      %2349 = vmatprep.subr.mxu0 0.0
      %2350 = vmatpush2.msra.mxu0 0.0
      %2351 = vmatprep.subr.mxu0 0.0
      %2352 = vmatpush2.msra.mxu0 0.0
      %2353 = vmatprep.subr.mxu0 0.0
      %2354 = vmatpush2.msra.mxu0 0.0
      %2355 = vmatprep.subr.mxu0 0.0
      %2356 = vmatpush2.msra.mxu0 0.0
      %2357 = vmatprep.subr.mxu0 0.0
      %2358 = vmatpush2.msra.mxu0 0.0
      %2359 = vmatprep.subr.mxu0 0.0
      %2360 = vmatpush2.msra.mxu0 0.0
      %2361 = vmatprep.subr.mxu0 0.0
      %2362 = vmatpush2.msra.mxu0 0.0
      %2363 = vmatprep.mubr.f32.mxu0 0.0
      %2364 = vmatmul.mubr.f32.gmra.mxu0 %v2297
      %v2365 = vpop.f32.mrf.mxu0
      %v2366 = vadd.f32 %v2293, %v2365
      %v2367 = vpop.f32.mrf.mxu0
      %2368 = vdwg.mxu0
      %vm2369 = vcmp.gt.f32.partialorder %v2366, 0.0
      %v2370 = vmul.f32 %v2366, 0.01
      %v2371 = vsel %vm2369, %v2366, %v2370
      %v2372 = vld [vmem:[%s41] sm:$0xff]
      %v2373 = vld [vmem:[%s41 + $0x8] sm:$0xff]
      %v2374 = vld [vmem:[%s41 + $0x10] sm:$0xff]
      %v2375 = vld [vmem:[%s41 + $0x18] sm:$0xff]
      %v2376 = vld [vmem:[%s41 + $0x20] sm:$0xff]
      %v2377 = vld [vmem:[%s41 + $0x28] sm:$0xff]
      %v2378 = vld [vmem:[%s41 + $0x30] sm:$0xff]
      %v2379 = vld [vmem:[%s41 + $0x38] sm:$0xff]
      %v2380 = vld [vmem:[%s43] sm:$0x1]
      %v2382 = vlaneseq
      %v2383 = vshrl.u32 %v2382, 7
      %v2384 = vsub.s32 0, %v2383
      %v2385 = vrot.slane %v2380, %v2384
      %v2388 = vsel %vm1855, %v2371, 0
      %2390 = vmatprep.subr.mxu0 0.0
      %2391 = vmatpush1.msra.mxu0 0.0
      %2392 = vmatprep.subr.mxu0 0.0
      %2393 = vmatpush1.msra.mxu0 0.0
      %2394 = vmatprep.subr.mxu0 0.0
      %2395 = vmatpush1.msra.mxu0 0.0
      %2396 = vmatprep.subr.mxu0 0.0
      %2397 = vmatpush1.msra.mxu0 0.0
      %2398 = vmatprep.subr.mxu0 0.0
      %2399 = vmatpush1.msra.mxu0 0.0
      %2400 = vmatprep.subr.mxu0 0.0
      %2401 = vmatpush1.msra.mxu0 0.0
      %2402 = vmatprep.subr.mxu0 0.0
      %2403 = vmatpush1.msra.mxu0 0.0
      %2404 = vmatprep.subr.mxu0 0.0
      %2405 = vmatpush1.msra.mxu0 0.0
      %2406 = vmatprep.subr.mxu0 0.0
      %2407 = vmatpush1.msra.mxu0 %v2379
      %2408 = vmatprep.subr.mxu0 0.0
      %2409 = vmatpush1.msra.mxu0 %v2378
      %2410 = vmatprep.subr.mxu0 0.0
      %2411 = vmatpush1.msra.mxu0 %v2377
      %2412 = vmatprep.subr.mxu0 0.0
      %2413 = vmatpush1.msra.mxu0 %v2376
      %2414 = vmatprep.subr.mxu0 0.0
      %2415 = vmatpush1.msra.mxu0 %v2375
      %2416 = vmatprep.subr.mxu0 0.0
      %2417 = vmatpush1.msra.mxu0 %v2374
      %2418 = vmatprep.subr.mxu0 0.0
      %2419 = vmatpush1.msra.mxu0 %v2373
      %2420 = vmatprep.subr.mxu0 0.0
      %2421 = vmatpush1.msra.mxu0 %v2372
      %2422 = vmatprep.subr.mxu0 0.0
      %2423 = vmatpush2.msra.mxu0 0.0
      %2424 = vmatprep.subr.mxu0 0.0
      %2425 = vmatpush2.msra.mxu0 0.0
      %2426 = vmatprep.subr.mxu0 0.0
      %2427 = vmatpush2.msra.mxu0 0.0
      %2428 = vmatprep.subr.mxu0 0.0
      %2429 = vmatpush2.msra.mxu0 0.0
      %2430 = vmatprep.subr.mxu0 0.0
      %2431 = vmatpush2.msra.mxu0 0.0
      %2432 = vmatprep.subr.mxu0 0.0
      %2433 = vmatpush2.msra.mxu0 0.0
      %2434 = vmatprep.subr.mxu0 0.0
      %2435 = vmatpush2.msra.mxu0 0.0
      %2436 = vmatprep.subr.mxu0 0.0
      %2437 = vmatpush2.msra.mxu0 0.0
      %2438 = vmatprep.subr.mxu0 0.0
      %2439 = vmatpush2.msra.mxu0 0.0
      %2440 = vmatprep.subr.mxu0 0.0
      %2441 = vmatpush2.msra.mxu0 0.0
      %2442 = vmatprep.subr.mxu0 0.0
      %2443 = vmatpush2.msra.mxu0 0.0
      %2444 = vmatprep.subr.mxu0 0.0
      %2445 = vmatpush2.msra.mxu0 0.0
      %2446 = vmatprep.subr.mxu0 0.0
      %2447 = vmatpush2.msra.mxu0 0.0
      %2448 = vmatprep.subr.mxu0 0.0
      %2449 = vmatpush2.msra.mxu0 0.0
      %2450 = vmatprep.subr.mxu0 0.0
      %2451 = vmatpush2.msra.mxu0 0.0
      %2452 = vmatprep.subr.mxu0 0.0
      %2453 = vmatpush2.msra.mxu0 0.0
      %2454 = vmatprep.mubr.f32.mxu0 0.0
      %2455 = vmatmul.mubr.f32.gmra.mxu0 %v2388
      %v2456 = vpop.f32.mrf.mxu0
      %v2457 = vadd.f32 %v2385, %v2456
      %v2458 = vpop.f32.mrf.mxu0
      %2459 = vdwg.mxu0
      %vm2460 = vcmp.gt.f32.partialorder %v2457, 0.0
      %v2461 = vmul.f32 %v2457, 0.01
      %v2462 = vsel %vm2460, %v2457, %v2461
      %v2463 = vld [vmem:[%s45] sm:$0xff]
      %v2464 = vld [vmem:[%s45 + $0x8] sm:$0xff]
      %v2465 = vld [vmem:[%s45 + $0x10] sm:$0xff]
      %v2466 = vld [vmem:[%s45 + $0x18] sm:$0xff]
      %v2467 = vld [vmem:[%s45 + $0x20] sm:$0xff]
      %v2468 = vld [vmem:[%s45 + $0x28] sm:$0xff]
      %v2469 = vld [vmem:[%s45 + $0x30] sm:$0xff]
      %v2470 = vld [vmem:[%s45 + $0x38] sm:$0xff]
      %v2471 = vld [vmem:[%s45 + $0x40] sm:$0xff]
      %v2472 = vld [vmem:[%s45 + $0x48] sm:$0xff]
      %v2473 = vld [vmem:[%s45 + $0x50] sm:$0xff]
      %v2474 = vld [vmem:[%s45 + $0x58] sm:$0xff]
      %v2475 = vld [vmem:[%s45 + $0x60] sm:$0xff]
      %v2476 = vld [vmem:[%s45 + $0x68] sm:$0xff]
      %v2477 = vld [vmem:[%s45 + $0x70] sm:$0xff]
      %v2478 = vld [vmem:[%s45 + $0x78] sm:$0xff]
      %v2479 = vld [vmem:[%s45 + $0x80] sm:$0xff]
      %v2480 = vld [vmem:[%s45 + $0x88] sm:$0xff]
      %v2481 = vld [vmem:[%s45 + $0x90] sm:$0xff]
      %v2482 = vld [vmem:[%s45 + $0x98] sm:$0xff]
      %v2483 = vld [vmem:[%s45 + $0xa0] sm:$0xff]
      %v2484 = vld [vmem:[%s45 + $0xa8] sm:$0xff]
      %v2485 = vld [vmem:[%s45 + $0xb0] sm:$0xff]
      %v2486 = vld [vmem:[%s45 + $0xb8] sm:$0xff]
      %v2487 = vld [vmem:[%s45 + $0xc0] sm:$0xff]
      %v2488 = vld [vmem:[%s45 + $0xc8] sm:$0xff]
      %v2489 = vld [vmem:[%s45 + $0xd0] sm:$0xff]
      %v2490 = vld [vmem:[%s45 + $0xd8] sm:$0xff]
      %v2491 = vld [vmem:[%s45 + $0xe0] sm:$0xff]
      %v2492 = vld [vmem:[%s45 + $0xe8] sm:$0xff]
      %v2493 = vld [vmem:[%s45 + $0xf0] sm:$0xff]
      %v2494 = vld [vmem:[%s45 + $0xf8] sm:$0xff]
      %v2495 = vld [vmem:[%s47] sm:$0x3]
      %v2497 = vlaneseq
      %v2498 = vshrl.u32 %v2497, 7
      %v2499 = vsub.s32 0, %v2498
      %v2500 = vrot.slane %v2495, %v2499
      %v2501 = vlaneseq
      %v2502 = vshrl.u32 %v2501, 7
      %v2503 = vsub.s32 1, %v2502
      %v2504 = vrot.slane %v2495, %v2503
      %2507 = vmatprep.subr.mxu0 %v2494
      %2508 = vmatpush1.msra.mxu0 %v2493
      %2509 = vmatprep.subr.mxu0 %v2492
      %2510 = vmatpush1.msra.mxu0 %v2491
      %2511 = vmatprep.subr.mxu0 %v2490
      %2512 = vmatpush1.msra.mxu0 %v2489
      %2513 = vmatprep.subr.mxu0 %v2488
      %2514 = vmatpush1.msra.mxu0 %v2487
      %2515 = vmatprep.subr.mxu0 %v2486
      %2516 = vmatpush1.msra.mxu0 %v2485
      %2517 = vmatprep.subr.mxu0 %v2484
      %2518 = vmatpush1.msra.mxu0 %v2483
      %2519 = vmatprep.subr.mxu0 %v2482
      %2520 = vmatpush1.msra.mxu0 %v2481
      %2521 = vmatprep.subr.mxu0 %v2480
      %2522 = vmatpush1.msra.mxu0 %v2479
      %2523 = vmatprep.subr.mxu0 %v2478
      %2524 = vmatpush1.msra.mxu0 %v2477
      %2525 = vmatprep.subr.mxu0 %v2476
      %2526 = vmatpush1.msra.mxu0 %v2475
      %2527 = vmatprep.subr.mxu0 %v2474
      %2528 = vmatpush1.msra.mxu0 %v2473
      %2529 = vmatprep.subr.mxu0 %v2472
      %2530 = vmatpush1.msra.mxu0 %v2471
      %2531 = vmatprep.subr.mxu0 %v2470
      %2532 = vmatpush1.msra.mxu0 %v2469
      %2533 = vmatprep.subr.mxu0 %v2468
      %2534 = vmatpush1.msra.mxu0 %v2467
      %2535 = vmatprep.subr.mxu0 %v2466
      %2536 = vmatpush1.msra.mxu0 %v2465
      %2537 = vmatprep.subr.mxu0 %v2464
      %2538 = vmatpush1.msra.mxu0 %v2463
      %2539 = vmatprep.subr.mxu0 0.0
      %2540 = vmatpush2.msra.mxu0 0.0
      %2541 = vmatprep.subr.mxu0 0.0
      %2542 = vmatpush2.msra.mxu0 0.0
      %2543 = vmatprep.subr.mxu0 0.0
      %2544 = vmatpush2.msra.mxu0 0.0
      %2545 = vmatprep.subr.mxu0 0.0
      %2546 = vmatpush2.msra.mxu0 0.0
      %2547 = vmatprep.subr.mxu0 0.0
      %2548 = vmatpush2.msra.mxu0 0.0
      %2549 = vmatprep.subr.mxu0 0.0
      %2550 = vmatpush2.msra.mxu0 0.0
      %2551 = vmatprep.subr.mxu0 0.0
      %2552 = vmatpush2.msra.mxu0 0.0
      %2553 = vmatprep.subr.mxu0 0.0
      %2554 = vmatpush2.msra.mxu0 0.0
      %2555 = vmatprep.subr.mxu0 0.0
      %2556 = vmatpush2.msra.mxu0 0.0
      %2557 = vmatprep.subr.mxu0 0.0
      %2558 = vmatpush2.msra.mxu0 0.0
      %2559 = vmatprep.subr.mxu0 0.0
      %2560 = vmatpush2.msra.mxu0 0.0
      %2561 = vmatprep.subr.mxu0 0.0
      %2562 = vmatpush2.msra.mxu0 0.0
      %2563 = vmatprep.subr.mxu0 0.0
      %2564 = vmatpush2.msra.mxu0 0.0
      %2565 = vmatprep.subr.mxu0 0.0
      %2566 = vmatpush2.msra.mxu0 0.0
      %2567 = vmatprep.subr.mxu0 0.0
      %2568 = vmatpush2.msra.mxu0 0.0
      %2569 = vmatprep.subr.mxu0 0.0
      %2570 = vmatpush2.msra.mxu0 0.0
      %2571 = vmatprep.mubr.f32.mxu0 0.0
      %2572 = vmatmul.mubr.f32.gmra.mxu0 %v2462
      %v2573 = vpop.f32.mrf.mxu0
      %v2574 = vadd.f32 %v2500, %v2573
      %v2575 = vpop.f32.mrf.mxu0
      %v2576 = vadd.f32 %v2504, %v2575
      %2577 = vdwg.mxu0
      %vm2578 = vcmp.gt.f32.partialorder %v2574, 0.0
      %vm2579 = vcmp.gt.f32.partialorder %v2576, 0.0
      %v2580 = vmul.f32 %v2574, 0.01
      %v2581 = vmul.f32 %v2576, 0.01
      %v2582 = vsel %vm2578, %v2574, %v2580
      %v2583 = vsel %vm2579, %v2576, %v2581
      %v2584 = vld [vmem:[%s49] sm:$0xff]
      %v2585 = vld [vmem:[%s49 + $0x8] sm:$0xff]
      %v2586 = vld [vmem:[%s49 + $0x10] sm:$0xff]
      %v2587 = vld [vmem:[%s49 + $0x18] sm:$0xff]
      %v2588 = vld [vmem:[%s49 + $0x20] sm:$0xff]
      %v2589 = vld [vmem:[%s49 + $0x28] sm:$0xff]
      %v2590 = vld [vmem:[%s49 + $0x30] sm:$0xff]
      %v2591 = vld [vmem:[%s49 + $0x38] sm:$0xff]
      %v2592 = vld [vmem:[%s49 + $0x40] sm:$0xff]
      %v2593 = vld [vmem:[%s49 + $0x48] sm:$0xff]
      %v2594 = vld [vmem:[%s49 + $0x50] sm:$0xff]
      %v2595 = vld [vmem:[%s49 + $0x58] sm:$0xff]
      %v2596 = vld [vmem:[%s49 + $0x60] sm:$0xff]
      %v2597 = vld [vmem:[%s49 + $0x68] sm:$0xff]
      %v2598 = vld [vmem:[%s49 + $0x70] sm:$0xff]
      %v2599 = vld [vmem:[%s49 + $0x78] sm:$0xff]
      %v2600 = vld [vmem:[%s49 + $0x80] sm:$0xff]
      %v2601 = vld [vmem:[%s49 + $0x88] sm:$0xff]
      %v2602 = vld [vmem:[%s49 + $0x90] sm:$0xff]
      %v2603 = vld [vmem:[%s49 + $0x98] sm:$0xff]
      %v2604 = vld [vmem:[%s49 + $0xa0] sm:$0xff]
      %v2605 = vld [vmem:[%s49 + $0xa8] sm:$0xff]
      %v2606 = vld [vmem:[%s49 + $0xb0] sm:$0xff]
      %v2607 = vld [vmem:[%s49 + $0xb8] sm:$0xff]
      %v2608 = vld [vmem:[%s49 + $0xc0] sm:$0xff]
      %v2609 = vld [vmem:[%s49 + $0xc8] sm:$0xff]
      %v2610 = vld [vmem:[%s49 + $0xd0] sm:$0xff]
      %v2611 = vld [vmem:[%s49 + $0xd8] sm:$0xff]
      %v2612 = vld [vmem:[%s49 + $0xe0] sm:$0xff]
      %v2613 = vld [vmem:[%s49 + $0xe8] sm:$0xff]
      %v2614 = vld [vmem:[%s49 + $0xf0] sm:$0xff]
      %v2615 = vld [vmem:[%s49 + $0xf8] sm:$0xff]
      %v2616 = vld [vmem:[%s49 + $0x100] sm:$0xff]
      %v2617 = vld [vmem:[%s49 + $0x108] sm:$0xff]
      %v2618 = vld [vmem:[%s49 + $0x110] sm:$0xff]
      %v2619 = vld [vmem:[%s49 + $0x118] sm:$0xff]
      %v2620 = vld [vmem:[%s49 + $0x120] sm:$0xff]
      %v2621 = vld [vmem:[%s49 + $0x128] sm:$0xff]
      %v2622 = vld [vmem:[%s49 + $0x130] sm:$0xff]
      %v2623 = vld [vmem:[%s49 + $0x138] sm:$0xff]
      %v2624 = vld [vmem:[%s51] sm:$0x3]
      %v2626 = vlaneseq
      %v2627 = vshrl.u32 %v2626, 7
      %v2628 = vsub.s32 0, %v2627
      %v2629 = vrot.slane %v2624, %v2628
      %v2630 = vlaneseq
      %v2631 = vshrl.u32 %v2630, 7
      %v2632 = vsub.s32 1, %v2631
      %v2633 = vrot.slane %v2624, %v2632
      %v2637 = vsel %vm1341, %v2583, 0
      %2639 = vmatprep.subr.mxu0 %v2615
      %2640 = vmatpush1.msra.mxu0 %v2614
      %2641 = vmatprep.subr.mxu0 %v2613
      %2642 = vmatpush1.msra.mxu0 %v2612
      %2643 = vmatprep.subr.mxu0 %v2611
      %2644 = vmatpush1.msra.mxu0 %v2610
      %2645 = vmatprep.subr.mxu0 %v2609
      %2646 = vmatpush1.msra.mxu0 %v2608
      %2647 = vmatprep.subr.mxu0 %v2607
      %2648 = vmatpush1.msra.mxu0 %v2606
      %2649 = vmatprep.subr.mxu0 %v2605
      %2650 = vmatpush1.msra.mxu0 %v2604
      %2651 = vmatprep.subr.mxu0 %v2603
      %2652 = vmatpush1.msra.mxu0 %v2602
      %2653 = vmatprep.subr.mxu0 %v2601
      %2654 = vmatpush1.msra.mxu0 %v2600
      %2655 = vmatprep.subr.mxu0 %v2599
      %2656 = vmatpush1.msra.mxu0 %v2598
      %2657 = vmatprep.subr.mxu0 %v2597
      %2658 = vmatpush1.msra.mxu0 %v2596
      %2659 = vmatprep.subr.mxu0 %v2595
      %2660 = vmatpush1.msra.mxu0 %v2594
      %2661 = vmatprep.subr.mxu0 %v2593
      %2662 = vmatpush1.msra.mxu0 %v2592
      %2663 = vmatprep.subr.mxu0 %v2591
      %2664 = vmatpush1.msra.mxu0 %v2590
      %2665 = vmatprep.subr.mxu0 %v2589
      %2666 = vmatpush1.msra.mxu0 %v2588
      %2667 = vmatprep.subr.mxu0 %v2587
      %2668 = vmatpush1.msra.mxu0 %v2586
      %2669 = vmatprep.subr.mxu0 %v2585
      %2670 = vmatpush1.msra.mxu0 %v2584
      %2671 = vmatprep.subr.mxu0 0.0
      %2672 = vmatpush2.msra.mxu0 0.0
      %2673 = vmatprep.subr.mxu0 0.0
      %2674 = vmatpush2.msra.mxu0 0.0
      %2675 = vmatprep.subr.mxu0 0.0
      %2676 = vmatpush2.msra.mxu0 0.0
      %2677 = vmatprep.subr.mxu0 0.0
      %2678 = vmatpush2.msra.mxu0 0.0
      %2679 = vmatprep.subr.mxu0 0.0
      %2680 = vmatpush2.msra.mxu0 0.0
      %2681 = vmatprep.subr.mxu0 0.0
      %2682 = vmatpush2.msra.mxu0 0.0
      %2683 = vmatprep.subr.mxu0 0.0
      %2684 = vmatpush2.msra.mxu0 0.0
      %2685 = vmatprep.subr.mxu0 0.0
      %2686 = vmatpush2.msra.mxu0 0.0
      %2687 = vmatprep.subr.mxu0 0.0
      %2688 = vmatpush2.msra.mxu0 0.0
      %2689 = vmatprep.subr.mxu0 0.0
      %2690 = vmatpush2.msra.mxu0 0.0
      %2691 = vmatprep.subr.mxu0 0.0
      %2692 = vmatpush2.msra.mxu0 0.0
      %2693 = vmatprep.subr.mxu0 0.0
      %2694 = vmatpush2.msra.mxu0 0.0
      %2695 = vmatprep.subr.mxu0 %v2623
      %2696 = vmatpush2.msra.mxu0 %v2622
      %2697 = vmatprep.subr.mxu0 %v2621
      %2698 = vmatpush2.msra.mxu0 %v2620
      %2699 = vmatprep.subr.mxu0 %v2619
      %2700 = vmatpush2.msra.mxu0 %v2618
      %2701 = vmatprep.subr.mxu0 %v2617
      %2702 = vmatpush2.msra.mxu0 %v2616
      %2703 = vmatprep.mubr.f32.mxu0 %v2637
      %2704 = vmatmul.mubr.f32.gmra.mxu0 %v2582
      %v2705 = vpop.f32.mrf.mxu0
      %v2706 = vadd.f32 %v2629, %v2705
      %v2707 = vpop.f32.mrf.mxu0
      %v2708 = vadd.f32 %v2633, %v2707
      %2709 = vdwg.mxu0
      %vm2710 = vcmp.gt.f32.partialorder %v2706, 0.0
      %vm2711 = vcmp.gt.f32.partialorder %v2708, 0.0
      %v2712 = vmul.f32 %v2706, 0.01
      %v2713 = vmul.f32 %v2708, 0.01
      %v2714 = vsel %vm2710, %v2706, %v2712
      %v2715 = vsel %vm2711, %v2708, %v2713
      %v2716 = vld [vmem:[%s53] sm:$0xff]
      %v2717 = vld [vmem:[%s53 + $0x8] sm:$0xff]
      %v2718 = vld [vmem:[%s53 + $0x10] sm:$0xff]
      %v2719 = vld [vmem:[%s53 + $0x18] sm:$0xff]
      %v2720 = vld [vmem:[%s53 + $0x20] sm:$0xff]
      %v2721 = vld [vmem:[%s53 + $0x28] sm:$0xff]
      %v2722 = vld [vmem:[%s53 + $0x30] sm:$0xff]
      %v2723 = vld [vmem:[%s53 + $0x38] sm:$0xff]
      %v2724 = vld [vmem:[%s53 + $0x40] sm:$0xff]
      %v2725 = vld [vmem:[%s53 + $0x48] sm:$0xff]
      %v2726 = vld [vmem:[%s53 + $0x50] sm:$0xff]
      %v2727 = vld [vmem:[%s53 + $0x58] sm:$0xff]
      %v2728 = vld [vmem:[%s53 + $0x60] sm:$0xff]
      %v2729 = vld [vmem:[%s53 + $0x68] sm:$0xff]
      %v2730 = vld [vmem:[%s53 + $0x70] sm:$0xff]
      %v2731 = vld [vmem:[%s53 + $0x78] sm:$0xff]
      %v2732 = vld [vmem:[%s53 + $0x80] sm:$0xff]
      %v2733 = vld [vmem:[%s53 + $0x88] sm:$0xff]
      %v2734 = vld [vmem:[%s53 + $0x90] sm:$0xff]
      %v2735 = vld [vmem:[%s53 + $0x98] sm:$0xff]
      %v2736 = vld [vmem:[%s53 + $0xa0] sm:$0xff]
      %v2737 = vld [vmem:[%s53 + $0xa8] sm:$0xff]
      %v2738 = vld [vmem:[%s53 + $0xb0] sm:$0xff]
      %v2739 = vld [vmem:[%s53 + $0xb8] sm:$0xff]
      %v2740 = vld [vmem:[%s53 + $0xc0] sm:$0xff]
      %v2741 = vld [vmem:[%s53 + $0xc8] sm:$0xff]
      %v2742 = vld [vmem:[%s53 + $0xd0] sm:$0xff]
      %v2743 = vld [vmem:[%s53 + $0xd8] sm:$0xff]
      %v2744 = vld [vmem:[%s53 + $0xe0] sm:$0xff]
      %v2745 = vld [vmem:[%s53 + $0xe8] sm:$0xff]
      %v2746 = vld [vmem:[%s53 + $0xf0] sm:$0xff]
      %v2747 = vld [vmem:[%s53 + $0xf8] sm:$0xff]
      %v2748 = vld [vmem:[%s53 + $0x100] sm:$0xff]
      %v2749 = vld [vmem:[%s53 + $0x108] sm:$0xff]
      %v2750 = vld [vmem:[%s53 + $0x110] sm:$0xff]
      %v2751 = vld [vmem:[%s53 + $0x118] sm:$0xff]
      %v2752 = vld [vmem:[%s53 + $0x120] sm:$0xff]
      %v2753 = vld [vmem:[%s53 + $0x128] sm:$0xff]
      %v2754 = vld [vmem:[%s53 + $0x130] sm:$0xff]
      %v2755 = vld [vmem:[%s53 + $0x138] sm:$0xff]
      %v2756 = vld [vmem:[%s53 + $0x140] sm:$0xff]
      %v2757 = vld [vmem:[%s53 + $0x148] sm:$0xff]
      %v2758 = vld [vmem:[%s53 + $0x150] sm:$0xff]
      %v2759 = vld [vmem:[%s53 + $0x158] sm:$0xff]
      %v2760 = vld [vmem:[%s53 + $0x160] sm:$0xff]
      %v2761 = vld [vmem:[%s53 + $0x168] sm:$0xff]
      %v2762 = vld [vmem:[%s53 + $0x170] sm:$0xff]
      %v2763 = vld [vmem:[%s53 + $0x178] sm:$0xff]
      %v2764 = vld [vmem:[%s55] sm:$0x3]
      %v2766 = vlaneseq
      %v2767 = vshrl.u32 %v2766, 7
      %v2768 = vsub.s32 0, %v2767
      %v2769 = vrot.slane %v2764, %v2768
      %v2770 = vlaneseq
      %v2771 = vshrl.u32 %v2770, 7
      %v2772 = vsub.s32 1, %v2771
      %v2773 = vrot.slane %v2764, %v2772
      %v2777 = vsel %vm1855, %v2715, 0
      %2779 = vmatprep.subr.mxu0 %v2747
      %2780 = vmatpush1.msra.mxu0 %v2746
      %2781 = vmatprep.subr.mxu0 %v2745
      %2782 = vmatpush1.msra.mxu0 %v2744
      %2783 = vmatprep.subr.mxu0 %v2743
      %2784 = vmatpush1.msra.mxu0 %v2742
      %2785 = vmatprep.subr.mxu0 %v2741
      %2786 = vmatpush1.msra.mxu0 %v2740
      %2787 = vmatprep.subr.mxu0 %v2739
      %2788 = vmatpush1.msra.mxu0 %v2738
      %2789 = vmatprep.subr.mxu0 %v2737
      %2790 = vmatpush1.msra.mxu0 %v2736
      %2791 = vmatprep.subr.mxu0 %v2735
      %2792 = vmatpush1.msra.mxu0 %v2734
      %2793 = vmatprep.subr.mxu0 %v2733
      %2794 = vmatpush1.msra.mxu0 %v2732
      %2795 = vmatprep.subr.mxu0 %v2731
      %2796 = vmatpush1.msra.mxu0 %v2730
      %2797 = vmatprep.subr.mxu0 %v2729
      %2798 = vmatpush1.msra.mxu0 %v2728
      %2799 = vmatprep.subr.mxu0 %v2727
      %2800 = vmatpush1.msra.mxu0 %v2726
      %2801 = vmatprep.subr.mxu0 %v2725
      %2802 = vmatpush1.msra.mxu0 %v2724
      %2803 = vmatprep.subr.mxu0 %v2723
      %2804 = vmatpush1.msra.mxu0 %v2722
      %2805 = vmatprep.subr.mxu0 %v2721
      %2806 = vmatpush1.msra.mxu0 %v2720
      %2807 = vmatprep.subr.mxu0 %v2719
      %2808 = vmatpush1.msra.mxu0 %v2718
      %2809 = vmatprep.subr.mxu0 %v2717
      %2810 = vmatpush1.msra.mxu0 %v2716
      %2811 = vmatprep.subr.mxu0 0.0
      %2812 = vmatpush2.msra.mxu0 0.0
      %2813 = vmatprep.subr.mxu0 0.0
      %2814 = vmatpush2.msra.mxu0 0.0
      %2815 = vmatprep.subr.mxu0 0.0
      %2816 = vmatpush2.msra.mxu0 0.0
      %2817 = vmatprep.subr.mxu0 0.0
      %2818 = vmatpush2.msra.mxu0 0.0
      %2819 = vmatprep.subr.mxu0 0.0
      %2820 = vmatpush2.msra.mxu0 0.0
      %2821 = vmatprep.subr.mxu0 0.0
      %2822 = vmatpush2.msra.mxu0 0.0
      %2823 = vmatprep.subr.mxu0 0.0
      %2824 = vmatpush2.msra.mxu0 0.0
      %2825 = vmatprep.subr.mxu0 0.0
      %2826 = vmatpush2.msra.mxu0 0.0
      %2827 = vmatprep.subr.mxu0 %v2763
      %2828 = vmatpush2.msra.mxu0 %v2762
      %2829 = vmatprep.subr.mxu0 %v2761
      %2830 = vmatpush2.msra.mxu0 %v2760
      %2831 = vmatprep.subr.mxu0 %v2759
      %2832 = vmatpush2.msra.mxu0 %v2758
      %2833 = vmatprep.subr.mxu0 %v2757
      %2834 = vmatpush2.msra.mxu0 %v2756
      %2835 = vmatprep.subr.mxu0 %v2755
      %2836 = vmatpush2.msra.mxu0 %v2754
      %2837 = vmatprep.subr.mxu0 %v2753
      %2838 = vmatpush2.msra.mxu0 %v2752
      %2839 = vmatprep.subr.mxu0 %v2751
      %2840 = vmatpush2.msra.mxu0 %v2750
      %2841 = vmatprep.subr.mxu0 %v2749
      %2842 = vmatpush2.msra.mxu0 %v2748
      %2843 = vmatprep.mubr.f32.mxu0 %v2777
      %2844 = vmatmul.mubr.f32.gmra.mxu0 %v2714
      %v2845 = vpop.f32.mrf.mxu0
      %v2846 = vadd.f32 %v2769, %v2845
      %v2847 = vpop.f32.mrf.mxu0
      %v2848 = vadd.f32 %v2773, %v2847
      %2849 = vdwg.mxu0
      %vm2850 = vcmp.gt.f32.partialorder %v2846, 0.0
      %vm2851 = vcmp.gt.f32.partialorder %v2848, 0.0
      %v2852 = vmul.f32 %v2846, 0.01
      %v2853 = vmul.f32 %v2848, 0.01
      %v2854 = vsel %vm2850, %v2846, %v2852
      %v2855 = vsel %vm2851, %v2848, %v2853
      %v2856 = vld [vmem:[%s57] sm:$0xff]
      %v2857 = vld [vmem:[%s57 + $0x8] sm:$0xff]
      %v2858 = vld [vmem:[%s57 + $0x10] sm:$0xff]
      %v2859 = vld [vmem:[%s57 + $0x18] sm:$0xff]
      %v2860 = vld [vmem:[%s57 + $0x20] sm:$0xff]
      %v2861 = vld [vmem:[%s57 + $0x28] sm:$0xff]
      %v2862 = vld [vmem:[%s57 + $0x30] sm:$0xff]
      %v2863 = vld [vmem:[%s57 + $0x38] sm:$0xff]
      %v2864 = vld [vmem:[%s57 + $0x40] sm:$0xff]
      %v2865 = vld [vmem:[%s57 + $0x48] sm:$0xff]
      %v2866 = vld [vmem:[%s57 + $0x50] sm:$0xff]
      %v2867 = vld [vmem:[%s57 + $0x58] sm:$0xff]
      %v2868 = vld [vmem:[%s57 + $0x60] sm:$0xff]
      %v2869 = vld [vmem:[%s57 + $0x68] sm:$0xff]
      %v2870 = vld [vmem:[%s57 + $0x70] sm:$0xff]
      %v2871 = vld [vmem:[%s57 + $0x78] sm:$0xff]
      %v2872 = vld [vmem:[%s57 + $0x80] sm:$0xff]
      %v2873 = vld [vmem:[%s57 + $0x88] sm:$0xff]
      %v2874 = vld [vmem:[%s57 + $0x90] sm:$0xff]
      %v2875 = vld [vmem:[%s57 + $0x98] sm:$0xff]
      %v2876 = vld [vmem:[%s57 + $0xa0] sm:$0xff]
      %v2877 = vld [vmem:[%s57 + $0xa8] sm:$0xff]
      %v2878 = vld [vmem:[%s57 + $0xb0] sm:$0xff]
      %v2879 = vld [vmem:[%s57 + $0xb8] sm:$0xff]
      %v2880 = vld [vmem:[%s57 + $0xc0] sm:$0xff]
      %v2881 = vld [vmem:[%s57 + $0xc8] sm:$0xff]
      %v2882 = vld [vmem:[%s57 + $0xd0] sm:$0xff]
      %v2883 = vld [vmem:[%s57 + $0xd8] sm:$0xff]
      %v2884 = vld [vmem:[%s57 + $0xe0] sm:$0xff]
      %v2885 = vld [vmem:[%s57 + $0xe8] sm:$0xff]
      %v2886 = vld [vmem:[%s57 + $0xf0] sm:$0xff]
      %v2887 = vld [vmem:[%s57 + $0xf8] sm:$0xff]
      %v2888 = vld [vmem:[%s57 + $0x100] sm:$0xff]
      %v2889 = vld [vmem:[%s57 + $0x108] sm:$0xff]
      %v2890 = vld [vmem:[%s57 + $0x110] sm:$0xff]
      %v2891 = vld [vmem:[%s57 + $0x118] sm:$0xff]
      %v2892 = vld [vmem:[%s57 + $0x120] sm:$0xff]
      %v2893 = vld [vmem:[%s57 + $0x128] sm:$0xff]
      %v2894 = vld [vmem:[%s57 + $0x130] sm:$0xff]
      %v2895 = vld [vmem:[%s57 + $0x138] sm:$0xff]
      %v2896 = vld [vmem:[%s57 + $0x140] sm:$0xff]
      %v2897 = vld [vmem:[%s57 + $0x148] sm:$0xff]
      %v2898 = vld [vmem:[%s57 + $0x150] sm:$0xff]
      %v2899 = vld [vmem:[%s57 + $0x158] sm:$0xff]
      %v2900 = vld [vmem:[%s57 + $0x160] sm:$0xff]
      %v2901 = vld [vmem:[%s57 + $0x168] sm:$0xff]
      %v2902 = vld [vmem:[%s57 + $0x170] sm:$0xff]
      %v2903 = vld [vmem:[%s57 + $0x178] sm:$0xff]
      %v2904 = vld [vmem:[%s57 + $0x180] sm:$0xff]
      %v2905 = vld [vmem:[%s57 + $0x188] sm:$0xff]
      %v2906 = vld [vmem:[%s57 + $0x190] sm:$0xff]
      %v2907 = vld [vmem:[%s57 + $0x198] sm:$0xff]
      %v2908 = vld [vmem:[%s57 + $0x1a0] sm:$0xff]
      %v2909 = vld [vmem:[%s57 + $0x1a8] sm:$0xff]
      %v2910 = vld [vmem:[%s57 + $0x1b0] sm:$0xff]
      %v2911 = vld [vmem:[%s57 + $0x1b8] sm:$0xff]
      %v2912 = vld [vmem:[%s59] sm:$0x3]
      %v2914 = vlaneseq
      %v2915 = vshrl.u32 %v2914, 7
      %v2916 = vsub.s32 0, %v2915
      %v2917 = vrot.slane %v2912, %v2916
      %v2918 = vlaneseq
      %v2919 = vshrl.u32 %v2918, 7
      %v2920 = vsub.s32 1, %v2919
      %v2921 = vrot.slane %v2912, %v2920
      %v2925 = vsel %vm1714, %v2855, 0
      %2927 = vmatprep.subr.mxu0 %v2887
      %2928 = vmatpush1.msra.mxu0 %v2886
      %2929 = vmatprep.subr.mxu0 %v2885
      %2930 = vmatpush1.msra.mxu0 %v2884
      %2931 = vmatprep.subr.mxu0 %v2883
      %2932 = vmatpush1.msra.mxu0 %v2882
      %2933 = vmatprep.subr.mxu0 %v2881
      %2934 = vmatpush1.msra.mxu0 %v2880
      %2935 = vmatprep.subr.mxu0 %v2879
      %2936 = vmatpush1.msra.mxu0 %v2878
      %2937 = vmatprep.subr.mxu0 %v2877
      %2938 = vmatpush1.msra.mxu0 %v2876
      %2939 = vmatprep.subr.mxu0 %v2875
      %2940 = vmatpush1.msra.mxu0 %v2874
      %2941 = vmatprep.subr.mxu0 %v2873
      %2942 = vmatpush1.msra.mxu0 %v2872
      %2943 = vmatprep.subr.mxu0 %v2871
      %2944 = vmatpush1.msra.mxu0 %v2870
      %2945 = vmatprep.subr.mxu0 %v2869
      %2946 = vmatpush1.msra.mxu0 %v2868
      %2947 = vmatprep.subr.mxu0 %v2867
      %2948 = vmatpush1.msra.mxu0 %v2866
      %2949 = vmatprep.subr.mxu0 %v2865
      %2950 = vmatpush1.msra.mxu0 %v2864
      %2951 = vmatprep.subr.mxu0 %v2863
      %2952 = vmatpush1.msra.mxu0 %v2862
      %2953 = vmatprep.subr.mxu0 %v2861
      %2954 = vmatpush1.msra.mxu0 %v2860
      %2955 = vmatprep.subr.mxu0 %v2859
      %2956 = vmatpush1.msra.mxu0 %v2858
      %2957 = vmatprep.subr.mxu0 %v2857
      %2958 = vmatpush1.msra.mxu0 %v2856
      %2959 = vmatprep.subr.mxu0 0.0
      %2960 = vmatpush2.msra.mxu0 0.0
      %2961 = vmatprep.subr.mxu0 0.0
      %2962 = vmatpush2.msra.mxu0 0.0
      %2963 = vmatprep.subr.mxu0 0.0
      %2964 = vmatpush2.msra.mxu0 0.0
      %2965 = vmatprep.subr.mxu0 0.0
      %2966 = vmatpush2.msra.mxu0 0.0
      %2967 = vmatprep.subr.mxu0 %v2911
      %2968 = vmatpush2.msra.mxu0 %v2910
      %2969 = vmatprep.subr.mxu0 %v2909
      %2970 = vmatpush2.msra.mxu0 %v2908
      %2971 = vmatprep.subr.mxu0 %v2907
      %2972 = vmatpush2.msra.mxu0 %v2906
      %2973 = vmatprep.subr.mxu0 %v2905
      %2974 = vmatpush2.msra.mxu0 %v2904
      %2975 = vmatprep.subr.mxu0 %v2903
      %2976 = vmatpush2.msra.mxu0 %v2902
      %2977 = vmatprep.subr.mxu0 %v2901
      %2978 = vmatpush2.msra.mxu0 %v2900
      %2979 = vmatprep.subr.mxu0 %v2899
      %2980 = vmatpush2.msra.mxu0 %v2898
      %2981 = vmatprep.subr.mxu0 %v2897
      %2982 = vmatpush2.msra.mxu0 %v2896
      %2983 = vmatprep.subr.mxu0 %v2895
      %2984 = vmatpush2.msra.mxu0 %v2894
      %2985 = vmatprep.subr.mxu0 %v2893
      %2986 = vmatpush2.msra.mxu0 %v2892
      %2987 = vmatprep.subr.mxu0 %v2891
      %2988 = vmatpush2.msra.mxu0 %v2890
      %2989 = vmatprep.subr.mxu0 %v2889
      %2990 = vmatpush2.msra.mxu0 %v2888
      %2991 = vmatprep.mubr.f32.mxu0 %v2925
      %2992 = vmatmul.mubr.f32.gmra.mxu0 %v2854
      %v2993 = vpop.f32.mrf.mxu0
      %v2994 = vadd.f32 %v2917, %v2993
      %v2995 = vpop.f32.mrf.mxu0
      %v2996 = vadd.f32 %v2921, %v2995
      %2997 = vdwg.mxu0
      %vm2998 = vcmp.gt.f32.partialorder %v2994, 0.0
      %vm2999 = vcmp.gt.f32.partialorder %v2996, 0.0
      %v3000 = vmul.f32 %v2994, 0.01
      %v3001 = vmul.f32 %v2996, 0.01
      %v3002 = vsel %vm2998, %v2994, %v3000
      %v3003 = vsel %vm2999, %v2996, %v3001
      %v3004 = vld [vmem:[%s61] sm:$0xff]
      %v3005 = vld [vmem:[%s61 + $0x8] sm:$0xff]
      %v3006 = vld [vmem:[%s61 + $0x10] sm:$0xff]
      %v3007 = vld [vmem:[%s61 + $0x18] sm:$0xff]
      %v3008 = vld [vmem:[%s61 + $0x20] sm:$0xff]
      %v3009 = vld [vmem:[%s61 + $0x28] sm:$0xff]
      %v3010 = vld [vmem:[%s61 + $0x30] sm:$0xff]
      %v3011 = vld [vmem:[%s61 + $0x38] sm:$0xff]
      %v3012 = vld [vmem:[%s61 + $0x40] sm:$0xff]
      %v3013 = vld [vmem:[%s61 + $0x48] sm:$0xff]
      %v3014 = vld [vmem:[%s61 + $0x50] sm:$0xff]
      %v3015 = vld [vmem:[%s61 + $0x58] sm:$0xff]
      %v3016 = vld [vmem:[%s61 + $0x60] sm:$0xff]
      %v3017 = vld [vmem:[%s61 + $0x68] sm:$0xff]
      %v3018 = vld [vmem:[%s61 + $0x70] sm:$0xff]
      %v3019 = vld [vmem:[%s61 + $0x78] sm:$0xff]
      %v3020 = vld [vmem:[%s61 + $0x80] sm:$0xff]
      %v3021 = vld [vmem:[%s61 + $0x88] sm:$0xff]
      %v3022 = vld [vmem:[%s61 + $0x90] sm:$0xff]
      %v3023 = vld [vmem:[%s61 + $0x98] sm:$0xff]
      %v3024 = vld [vmem:[%s61 + $0xa0] sm:$0xff]
      %v3025 = vld [vmem:[%s61 + $0xa8] sm:$0xff]
      %v3026 = vld [vmem:[%s61 + $0xb0] sm:$0xff]
      %v3027 = vld [vmem:[%s61 + $0xb8] sm:$0xff]
      %v3028 = vld [vmem:[%s61 + $0xc0] sm:$0xff]
      %v3029 = vld [vmem:[%s61 + $0xc8] sm:$0xff]
      %v3030 = vld [vmem:[%s61 + $0xd0] sm:$0xff]
      %v3031 = vld [vmem:[%s61 + $0xd8] sm:$0xff]
      %v3032 = vld [vmem:[%s61 + $0xe0] sm:$0xff]
      %v3033 = vld [vmem:[%s61 + $0xe8] sm:$0xff]
      %v3034 = vld [vmem:[%s61 + $0xf0] sm:$0xff]
      %v3035 = vld [vmem:[%s61 + $0xf8] sm:$0xff]
      %v3036 = vld [vmem:[%s61 + $0x100] sm:$0xff]
      %v3037 = vld [vmem:[%s61 + $0x108] sm:$0xff]
      %v3038 = vld [vmem:[%s61 + $0x110] sm:$0xff]
      %v3039 = vld [vmem:[%s61 + $0x118] sm:$0xff]
      %v3040 = vld [vmem:[%s61 + $0x120] sm:$0xff]
      %v3041 = vld [vmem:[%s61 + $0x128] sm:$0xff]
      %v3042 = vld [vmem:[%s61 + $0x130] sm:$0xff]
      %v3043 = vld [vmem:[%s61 + $0x138] sm:$0xff]
      %v3044 = vld [vmem:[%s61 + $0x140] sm:$0xff]
      %v3045 = vld [vmem:[%s61 + $0x148] sm:$0xff]
      %v3046 = vld [vmem:[%s61 + $0x150] sm:$0xff]
      %v3047 = vld [vmem:[%s61 + $0x158] sm:$0xff]
      %v3048 = vld [vmem:[%s61 + $0x160] sm:$0xff]
      %v3049 = vld [vmem:[%s61 + $0x168] sm:$0xff]
      %v3050 = vld [vmem:[%s61 + $0x170] sm:$0xff]
      %v3051 = vld [vmem:[%s61 + $0x178] sm:$0xff]
      %v3052 = vld [vmem:[%s61 + $0x180] sm:$0xff]
      %v3053 = vld [vmem:[%s61 + $0x188] sm:$0xff]
      %v3054 = vld [vmem:[%s61 + $0x190] sm:$0xff]
      %v3055 = vld [vmem:[%s61 + $0x198] sm:$0xff]
      %v3056 = vld [vmem:[%s61 + $0x1a0] sm:$0xff]
      %v3057 = vld [vmem:[%s61 + $0x1a8] sm:$0xff]
      %v3058 = vld [vmem:[%s61 + $0x1b0] sm:$0xff]
      %v3059 = vld [vmem:[%s61 + $0x1b8] sm:$0xff]
      %v3060 = vld [vmem:[%s61 + $0x1c0] sm:$0xff]
      %v3061 = vld [vmem:[%s61 + $0x1c8] sm:$0xff]
      %v3062 = vld [vmem:[%s61 + $0x1d0] sm:$0xff]
      %v3063 = vld [vmem:[%s61 + $0x1d8] sm:$0xff]
      %v3064 = vld [vmem:[%s61 + $0x1e0] sm:$0xff]
      %v3065 = vld [vmem:[%s61 + $0x1e8] sm:$0xff]
      %v3066 = vld [vmem:[%s61 + $0x1f0] sm:$0xff]
      %v3067 = vld [vmem:[%s61 + $0x1f8] sm:$0xff]
      %v3068 = vld [vmem:[%s61 + $0x200] sm:$0xff]
      %v3069 = vld [vmem:[%s61 + $0x208] sm:$0xff]
      %v3070 = vld [vmem:[%s61 + $0x210] sm:$0xff]
      %v3071 = vld [vmem:[%s61 + $0x218] sm:$0xff]
      %v3072 = vld [vmem:[%s61 + $0x220] sm:$0xff]
      %v3073 = vld [vmem:[%s61 + $0x228] sm:$0xff]
      %v3074 = vld [vmem:[%s61 + $0x230] sm:$0xff]
      %v3075 = vld [vmem:[%s61 + $0x238] sm:$0xff]
      %v3076 = vld [vmem:[%s61 + $0x240] sm:$0xff]
      %v3077 = vld [vmem:[%s61 + $0x248] sm:$0xff]
      %v3078 = vld [vmem:[%s61 + $0x250] sm:$0xff]
      %v3079 = vld [vmem:[%s61 + $0x258] sm:$0xff]
      %v3080 = vld [vmem:[%s61 + $0x260] sm:$0xff]
      %v3081 = vld [vmem:[%s61 + $0x268] sm:$0xff]
      %v3082 = vld [vmem:[%s61 + $0x270] sm:$0xff]
      %v3083 = vld [vmem:[%s61 + $0x278] sm:$0xff]
      %v3084 = vld [vmem:[%s61 + $0x280] sm:$0xff]
      %v3085 = vld [vmem:[%s61 + $0x288] sm:$0xff]
      %v3086 = vld [vmem:[%s61 + $0x290] sm:$0xff]
      %v3087 = vld [vmem:[%s61 + $0x298] sm:$0xff]
      %v3088 = vld [vmem:[%s61 + $0x2a0] sm:$0xff]
      %v3089 = vld [vmem:[%s61 + $0x2a8] sm:$0xff]
      %v3090 = vld [vmem:[%s61 + $0x2b0] sm:$0xff]
      %v3091 = vld [vmem:[%s61 + $0x2b8] sm:$0xff]
      %v3092 = vld [vmem:[%s61 + $0x2c0] sm:$0xff]
      %v3093 = vld [vmem:[%s61 + $0x2c8] sm:$0xff]
      %v3094 = vld [vmem:[%s61 + $0x2d0] sm:$0xff]
      %v3095 = vld [vmem:[%s61 + $0x2d8] sm:$0xff]
      %v3096 = vld [vmem:[%s61 + $0x2e0] sm:$0xff]
      %v3097 = vld [vmem:[%s61 + $0x2e8] sm:$0xff]
      %v3098 = vld [vmem:[%s61 + $0x2f0] sm:$0xff]
      %v3099 = vld [vmem:[%s61 + $0x2f8] sm:$0xff]
      %v3100 = vld [vmem:[%s63] sm:$0x7]
      %v3102 = vlaneseq
      %v3103 = vshrl.u32 %v3102, 7
      %v3104 = vsub.s32 0, %v3103
      %v3105 = vrot.slane %v3100, %v3104
      %v3106 = vlaneseq
      %v3107 = vshrl.u32 %v3106, 7
      %v3108 = vsub.s32 1, %v3107
      %v3109 = vrot.slane %v3100, %v3108
      %v3110 = vlaneseq
      %v3111 = vshrl.u32 %v3110, 7
      %v3112 = vsub.s32 2, %v3111
      %v3113 = vrot.slane %v3100, %v3112
      %3117 = vmatprep.subr.mxu0 %v3050
      %3118 = vmatpush1.msra.mxu0 %v3049
      %3119 = vmatprep.subr.mxu0 %v3047
      %3120 = vmatpush1.msra.mxu0 %v3046
      %3121 = vmatprep.subr.mxu0 %v3044
      %3122 = vmatpush1.msra.mxu0 %v3043
      %3123 = vmatprep.subr.mxu0 %v3041
      %3124 = vmatpush1.msra.mxu0 %v3040
      %3125 = vmatprep.subr.mxu0 %v3038
      %3126 = vmatpush1.msra.mxu0 %v3037
      %3127 = vmatprep.subr.mxu0 %v3035
      %3128 = vmatpush1.msra.mxu0 %v3034
      %3129 = vmatprep.subr.mxu0 %v3032
      %3130 = vmatpush1.msra.mxu0 %v3031
      %3131 = vmatprep.subr.mxu0 %v3029
      %3132 = vmatpush1.msra.mxu0 %v3028
      %3133 = vmatprep.subr.mxu0 %v3026
      %3134 = vmatpush1.msra.mxu0 %v3025
      %3135 = vmatprep.subr.mxu0 %v3023
      %3136 = vmatpush1.msra.mxu0 %v3022
      %3137 = vmatprep.subr.mxu0 %v3020
      %3138 = vmatpush1.msra.mxu0 %v3019
      %3139 = vmatprep.subr.mxu0 %v3017
      %3140 = vmatpush1.msra.mxu0 %v3016
      %3141 = vmatprep.subr.mxu0 %v3014
      %3142 = vmatpush1.msra.mxu0 %v3013
      %3143 = vmatprep.subr.mxu0 %v3011
      %3144 = vmatpush1.msra.mxu0 %v3010
      %3145 = vmatprep.subr.mxu0 %v3008
      %3146 = vmatpush1.msra.mxu0 %v3007
      %3147 = vmatprep.subr.mxu0 %v3005
      %3148 = vmatpush1.msra.mxu0 %v3004
      %3149 = vmatprep.subr.mxu0 %v3098
      %3150 = vmatpush2.msra.mxu0 %v3097
      %3151 = vmatprep.subr.mxu0 %v3095
      %3152 = vmatpush2.msra.mxu0 %v3094
      %3153 = vmatprep.subr.mxu0 %v3092
      %3154 = vmatpush2.msra.mxu0 %v3091
      %3155 = vmatprep.subr.mxu0 %v3089
      %3156 = vmatpush2.msra.mxu0 %v3088
      %3157 = vmatprep.subr.mxu0 %v3086
      %3158 = vmatpush2.msra.mxu0 %v3085
      %3159 = vmatprep.subr.mxu0 %v3083
      %3160 = vmatpush2.msra.mxu0 %v3082
      %3161 = vmatprep.subr.mxu0 %v3080
      %3162 = vmatpush2.msra.mxu0 %v3079
      %3163 = vmatprep.subr.mxu0 %v3077
      %3164 = vmatpush2.msra.mxu0 %v3076
      %3165 = vmatprep.subr.mxu0 %v3074
      %3166 = vmatpush2.msra.mxu0 %v3073
      %3167 = vmatprep.subr.mxu0 %v3071
      %3168 = vmatpush2.msra.mxu0 %v3070
      %3169 = vmatprep.subr.mxu0 %v3068
      %3170 = vmatpush2.msra.mxu0 %v3067
      %3171 = vmatprep.subr.mxu0 %v3065
      %3172 = vmatpush2.msra.mxu0 %v3064
      %3173 = vmatprep.subr.mxu0 %v3062
      %3174 = vmatpush2.msra.mxu0 %v3061
      %3175 = vmatprep.subr.mxu0 %v3059
      %3176 = vmatpush2.msra.mxu0 %v3058
      %3177 = vmatprep.subr.mxu0 %v3056
      %3178 = vmatpush2.msra.mxu0 %v3055
      %3179 = vmatprep.subr.mxu0 %v3053
      %3180 = vmatpush2.msra.mxu0 %v3052
      %3181 = vmatprep.mubr.f32.mxu0 %v3003
      %3182 = vmatmul.mubr.f32.gmra.mxu0 %v3002
      %v3183 = vpop.f32.mrf.mxu0
      %v3184 = vadd.f32 %v3105, %v3183
      %v3185 = vpop.f32.mrf.mxu0
      %v3186 = vadd.f32 %v3109, %v3185
      %3187 = vdwg.mxu0
      %3188 = vmatprep.subr.mxu0 0.0
      %3189 = vmatpush1.msra.mxu0 %v3051
      %3190 = vmatprep.subr.mxu0 0.0
      %3191 = vmatpush1.msra.mxu0 %v3048
      %3192 = vmatprep.subr.mxu0 0.0
      %3193 = vmatpush1.msra.mxu0 %v3045
      %3194 = vmatprep.subr.mxu0 0.0
      %3195 = vmatpush1.msra.mxu0 %v3042
      %3196 = vmatprep.subr.mxu0 0.0
      %3197 = vmatpush1.msra.mxu0 %v3039
      %3198 = vmatprep.subr.mxu0 0.0
      %3199 = vmatpush1.msra.mxu0 %v3036
      %3200 = vmatprep.subr.mxu0 0.0
      %3201 = vmatpush1.msra.mxu0 %v3033
      %3202 = vmatprep.subr.mxu0 0.0
      %3203 = vmatpush1.msra.mxu0 %v3030
      %3204 = vmatprep.subr.mxu0 0.0
      %3205 = vmatpush1.msra.mxu0 %v3027
      %3206 = vmatprep.subr.mxu0 0.0
      %3207 = vmatpush1.msra.mxu0 %v3024
      %3208 = vmatprep.subr.mxu0 0.0
      %3209 = vmatpush1.msra.mxu0 %v3021
      %3210 = vmatprep.subr.mxu0 0.0
      %3211 = vmatpush1.msra.mxu0 %v3018
      %3212 = vmatprep.subr.mxu0 0.0
      %3213 = vmatpush1.msra.mxu0 %v3015
      %3214 = vmatprep.subr.mxu0 0.0
      %3215 = vmatpush1.msra.mxu0 %v3012
      %3216 = vmatprep.subr.mxu0 0.0
      %3217 = vmatpush1.msra.mxu0 %v3009
      %3218 = vmatprep.subr.mxu0 0.0
      %3219 = vmatpush1.msra.mxu0 %v3006
      %3220 = vmatprep.subr.mxu0 0.0
      %3221 = vmatpush2.msra.mxu0 %v3099
      %3222 = vmatprep.subr.mxu0 0.0
      %3223 = vmatpush2.msra.mxu0 %v3096
      %3224 = vmatprep.subr.mxu0 0.0
      %3225 = vmatpush2.msra.mxu0 %v3093
      %3226 = vmatprep.subr.mxu0 0.0
      %3227 = vmatpush2.msra.mxu0 %v3090
      %3228 = vmatprep.subr.mxu0 0.0
      %3229 = vmatpush2.msra.mxu0 %v3087
      %3230 = vmatprep.subr.mxu0 0.0
      %3231 = vmatpush2.msra.mxu0 %v3084
      %3232 = vmatprep.subr.mxu0 0.0
      %3233 = vmatpush2.msra.mxu0 %v3081
      %3234 = vmatprep.subr.mxu0 0.0
      %3235 = vmatpush2.msra.mxu0 %v3078
      %3236 = vmatprep.subr.mxu0 0.0
      %3237 = vmatpush2.msra.mxu0 %v3075
      %3238 = vmatprep.subr.mxu0 0.0
      %3239 = vmatpush2.msra.mxu0 %v3072
      %3240 = vmatprep.subr.mxu0 0.0
      %3241 = vmatpush2.msra.mxu0 %v3069
      %3242 = vmatprep.subr.mxu0 0.0
      %3243 = vmatpush2.msra.mxu0 %v3066
      %3244 = vmatprep.subr.mxu0 0.0
      %3245 = vmatpush2.msra.mxu0 %v3063
      %3246 = vmatprep.subr.mxu0 0.0
      %3247 = vmatpush2.msra.mxu0 %v3060
      %3248 = vmatprep.subr.mxu0 0.0
      %3249 = vmatpush2.msra.mxu0 %v3057
      %3250 = vmatprep.subr.mxu0 0.0
      %3251 = vmatpush2.msra.mxu0 %v3054
      %3252 = vmatprep.mubr.f32.mxu0 %v3003
      %3253 = vmatmul.mubr.f32.gmra.mxu0 %v3002
      %v3254 = vpop.f32.mrf.mxu0
      %v3255 = vadd.f32 %v3113, %v3254
      %v3256 = vpop.f32.mrf.mxu0
      %3257 = vdwg.mxu0
      %vm3258 = vcmp.gt.f32.partialorder %v3184, 0.0
      %vm3259 = vcmp.gt.f32.partialorder %v3186, 0.0
      %vm3260 = vcmp.gt.f32.partialorder %v3255, 0.0
      %v3261 = vmul.f32 %v3184, 0.01
      %v3262 = vmul.f32 %v3186, 0.01
      %v3263 = vmul.f32 %v3255, 0.01
      %v3264 = vsel %vm3258, %v3184, %v3261
      %v3265 = vsel %vm3259, %v3186, %v3262
      %v3266 = vsel %vm3260, %v3255, %v3263
      %v3267 = vld [vmem:[%s65] sm:$0xff]
      %v3268 = vld [vmem:[%s65 + $0x8] sm:$0xff]
      %v3269 = vld [vmem:[%s65 + $0x10] sm:$0xff]
      %v3270 = vld [vmem:[%s65 + $0x18] sm:$0xff]
      %v3271 = vld [vmem:[%s65 + $0x20] sm:$0xff]
      %v3272 = vld [vmem:[%s65 + $0x28] sm:$0xff]
      %v3273 = vld [vmem:[%s65 + $0x30] sm:$0xff]
      %v3274 = vld [vmem:[%s65 + $0x38] sm:$0xff]
      %v3275 = vld [vmem:[%s65 + $0x40] sm:$0xff]
      %v3276 = vld [vmem:[%s65 + $0x48] sm:$0xff]
      %v3277 = vld [vmem:[%s65 + $0x50] sm:$0xff]
      %v3278 = vld [vmem:[%s65 + $0x58] sm:$0xff]
      %v3279 = vld [vmem:[%s65 + $0x60] sm:$0xff]
      %v3280 = vld [vmem:[%s65 + $0x68] sm:$0xff]
      %v3281 = vld [vmem:[%s65 + $0x70] sm:$0xff]
      %v3282 = vld [vmem:[%s65 + $0x78] sm:$0xff]
      %v3283 = vld [vmem:[%s65 + $0x80] sm:$0xff]
      %v3284 = vld [vmem:[%s65 + $0x88] sm:$0xff]
      %v3285 = vld [vmem:[%s65 + $0x90] sm:$0xff]
      %v3286 = vld [vmem:[%s65 + $0x98] sm:$0xff]
      %v3287 = vld [vmem:[%s65 + $0xa0] sm:$0xff]
      %v3288 = vld [vmem:[%s65 + $0xa8] sm:$0xff]
      %v3289 = vld [vmem:[%s65 + $0xb0] sm:$0xff]
      %v3290 = vld [vmem:[%s65 + $0xb8] sm:$0xff]
      %v3291 = vld [vmem:[%s65 + $0xc0] sm:$0xff]
      %v3292 = vld [vmem:[%s65 + $0xc8] sm:$0xff]
      %v3293 = vld [vmem:[%s65 + $0xd0] sm:$0xff]
      %v3294 = vld [vmem:[%s65 + $0xd8] sm:$0xff]
      %v3295 = vld [vmem:[%s65 + $0xe0] sm:$0xff]
      %v3296 = vld [vmem:[%s65 + $0xe8] sm:$0xff]
      %v3297 = vld [vmem:[%s65 + $0xf0] sm:$0xff]
      %v3298 = vld [vmem:[%s65 + $0xf8] sm:$0xff]
      %v3299 = vld [vmem:[%s65 + $0x100] sm:$0xff]
      %v3300 = vld [vmem:[%s65 + $0x108] sm:$0xff]
      %v3301 = vld [vmem:[%s65 + $0x110] sm:$0xff]
      %v3302 = vld [vmem:[%s65 + $0x118] sm:$0xff]
      %v3303 = vld [vmem:[%s67] sm:$0x1]
      %v3305 = vlaneseq
      %v3306 = vshrl.u32 %v3305, 7
      %v3307 = vsub.s32 0, %v3306
      %v3308 = vrot.slane %v3303, %v3307
      %v3311 = vsel %vm1341, %v3266, 0
      %3313 = vmatprep.subr.mxu0 0.0
      %3314 = vmatpush1.msra.mxu0 %v3282
      %3315 = vmatprep.subr.mxu0 0.0
      %3316 = vmatpush1.msra.mxu0 %v3281
      %3317 = vmatprep.subr.mxu0 0.0
      %3318 = vmatpush1.msra.mxu0 %v3280
      %3319 = vmatprep.subr.mxu0 0.0
      %3320 = vmatpush1.msra.mxu0 %v3279
      %3321 = vmatprep.subr.mxu0 0.0
      %3322 = vmatpush1.msra.mxu0 %v3278
      %3323 = vmatprep.subr.mxu0 0.0
      %3324 = vmatpush1.msra.mxu0 %v3277
      %3325 = vmatprep.subr.mxu0 0.0
      %3326 = vmatpush1.msra.mxu0 %v3276
      %3327 = vmatprep.subr.mxu0 0.0
      %3328 = vmatpush1.msra.mxu0 %v3275
      %3329 = vmatprep.subr.mxu0 0.0
      %3330 = vmatpush1.msra.mxu0 %v3274
      %3331 = vmatprep.subr.mxu0 0.0
      %3332 = vmatpush1.msra.mxu0 %v3273
      %3333 = vmatprep.subr.mxu0 0.0
      %3334 = vmatpush1.msra.mxu0 %v3272
      %3335 = vmatprep.subr.mxu0 0.0
      %3336 = vmatpush1.msra.mxu0 %v3271
      %3337 = vmatprep.subr.mxu0 0.0
      %3338 = vmatpush1.msra.mxu0 %v3270
      %3339 = vmatprep.subr.mxu0 0.0
      %3340 = vmatpush1.msra.mxu0 %v3269
      %3341 = vmatprep.subr.mxu0 0.0
      %3342 = vmatpush1.msra.mxu0 %v3268
      %3343 = vmatprep.subr.mxu0 0.0
      %3344 = vmatpush1.msra.mxu0 %v3267
      %3345 = vmatprep.subr.mxu0 0.0
      %3346 = vmatpush2.msra.mxu0 %v3298
      %3347 = vmatprep.subr.mxu0 0.0
      %3348 = vmatpush2.msra.mxu0 %v3297
      %3349 = vmatprep.subr.mxu0 0.0
      %3350 = vmatpush2.msra.mxu0 %v3296
      %3351 = vmatprep.subr.mxu0 0.0
      %3352 = vmatpush2.msra.mxu0 %v3295
      %3353 = vmatprep.subr.mxu0 0.0
      %3354 = vmatpush2.msra.mxu0 %v3294
      %3355 = vmatprep.subr.mxu0 0.0
      %3356 = vmatpush2.msra.mxu0 %v3293
      %3357 = vmatprep.subr.mxu0 0.0
      %3358 = vmatpush2.msra.mxu0 %v3292
      %3359 = vmatprep.subr.mxu0 0.0
      %3360 = vmatpush2.msra.mxu0 %v3291
      %3361 = vmatprep.subr.mxu0 0.0
      %3362 = vmatpush2.msra.mxu0 %v3290
      %3363 = vmatprep.subr.mxu0 0.0
      %3364 = vmatpush2.msra.mxu0 %v3289
      %3365 = vmatprep.subr.mxu0 0.0
      %3366 = vmatpush2.msra.mxu0 %v3288
      %3367 = vmatprep.subr.mxu0 0.0
      %3368 = vmatpush2.msra.mxu0 %v3287
      %3369 = vmatprep.subr.mxu0 0.0
      %3370 = vmatpush2.msra.mxu0 %v3286
      %3371 = vmatprep.subr.mxu0 0.0
      %3372 = vmatpush2.msra.mxu0 %v3285
      %3373 = vmatprep.subr.mxu0 0.0
      %3374 = vmatpush2.msra.mxu0 %v3284
      %3375 = vmatprep.subr.mxu0 0.0
      %3376 = vmatpush2.msra.mxu0 %v3283
      %3377 = vmatprep.mubr.f32.mxu0 %v3265
      %3378 = vmatmul.mubr.f32.gmra.mxu0 %v3264
      %v3379 = vpop.f32.mrf.mxu0
      %v3380 = vadd.f32 %v3308, %v3379
      %v3381 = vpop.f32.mrf.mxu0
      %3382 = vdwg.mxu0
      %3383 = vmatprep.subr.mxu0 0.0
      %3384 = vmatpush1.msra.mxu0 0.0
      %3385 = vmatprep.subr.mxu0 0.0
      %3386 = vmatpush1.msra.mxu0 0.0
      %3387 = vmatprep.subr.mxu0 0.0
      %3388 = vmatpush1.msra.mxu0 0.0
      %3389 = vmatprep.subr.mxu0 0.0
      %3390 = vmatpush1.msra.mxu0 0.0
      %3391 = vmatprep.subr.mxu0 0.0
      %3392 = vmatpush1.msra.mxu0 0.0
      %3393 = vmatprep.subr.mxu0 0.0
      %3394 = vmatpush1.msra.mxu0 0.0
      %3395 = vmatprep.subr.mxu0 0.0
      %3396 = vmatpush1.msra.mxu0 0.0
      %3397 = vmatprep.subr.mxu0 0.0
      %3398 = vmatpush1.msra.mxu0 0.0
      %3399 = vmatprep.subr.mxu0 0.0
      %3400 = vmatpush1.msra.mxu0 0.0
      %3401 = vmatprep.subr.mxu0 0.0
      %3402 = vmatpush1.msra.mxu0 0.0
      %3403 = vmatprep.subr.mxu0 0.0
      %3404 = vmatpush1.msra.mxu0 0.0
      %3405 = vmatprep.subr.mxu0 0.0
      %3406 = vmatpush1.msra.mxu0 0.0
      %3407 = vmatprep.subr.mxu0 0.0
      %3408 = vmatpush1.msra.mxu0 %v3302
      %3409 = vmatprep.subr.mxu0 0.0
      %3410 = vmatpush1.msra.mxu0 %v3301
      %3411 = vmatprep.subr.mxu0 0.0
      %3412 = vmatpush1.msra.mxu0 %v3300
      %3413 = vmatprep.subr.mxu0 0.0
      %3414 = vmatpush1.msra.mxu0 %v3299
      %3415 = vmatprep.subr.mxu0 0.0
      %3416 = vmatpush2.msra.mxu0 0.0
      %3417 = vmatprep.subr.mxu0 0.0
      %3418 = vmatpush2.msra.mxu0 0.0
      %3419 = vmatprep.subr.mxu0 0.0
      %3420 = vmatpush2.msra.mxu0 0.0
      %3421 = vmatprep.subr.mxu0 0.0
      %3422 = vmatpush2.msra.mxu0 0.0
      %3423 = vmatprep.subr.mxu0 0.0
      %3424 = vmatpush2.msra.mxu0 0.0
      %3425 = vmatprep.subr.mxu0 0.0
      %3426 = vmatpush2.msra.mxu0 0.0
      %3427 = vmatprep.subr.mxu0 0.0
      %3428 = vmatpush2.msra.mxu0 0.0
      %3429 = vmatprep.subr.mxu0 0.0
      %3430 = vmatpush2.msra.mxu0 0.0
      %3431 = vmatprep.subr.mxu0 0.0
      %3432 = vmatpush2.msra.mxu0 0.0
      %3433 = vmatprep.subr.mxu0 0.0
      %3434 = vmatpush2.msra.mxu0 0.0
      %3435 = vmatprep.subr.mxu0 0.0
      %3436 = vmatpush2.msra.mxu0 0.0
      %3437 = vmatprep.subr.mxu0 0.0
      %3438 = vmatpush2.msra.mxu0 0.0
      %3439 = vmatprep.subr.mxu0 0.0
      %3440 = vmatpush2.msra.mxu0 0.0
      %3441 = vmatprep.subr.mxu0 0.0
      %3442 = vmatpush2.msra.mxu0 0.0
      %3443 = vmatprep.subr.mxu0 0.0
      %3444 = vmatpush2.msra.mxu0 0.0
      %3445 = vmatprep.subr.mxu0 0.0
      %3446 = vmatpush2.msra.mxu0 0.0
      %3447 = vmatprep.mubr.f32.mxu0 0.0
      %3448 = vmatmul.mubr.f32.gmra.mxu0 %v3311
      %v3449 = vpop.f32.mrf.mxu0
      %v3450 = vadd.f32 %v3380, %v3449
      %v3451 = vpop.f32.mrf.mxu0
      %3452 = vdwg.mxu0
      %3453 = vst.msk [vmem:[%s1054] sm:$0xff] %vm1103, %v3450
      %3454 = vrot.lane.b32.xlu0 %v2286, 80
      %v3455 = vpop.permute.xlu0 %3454
      %vm3457 = vcmask 720512
      %3458 = vst.msk [vmem:[%s1054] sm:$0xff] %vm3457, %v3455
      %3460 = vrot.lane.b32.xlu0 %v2270, 88
      %v3461 = vpop.permute.xlu0 %3460
      %vm3463 = vcmask 851648
      %3464 = vst.msk [vmem:[%s1054] sm:$0xff] %vm3463, %v3461
      %p3465 = scmp.lt.s32.totalorder %s80, 1
      %s3466 = scalar_select %p3465, %s80, 1
      %s3467 = smul.addr %s3466, 8
      %s3468 = scalar_lea.vmem %s69, %s3467
      // Predicated region
      $region157: #{vae_forward.1} parent=155 // pred_check
        %p3469 = pneg %p822
      $region158: #{vae_forward.1} parent=155 // pred_check_branch
        %3471 = sbr.rel (%p3469) target = $region160
      $region159: #{vae_forward.1} parent=155 // pred_region
        _
      $region160: #{vae_forward.1} parent=155 // pred_fallthru
        _
    $region156: #{vae_forward.1} parent=5 // pred_fallthru
      _
    %p3472 = scmp.le.s32.totalorder 2, %s75
    // Predicated region
    $region161: #{vae_forward.1} parent=5 // pred_check
      %p3473 = pneg %p3472
    $region162: #{vae_forward.1} parent=5 // pred_check_branch
      %3475 = sbr.rel (%p3473) target = $region164
    $region163: #{vae_forward.1} parent=5 // pred_region
      %s3476 = ssub.s32 %s75, 2
      // Predicated region
      $region165: #{vae_forward.1} parent=163 // pred_check
        %p3477 = pneg %p828
      $region166: #{vae_forward.1} parent=163 // pred_check_branch
        %3479 = sbr.rel (%p3477) target = $region168
      $region167: #{vae_forward.1} parent=163 // pred_region
        %p3480 = scmp.lt.s32.totalorder %s81, 1
        %s3481 = scalar_select %p3480, %s81, 1
        %s3482 = smul.addr %s3481, 8
        %s3483 = scalar_lea.vmem %s69, %s3482
      $region168: #{vae_forward.1} parent=163 // pred_fallthru
        _
    $region164: #{vae_forward.1} parent=5 // pred_fallthru
      _
  $region6: #{vae_forward.1} parent=0 // loop_footer
    %s79 = sadd.s32 1, %s75
  $region7: #{vae_forward.1} parent=0 // loop_footer_branch
    %74 = sbr.rel target = $region3
  $region8: #{vae_forward.1} parent=0 // loop_exit
    _

</llo_original>
